<compile_context>
chip_gen: v7x
topology: tpu7x:2x2x1
jax: 0.10.0
libtpu: 0.0.40
codegen_flags: <defaults>
</compile_context>

<pallas_src>
import functools

import jax
import jax.numpy as jnp
import numpy as np
from jax import lax
from jax.experimental import pallas as pl
from jax.experimental.pallas import tpu as pltpu

_VMEM_LIMIT_BYTES = 64 * 1024 * 1024   # raise scoped VMEM (v5e default is 16 MiB)


def _round_up(x, m):
    return (x + m - 1) // m * m


def _pick_time_chunk(t, target):
    """Largest divisor of t that is <= target (keeps grid blocks exact)."""
    if t <= target:
        return t
    for tt in range(target, 0, -1):
        if t % tt == 0:
            return tt
    return t


def _pick_unroll(n, target=8):
    if n <= target:
        return n
    for u in (8, 4, 2):
        if n % u == 0:
            return u
    return 1


# -----------------------------------------------------------------------------
# Pass 1: input projection  gi = x @ w + b, tiled over M = T*B.
# -----------------------------------------------------------------------------
def _proj_kernel(x_ref, w_ref, b_ref, o_ref):
    # In-kernel cast of the activation tile (VPU filler under MXU/DMA slack).
    x = x_ref[...].astype(w_ref.dtype)
    acc = jnp.dot(x, w_ref[...], preferred_element_type=jnp.float32)
    o_ref[...] = (acc + b_ref[...]).astype(o_ref.dtype)


def _input_projection(x, w, b, out_dtype, tm_target=512):
    m, k = x.shape
    n = w.shape[1]
    tm = m if m <= tm_target else tm_target   # tm_target is a multiple of 8/16
    grid = (pl.cdiv(m, tm),)
    grid_spec = pltpu.PrefetchScalarGridSpec(
        num_scalar_prefetch=0,
        grid=grid,
        in_specs=[
            pl.BlockSpec((tm, k), lambda i: (i, 0)),
            pl.BlockSpec((k, n), lambda i: (0, 0)),
            pl.BlockSpec((1, n), lambda i: (0, 0)),
        ],
        out_specs=pl.BlockSpec((tm, n), lambda i: (i, 0)),
    )
    return pl.pallas_call(
        _proj_kernel,
        out_shape=jax.ShapeDtypeStruct((m, n), out_dtype),
        grid_spec=grid_spec,
        compiler_params=pltpu.CompilerParams(
            dimension_semantics=("parallel",),
            vmem_limit_bytes=_VMEM_LIMIT_BYTES),
    )(x, w, b)


# -----------------------------------------------------------------------------
# Pass 2: time-chunked serial recurrence with the Linear head fused in.
#   gi_ref : (Tt, B, 3Hp)  streamed chunk of input projections (biases folded)
#   h0_ref : (B, Hp)       initial hidden state
#   whh_ref: (Hp, 3Hp)     fused W_hh^T, gates [r|z|n]
#   bhn_ref: (1, Hp)       b_hn (stays inside r * (...))
#   wlin_ref/blin_ref      Linear head, padded to lane-dense Zp
#   ys_ref : (Tt, B, Zp)   streamed output chunk
#   hT_ref : (B, Hp)       resident carry / final hidden state
# -----------------------------------------------------------------------------
def _gru_chunk_kernel(gi_ref, h0_ref, whh_ref, bhn_ref, wlin_ref, blin_ref,
                      ys_ref, hT_ref, *, Tt, Hp, unroll):
    c = pl.program_id(0)
    b_dim = h0_ref.shape[0]
    zp = wlin_ref.shape[1]

    @pl.when(c == 0)
    def _():
        hT_ref[...] = h0_ref[...]

    # Weights / biases (and their broadcasts) hoisted out of the time loop.
    whh = whh_ref[...]                                               # (Hp, 3Hp)
    wlin = wlin_ref[...]                                             # (Hp, Zp)
    b_hn = jnp.broadcast_to(bhn_ref[...], (b_dim, Hp)).astype(jnp.float32)
    b_lin = jnp.broadcast_to(blin_ref[...], (b_dim, zp)).astype(jnp.float32)

    def step(t, h):
        # One fused (B,Hp)@(Hp,3Hp) MXU matmul per step; in-kernel cast of h.
        gh = jnp.dot(h.astype(whh.dtype), whh, preferred_element_type=jnp.float32)
        gi_t = gi_ref[t].astype(jnp.float32)                         # (B, 3Hp)
        # Lane-aligned gate splits (Hp is a multiple of 128).
        r = jax.nn.sigmoid(gi_t[:, :Hp] + gh[:, :Hp])
        z = jax.nn.sigmoid(gi_t[:, Hp:2 * Hp] + gh[:, Hp:2 * Hp])
        n = jnp.tanh(gi_t[:, 2 * Hp:] + r * (gh[:, 2 * Hp:] + b_hn))
        h_new = (1.0 - z) * n + z * h
        # Fused Linear head: rides in MXU slack, removes the h_all HBM round trip.
        y = jnp.dot(h_new.astype(wlin.dtype), wlin,
                    preferred_element_type=jnp.float32) + b_lin
        ys_ref[t] = y.astype(ys_ref.dtype)
        return h_new

    h_last = lax.fori_loop(0, Tt, step, hT_ref[...], unroll=unroll)
    hT_ref[...] = h_last


def _gru_recurrence_head(gi, h0, whh_t, b_hn, wlin_t, blin, out_dtype,
                         time_chunk=16):
    T, B, G = gi.shape
    Hp = whh_t.shape[0]
    Zp = wlin_t.shape[1]
    Tt = _pick_time_chunk(T, time_chunk)
    kernel = functools.partial(_gru_chunk_kernel, Tt=Tt, Hp=Hp,
                               unroll=_pick_unroll(Tt))
    grid_spec = pltpu.PrefetchScalarGridSpec(
        num_scalar_prefetch=0,
        grid=(T // Tt,),
        in_specs=[
            pl.BlockSpec((Tt, B, G), lambda c: (c, 0, 0)),   # gi chunk (streamed)
            pl.BlockSpec((B, Hp), lambda c: (0, 0)),         # h0
            pl.BlockSpec((Hp, G), lambda c: (0, 0)),         # fused W_hh^T
            pl.BlockSpec((1, Hp), lambda c: (0, 0)),         # b_hn
            pl.BlockSpec((Hp, Zp), lambda c: (0, 0)),        # W_lin^T (padded)
            pl.BlockSpec((1, Zp), lambda c: (0, 0)),         # b_lin (padded)
        ],
        out_specs=[
            pl.BlockSpec((Tt, B, Zp), lambda c: (c, 0, 0)),  # ys chunk (streamed)
            pl.BlockSpec((B, Hp), lambda c: (0, 0)),         # hT (resident carry)
        ],
    )
    return pl.pallas_call(
        kernel,
        out_shape=(jax.ShapeDtypeStruct((T, B, Zp), out_dtype),
                   jax.ShapeDtypeStruct((B, Hp), jnp.float32)),
        grid_spec=grid_spec,
        compiler_params=pltpu.CompilerParams(
            dimension_semantics=("arbitrary",),
            vmem_limit_bytes=_VMEM_LIMIT_BYTES),
    )(gi, h0, whh_t, b_hn, wlin_t, blin)


# -----------------------------------------------------------------------------
# Full forward.  mxu_dtype=jnp.bfloat16 works on v5e/v6e/v7x (MXU inputs and the
# gi intermediate only; gate math / hidden state stay f32).  Default f32 matches
# PyTorch numerics.  At real sizes choose B as a multiple of 8; H/Z are padded to
# multiples of 128 internally (padded lanes provably stay zero through the gates).
# -----------------------------------------------------------------------------
@functools.partial(jax.jit, static_argnames=("mxu_dtype",))
def gru_forward(xs, h0, wih, whh, bih, bhh, wlin, blin, mxu_dtype=jnp.float32):
    """xs: (T, B, X); h0: (1, B, H).
    wih: (3H, X), whh: (3H, H), bih/bhh: (3H,)   -- PyTorch GRU param shapes
    wlin: (Z, H), blin: (Z,)                     -- PyTorch Linear param shapes
    Returns (ys, hT): ys (T, B, Z), hT (1, B, H)."""
    T, B, X = xs.shape
    H = whh.shape[1]
    Z = wlin.shape[0]
    Hp = _round_up(H, 128)
    Zp = _round_up(Z, 128)

    # --- one-time parameter prep (tiny tensors: transpose / fold / pad / cast) ---
    def pad_gate_cols(w2d):   # (K, 3H) -> (K, 3Hp): pad each gate block to Hp cols
        parts = [jnp.pad(w2d[:, g * H:(g + 1) * H], ((0, 0), (0, Hp - H)))
                 for g in range(3)]
        return jnp.concatenate(parts, axis=1)

    pad_h = lambda v: jnp.pad(v, (0, Hp - H))

    wih_tp = pad_gate_cols(jnp.transpose(wih)).astype(mxu_dtype)          # (X, 3Hp)
    whh_tp = jnp.pad(pad_gate_cols(jnp.transpose(whh)),
                     ((0, Hp - H), (0, 0))).astype(mxu_dtype)             # (Hp, 3Hp)
    bias_proj = jnp.concatenate([
        pad_h(bih[0 * H:1 * H] + bhh[0 * H:1 * H]),   # r: b_ir + b_hr folded
        pad_h(bih[1 * H:2 * H] + bhh[1 * H:2 * H]),   # z: b_iz + b_hz folded
        pad_h(bih[2 * H:3 * H]),                      # n: b_in only
    ]).reshape(1, 3 * Hp).astype(jnp.float32)
    b_hn = pad_h(bhh[2 * H:3 * H]).reshape(1, Hp).astype(jnp.float32)
    wlin_tp = jnp.pad(jnp.transpose(wlin),
                      ((0, Hp - H), (0, Zp - Z))).astype(mxu_dtype)       # (Hp, Zp)
    blin_p = jnp.pad(blin, (0, Zp - Z)).reshape(1, Zp).astype(jnp.float32)
    h0_p = jnp.pad(h0.reshape(B, H),
                   ((0, 0), (0, Hp - H))).astype(jnp.float32)             # (B, Hp)

    # Pass 1: hoisted input projection, tiled over M = T*B (parallel grid).
    # gi is stored at mxu_dtype (halves HBM traffic on the bf16 path) and stays
    # fused as (T, B, 3Hp); the gate split happens lane-aligned inside pass 2.
    gi = _input_projection(xs.reshape(T * B, X), wih_tp, bias_proj,
                           out_dtype=mxu_dtype)
    gi = gi.reshape(T, B, 3 * Hp)

    # Pass 2: time-chunked serial recurrence + fused Linear head.
    ys_p, hT_p = _gru_recurrence_head(gi, h0_p, whh_tp, b_hn, wlin_tp, blin_p,
                                      out_dtype=xs.dtype)

    ys = ys_p[:, :, :Z]                                    # lane-dense -> real Z
    hT = hT_p[:, :H].reshape(1, B, H).astype(xs.dtype)
    return ys, hT


def gru_reference(xs, h0, wih, whh, bih, bhh, wlin, blin):
    """Plain-JAX reference implementing PyTorch nn.GRU + nn.Linear semantics."""
    H = whh.shape[1]

    def step(h, x_t):
        gi = x_t @ wih.T + bih
        gh = h @ whh.T + bhh
        r = jax.nn.sigmoid(gi[:, :H] + gh[:, :H])
        z = jax.nn.sigmoid(gi[:, H:2 * H] + gh[:, H:2 * H])
        n = jnp.tanh(gi[:, 2 * H:] + r * gh[:, 2 * H:])
        h_new = (1.0 - z) * n + z * h
        return h_new, h_new

    hT, hs = lax.scan(step, h0[0], xs)
    ys = hs @ wlin.T + blin
    return ys, hT[None]


if __name__ == "__main__":
    T, B, X, H, Z = 8, 4, 16, 32, 8

    key = jax.random.PRNGKey(0)
    ks = jax.random.split(key, 8)
    scale = 1.0 / np.sqrt(H)

    wih = jax.random.uniform(ks[0], (3 * H, X), jnp.float32, -scale, scale)
    whh = jax.random.uniform(ks[1], (3 * H, H), jnp.float32, -scale, scale)
    bih = jax.random.uniform(ks[2], (3 * H,), jnp.float32, -scale, scale)
    bhh = jax.random.uniform(ks[3], (3 * H,), jnp.float32, -scale, scale)
    wlin = jax.random.uniform(ks[4], (Z, H), jnp.float32, -scale, scale)
    blin = jax.random.uniform(ks[5], (Z,), jnp.float32, -scale, scale)

    xs = jax.random.normal(ks[6], (T, B, X), jnp.float32)
    h0 = jax.random.normal(ks[7], (1, B, H), jnp.float32)

    # f32 path: bit-for-bit parity target with the PyTorch-semantics reference.
    ys, hT = gru_forward(xs, h0, wih, whh, bih, bhh, wlin, blin)
    jax.block_until_ready((ys, hT))

    ys_ref, hT_ref = gru_reference(xs, h0, wih, whh, bih, bhh, wlin, blin)
    np.testing.assert_allclose(np.asarray(ys), np.asarray(ys_ref), atol=1e-5, rtol=1e-5)
    np.testing.assert_allclose(np.asarray(hT), np.asarray(hT_ref), atol=1e-5, rtol=1e-5)

    # bf16-MXU path (valid on v5e/v6e/v7x): MXU inputs + gi intermediate in bf16,
    # gate math / hidden state stay f32.  Loose tolerance (opt-in knob).
    ys_bf, hT_bf = gru_forward(xs, h0, wih, whh, bih, bhh, wlin, blin,
                               mxu_dtype=jnp.bfloat16)
    jax.block_until_ready((ys_bf, hT_bf))
    np.testing.assert_allclose(np.asarray(ys_bf), np.asarray(ys_ref), atol=0.1, rtol=0.1)

    print("KERNEL_OK")
</pallas_src>

<mosaic_0001>
module attributes {stable_mosaic.version = 11 : i64} {
  func.func @_proj_kernel(%arg0: i32, %arg1: memref<32x16xf32, #tpu.memory_space<vmem>>, %arg2: memref<16x384xf32, #tpu.memory_space<vmem>>, %arg3: memref<1x384xf32, #tpu.memory_space<vmem>>, %arg4: memref<32x384xf32, #tpu.memory_space<vmem>>) attributes {dimension_semantics = [#tpu.dimension_semantics<parallel>], iteration_bounds = array<i64: 1>, scalar_prefetch = 0 : i64, scratch_operands = 0 : i64, tpu.core_type = #tpu.core_type<tc>, window_params = [{transform_indices = @transform_0, window_bounds = array<i64: 32, 16>}, {pipeline_mode = #tpu.pipeline_mode<synchronous>, transform_indices = @transform_1, window_bounds = array<i64: 16, 384>}, {pipeline_mode = #tpu.pipeline_mode<synchronous>, transform_indices = @transform_2, window_bounds = array<i64: 1, 384>}, {transform_indices = @transform_3, window_bounds = array<i64: 32, 384>}]} {
    %c0 = arith.constant 0 : index
    %c0_0 = arith.constant 0 : index
    %0 = vector.load %arg1[%c0, %c0_0] : memref<32x16xf32, #tpu.memory_space<vmem>>, vector<32x16xf32>
    %c0_1 = arith.constant 0 : index
    %c0_2 = arith.constant 0 : index
    %1 = vector.load %arg2[%c0_1, %c0_2] : memref<16x384xf32, #tpu.memory_space<vmem>>, vector<16x384xf32>
    %cst = arith.constant dense<0.000000e+00> : vector<32x384xf32>
    %2 = tpu.matmul %0, %1, %cst {dimension_numbers = #tpu.dot_dimension_numbers<[1], [0], [0], [1], [0, 0, 1, 1], [], []>} : vector<32x16xf32>, vector<16x384xf32>, vector<32x384xf32> -> vector<32x384xf32>
    %c0_3 = arith.constant 0 : index
    %c0_4 = arith.constant 0 : index
    %3 = vector.load %arg3[%c0_3, %c0_4] : memref<1x384xf32, #tpu.memory_space<vmem>>, vector<1x384xf32>
    %4 = vector.broadcast %3 : vector<1x384xf32> to vector<32x384xf32>
    %5 = arith.addf %2, %4 : vector<32x384xf32>
    %c0_5 = arith.constant 0 : index
    %c0_6 = arith.constant 0 : index
    %6 = vector.load %arg4[%c0_5, %c0_6] : memref<32x384xf32, #tpu.memory_space<vmem>>, vector<32x384xf32>
    tpu.vector_store %arg4[%c0_5, %c0_6], %5 {strides = array<i32>} : memref<32x384xf32, #tpu.memory_space<vmem>>, vector<32x384xf32>,
    return
  }
  func.func @transform_0(%arg0: i32) -> (i32, i32) {
    %c0_i32 = arith.constant 0 : i32
    %c0_i32_0 = arith.constant 0 : i32
    return %arg0, %c0_i32 : i32, i32
  }
  func.func @transform_1(%arg0: i32) -> (i32, i32) {
    %c0_i32 = arith.constant 0 : i32
    %c0_i32_0 = arith.constant 0 : i32
    %c0_i32_1 = arith.constant 0 : i32
    return %c0_i32, %c0_i32_0 : i32, i32
  }
  func.func @transform_2(%arg0: i32) -> (i32, i32) {
    %c0_i32 = arith.constant 0 : i32
    %c0_i32_0 = arith.constant 0 : i32
    %c0_i32_1 = arith.constant 0 : i32
    return %c0_i32, %c0_i32_0 : i32, i32
  }
  func.func @transform_3(%arg0: i32) -> (i32, i32) {
    %c0_i32 = arith.constant 0 : i32
    %c0_i32_0 = arith.constant 0 : i32
    return %arg0, %c0_i32 : i32, i32
  }
}

module attributes {stable_mosaic.version = 11 : i64} {
  func.func @_gru_chunk_kernel(%arg0: i32, %arg1: memref<8x4x384xf32, #tpu.memory_space<vmem>>, %arg2: memref<4x128xf32, #tpu.memory_space<vmem>>, %arg3: memref<128x384xf32, #tpu.memory_space<vmem>>, %arg4: memref<1x128xf32, #tpu.memory_space<vmem>>, %arg5: memref<128x128xf32, #tpu.memory_space<vmem>>, %arg6: memref<1x128xf32, #tpu.memory_space<vmem>>, %arg7: memref<8x4x128xf32, #tpu.memory_space<vmem>>, %arg8: memref<4x128xf32, #tpu.memory_space<vmem>>) attributes {dimension_semantics = [#tpu.dimension_semantics<arbitrary>], iteration_bounds = array<i64: 1>, scalar_prefetch = 0 : i64, scratch_operands = 0 : i64, tpu.core_type = #tpu.core_type<tc>, window_params = [{transform_indices = @transform_0, window_bounds = array<i64: 8, 4, 384>}, {pipeline_mode = #tpu.pipeline_mode<synchronous>, transform_indices = @transform_1, window_bounds = array<i64: 4, 128>}, {pipeline_mode = #tpu.pipeline_mode<synchronous>, transform_indices = @transform_2, window_bounds = array<i64: 128, 384>}, {pipeline_mode = #tpu.pipeline_mode<synchronous>, transform_indices = @transform_3, window_bounds = array<i64: 1, 128>}, {pipeline_mode = #tpu.pipeline_mode<synchronous>, transform_indices = @transform_4, window_bounds = array<i64: 128, 128>}, {pipeline_mode = #tpu.pipeline_mode<synchronous>, transform_indices = @transform_5, window_bounds = array<i64: 1, 128>}, {transform_indices = @transform_6, window_bounds = array<i64: 8, 4, 128>}, {pipeline_mode = #tpu.pipeline_mode<synchronous>, transform_indices = @transform_7, window_bounds = array<i64: 4, 128>}]} {
    %c0_i32 = arith.constant 0 : i32
    %0 = arith.cmpi eq, %arg0, %c0_i32 : i32
    %1 = arith.extui %0 : i1 to i32
    %c0_i32_0 = arith.constant 0 : i32
    %2 = arith.cmpi ne, %1, %c0_i32_0 : i32
    scf.if %2 {
      %c0_84 = arith.constant 0 : index
      %c0_85 = arith.constant 0 : index
      %309 = vector.load %arg2[%c0_84, %c0_85] : memref<4x128xf32, #tpu.memory_space<vmem>>, vector<4x128xf32>
      %c0_86 = arith.constant 0 : index
      %c0_87 = arith.constant 0 : index
      %310 = vector.load %arg8[%c0_86, %c0_87] : memref<4x128xf32, #tpu.memory_space<vmem>>, vector<4x128xf32>
      tpu.vector_store %arg8[%c0_86, %c0_87], %309 {strides = array<i32>} : memref<4x128xf32, #tpu.memory_space<vmem>>, vector<4x128xf32>,
    } else {
    }
    %c0 = arith.constant 0 : index
    %c0_1 = arith.constant 0 : index
    %3 = vector.load %arg3[%c0, %c0_1] : memref<128x384xf32, #tpu.memory_space<vmem>>, vector<128x384xf32>
    %c0_2 = arith.constant 0 : index
    %c0_3 = arith.constant 0 : index
    %4 = vector.load %arg5[%c0_2, %c0_3] : memref<128x128xf32, #tpu.memory_space<vmem>>, vector<128x128xf32>
    %c0_4 = arith.constant 0 : index
    %c0_5 = arith.constant 0 : index
    %5 = vector.load %arg4[%c0_4, %c0_5] : memref<1x128xf32, #tpu.memory_space<vmem>>, vector<1x128xf32>
    %6 = vector.shape_cast %5 : vector<1x128xf32> to vector<1x128xf32>
    %7 = vector.broadcast %6 : vector<1x128xf32> to vector<4x128xf32>
    %c0_6 = arith.constant 0 : index
    %c0_7 = arith.constant 0 : index
    %8 = vector.load %arg6[%c0_6, %c0_7] : memref<1x128xf32, #tpu.memory_space<vmem>>, vector<1x128xf32>
    %9 = vector.shape_cast %8 : vector<1x128xf32> to vector<1x128xf32>
    %10 = vector.broadcast %9 : vector<1x128xf32> to vector<4x128xf32>
    %c0_8 = arith.constant 0 : index
    %c0_9 = arith.constant 0 : index
    %11 = vector.load %arg8[%c0_8, %c0_9] : memref<4x128xf32, #tpu.memory_space<vmem>>, vector<4x128xf32>
    %c0_i32_10 = arith.constant 0 : i32
    %cst = arith.constant dense<0.000000e+00> : vector<4x384xf32>
    %12 = tpu.matmul %11, %3, %cst {dimension_numbers = #tpu.dot_dimension_numbers<[1], [0], [0], [1], [0, 0, 1, 1], [], []>} : vector<4x128xf32>, vector<128x384xf32>, vector<4x384xf32> -> vector<4x384xf32>
    %13 = arith.index_cast %c0_i32_10 : i32 to index
    %c0_11 = arith.constant 0 : index
    %c0_12 = arith.constant 0 : index
    %14 = vector.load %arg1[%13, %c0_11, %c0_12] : memref<8x4x384xf32, #tpu.memory_space<vmem>>, vector<1x4x384xf32>
    %15 = vector.shape_cast %14 : vector<1x4x384xf32> to vector<4x384xf32>
    %16 = vector.extract_strided_slice %15 {offsets = [0, 0], sizes = [4, 128], strides = [1, 1]} : vector<4x384xf32> to vector<4x128xf32>
    %17 = vector.extract_strided_slice %12 {offsets = [0, 0], sizes = [4, 128], strides = [1, 1]} : vector<4x384xf32> to vector<4x128xf32>
    %18 = arith.addf %16, %17 : vector<4x128xf32>
    %19 = arith.negf %18 : vector<4x128xf32>
    %20 = math.exp %19 : vector<4x128xf32>
    %cst_13 = arith.constant 1.000000e+00 : f32
    %21 = vector.broadcast %cst_13 : f32 to vector<4x128xf32>
    %22 = arith.addf %21, %20 : vector<4x128xf32>
    %23 = arith.divf %21, %22 : vector<4x128xf32>
    %24 = vector.extract_strided_slice %15 {offsets = [0, 128], sizes = [4, 128], strides = [1, 1]} : vector<4x384xf32> to vector<4x128xf32>
    %25 = vector.extract_strided_slice %12 {offsets = [0, 128], sizes = [4, 128], strides = [1, 1]} : vector<4x384xf32> to vector<4x128xf32>
    %26 = arith.addf %24, %25 : vector<4x128xf32>
    %27 = arith.negf %26 : vector<4x128xf32>
    %28 = math.exp %27 : vector<4x128xf32>
    %cst_14 = arith.constant 1.000000e+00 : f32
    %29 = vector.broadcast %cst_14 : f32 to vector<4x128xf32>
    %30 = arith.addf %29, %28 : vector<4x128xf32>
    %31 = arith.divf %29, %30 : vector<4x128xf32>
    %32 = vector.extract_strided_slice %15 {offsets = [0, 256], sizes = [4, 128], strides = [1, 1]} : vector<4x384xf32> to vector<4x128xf32>
    %33 = vector.extract_strided_slice %12 {offsets = [0, 256], sizes = [4, 128], strides = [1, 1]} : vector<4x384xf32> to vector<4x128xf32>
    %34 = arith.addf %33, %7 : vector<4x128xf32>
    %35 = arith.mulf %23, %34 : vector<4x128xf32>
    %36 = arith.addf %32, %35 : vector<4x128xf32>
    %37 = math.tanh %36 : vector<4x128xf32>
    %cst_15 = arith.constant 1.000000e+00 : f32
    %38 = vector.broadcast %cst_15 : f32 to vector<4x128xf32>
    %39 = arith.subf %38, %31 : vector<4x128xf32>
    %40 = arith.mulf %39, %37 : vector<4x128xf32>
    %41 = arith.mulf %31, %11 : vector<4x128xf32>
    %42 = arith.addf %40, %41 : vector<4x128xf32>
    %cst_16 = arith.constant dense<0.000000e+00> : vector<4x128xf32>
    %43 = tpu.matmul %42, %4, %cst_16 {dimension_numbers = #tpu.dot_dimension_numbers<[1], [0], [0], [1], [0, 0, 1, 1], [], []>} : vector<4x128xf32>, vector<128x128xf32>, vector<4x128xf32> -> vector<4x128xf32>
    %44 = arith.addf %43, %10 : vector<4x128xf32>
    %45 = arith.index_cast %c0_i32_10 : i32 to index
    %c0_17 = arith.constant 0 : index
    %c0_18 = arith.constant 0 : index
    %46 = vector.load %arg7[%45, %c0_17, %c0_18] : memref<8x4x128xf32, #tpu.memory_space<vmem>>, vector<1x4x128xf32>
    %47 = vector.shape_cast %46 : vector<1x4x128xf32> to vector<4x128xf32>
    %48 = vector.shape_cast %44 : vector<4x128xf32> to vector<1x4x128xf32>
    tpu.vector_store %arg7[%45, %c0_17, %c0_18], %48 {strides = array<i32>} : memref<8x4x128xf32, #tpu.memory_space<vmem>>, vector<1x4x128xf32>,
    %c1_i32 = arith.constant 1 : i32
    %cst_19 = arith.constant dense<0.000000e+00> : vector<4x384xf32>
    %49 = tpu.matmul %42, %3, %cst_19 {dimension_numbers = #tpu.dot_dimension_numbers<[1], [0], [0], [1], [0, 0, 1, 1], [], []>} : vector<4x128xf32>, vector<128x384xf32>, vector<4x384xf32> -> vector<4x384xf32>
    %50 = arith.index_cast %c1_i32 : i32 to index
    %c0_20 = arith.constant 0 : index
    %c0_21 = arith.constant 0 : index
    %51 = vector.load %arg1[%50, %c0_20, %c0_21] : memref<8x4x384xf32, #tpu.memory_space<vmem>>, vector<1x4x384xf32>
    %52 = vector.shape_cast %51 : vector<1x4x384xf32> to vector<4x384xf32>
    %53 = vector.extract_strided_slice %52 {offsets = [0, 0], sizes = [4, 128], strides = [1, 1]} : vector<4x384xf32> to vector<4x128xf32>
    %54 = vector.extract_strided_slice %49 {offsets = [0, 0], sizes = [4, 128], strides = [1, 1]} : vector<4x384xf32> to vector<4x128xf32>
    %55 = arith.addf %53, %54 : vector<4x128xf32>
    %56 = arith.negf %55 : vector<4x128xf32>
    %57 = math.exp %56 : vector<4x128xf32>
    %cst_22 = arith.constant 1.000000e+00 : f32
    %58 = vector.broadcast %cst_22 : f32 to vector<4x128xf32>
    %59 = arith.addf %58, %57 : vector<4x128xf32>
    %60 = arith.divf %58, %59 : vector<4x128xf32>
    %61 = vector.extract_strided_slice %52 {offsets = [0, 128], sizes = [4, 128], strides = [1, 1]} : vector<4x384xf32> to vector<4x128xf32>
    %62 = vector.extract_strided_slice %49 {offsets = [0, 128], sizes = [4, 128], strides = [1, 1]} : vector<4x384xf32> to vector<4x128xf32>
    %63 = arith.addf %61, %62 : vector<4x128xf32>
    %64 = arith.negf %63 : vector<4x128xf32>
    %65 = math.exp %64 : vector<4x128xf32>
    %cst_23 = arith.constant 1.000000e+00 : f32
    %66 = vector.broadcast %cst_23 : f32 to vector<4x128xf32>
    %67 = arith.addf %66, %65 : vector<4x128xf32>
    %68 = arith.divf %66, %67 : vector<4x128xf32>
    %69 = vector.extract_strided_slice %52 {offsets = [0, 256], sizes = [4, 128], strides = [1, 1]} : vector<4x384xf32> to vector<4x128xf32>
    %70 = vector.extract_strided_slice %49 {offsets = [0, 256], sizes = [4, 128], strides = [1, 1]} : vector<4x384xf32> to vector<4x128xf32>
    %71 = arith.addf %70, %7 : vector<4x128xf32>
    %72 = arith.mulf %60, %71 : vector<4x128xf32>
    %73 = arith.addf %69, %72 : vector<4x128xf32>
    %74 = math.tanh %73 : vector<4x128xf32>
    %cst_24 = arith.constant 1.000000e+00 : f32
    %75 = vector.broadcast %cst_24 : f32 to vector<4x128xf32>
    %76 = arith.subf %75, %68 : vector<4x128xf32>
    %77 = arith.mulf %76, %74 : vector<4x128xf32>
    %78 = arith.mulf %68, %42 : vector<4x128xf32>
    %79 = arith.addf %77, %78 : vector<4x128xf32>
    %cst_25 = arith.constant dense<0.000000e+00> : vector<4x128xf32>
    %80 = tpu.matmul %79, %4, %cst_25 {dimension_numbers = #tpu.dot_dimension_numbers<[1], [0], [0], [1], [0, 0, 1, 1], [], []>} : vector<4x128xf32>, vector<128x128xf32>, vector<4x128xf32> -> vector<4x128xf32>
    %81 = arith.addf %80, %10 : vector<4x128xf32>
    %82 = arith.index_cast %c1_i32 : i32 to index
    %c0_26 = arith.constant 0 : index
    %c0_27 = arith.constant 0 : index
    %83 = vector.load %arg7[%82, %c0_26, %c0_27] : memref<8x4x128xf32, #tpu.memory_space<vmem>>, vector<1x4x128xf32>
    %84 = vector.shape_cast %83 : vector<1x4x128xf32> to vector<4x128xf32>
    %85 = vector.shape_cast %81 : vector<4x128xf32> to vector<1x4x128xf32>
    tpu.vector_store %arg7[%82, %c0_26, %c0_27], %85 {strides = array<i32>} : memref<8x4x128xf32, #tpu.memory_space<vmem>>, vector<1x4x128xf32>,
    %c2_i32 = arith.constant 2 : i32
    %cst_28 = arith.constant dense<0.000000e+00> : vector<4x384xf32>
    %86 = tpu.matmul %79, %3, %cst_28 {dimension_numbers = #tpu.dot_dimension_numbers<[1], [0], [0], [1], [0, 0, 1, 1], [], []>} : vector<4x128xf32>, vector<128x384xf32>, vector<4x384xf32> -> vector<4x384xf32>
    %87 = arith.index_cast %c2_i32 : i32 to index
    %c0_29 = arith.constant 0 : index
    %c0_30 = arith.constant 0 : index
    %88 = vector.load %arg1[%87, %c0_29, %c0_30] : memref<8x4x384xf32, #tpu.memory_space<vmem>>, vector<1x4x384xf32>
    %89 = vector.shape_cast %88 : vector<1x4x384xf32> to vector<4x384xf32>
    %90 = vector.extract_strided_slice %89 {offsets = [0, 0], sizes = [4, 128], strides = [1, 1]} : vector<4x384xf32> to vector<4x128xf32>
    %91 = vector.extract_strided_slice %86 {offsets = [0, 0], sizes = [4, 128], strides = [1, 1]} : vector<4x384xf32> to vector<4x128xf32>
    %92 = arith.addf %90, %91 : vector<4x128xf32>
    %93 = arith.negf %92 : vector<4x128xf32>
    %94 = math.exp %93 : vector<4x128xf32>
    %cst_31 = arith.constant 1.000000e+00 : f32
    %95 = vector.broadcast %cst_31 : f32 to vector<4x128xf32>
    %96 = arith.addf %95, %94 : vector<4x128xf32>
    %97 = arith.divf %95, %96 : vector<4x128xf32>
    %98 = vector.extract_strided_slice %89 {offsets = [0, 128], sizes = [4, 128], strides = [1, 1]} : vector<4x384xf32> to vector<4x128xf32>
    %99 = vector.extract_strided_slice %86 {offsets = [0, 128], sizes = [4, 128], strides = [1, 1]} : vector<4x384xf32> to vector<4x128xf32>
    %100 = arith.addf %98, %99 : vector<4x128xf32>
    %101 = arith.negf %100 : vector<4x128xf32>
    %102 = math.exp %101 : vector<4x128xf32>
    %cst_32 = arith.constant 1.000000e+00 : f32
    %103 = vector.broadcast %cst_32 : f32 to vector<4x128xf32>
    %104 = arith.addf %103, %102 : vector<4x128xf32>
    %105 = arith.divf %103, %104 : vector<4x128xf32>
    %106 = vector.extract_strided_slice %89 {offsets = [0, 256], sizes = [4, 128], strides = [1, 1]} : vector<4x384xf32> to vector<4x128xf32>
    %107 = vector.extract_strided_slice %86 {offsets = [0, 256], sizes = [4, 128], strides = [1, 1]} : vector<4x384xf32> to vector<4x128xf32>
    %108 = arith.addf %107, %7 : vector<4x128xf32>
    %109 = arith.mulf %97, %108 : vector<4x128xf32>
    %110 = arith.addf %106, %109 : vector<4x128xf32>
    %111 = math.tanh %110 : vector<4x128xf32>
    %cst_33 = arith.constant 1.000000e+00 : f32
    %112 = vector.broadcast %cst_33 : f32 to vector<4x128xf32>
    %113 = arith.subf %112, %105 : vector<4x128xf32>
    %114 = arith.mulf %113, %111 : vector<4x128xf32>
    %115 = arith.mulf %105, %79 : vector<4x128xf32>
    %116 = arith.addf %114, %115 : vector<4x128xf32>
    %cst_34 = arith.constant dense<0.000000e+00> : vector<4x128xf32>
    %117 = tpu.matmul %116, %4, %cst_34 {dimension_numbers = #tpu.dot_dimension_numbers<[1], [0], [0], [1], [0, 0, 1, 1], [], []>} : vector<4x128xf32>, vector<128x128xf32>, vector<4x128xf32> -> vector<4x128xf32>
    %118 = arith.addf %117, %10 : vector<4x128xf32>
    %119 = arith.index_cast %c2_i32 : i32 to index
    %c0_35 = arith.constant 0 : index
    %c0_36 = arith.constant 0 : index
    %120 = vector.load %arg7[%119, %c0_35, %c0_36] : memref<8x4x128xf32, #tpu.memory_space<vmem>>, vector<1x4x128xf32>
    %121 = vector.shape_cast %120 : vector<1x4x128xf32> to vector<4x128xf32>
    %122 = vector.shape_cast %118 : vector<4x128xf32> to vector<1x4x128xf32>
    tpu.vector_store %arg7[%119, %c0_35, %c0_36], %122 {strides = array<i32>} : memref<8x4x128xf32, #tpu.memory_space<vmem>>, vector<1x4x128xf32>,
    %c3_i32 = arith.constant 3 : i32
    %cst_37 = arith.constant dense<0.000000e+00> : vector<4x384xf32>
    %123 = tpu.matmul %116, %3, %cst_37 {dimension_numbers = #tpu.dot_dimension_numbers<[1], [0], [0], [1], [0, 0, 1, 1], [], []>} : vector<4x128xf32>, vector<128x384xf32>, vector<4x384xf32> -> vector<4x384xf32>
    %124 = arith.index_cast %c3_i32 : i32 to index
    %c0_38 = arith.constant 0 : index
    %c0_39 = arith.constant 0 : index
    %125 = vector.load %arg1[%124, %c0_38, %c0_39] : memref<8x4x384xf32, #tpu.memory_space<vmem>>, vector<1x4x384xf32>
    %126 = vector.shape_cast %125 : vector<1x4x384xf32> to vector<4x384xf32>
    %127 = vector.extract_strided_slice %126 {offsets = [0, 0], sizes = [4, 128], strides = [1, 1]} : vector<4x384xf32> to vector<4x128xf32>
    %128 = vector.extract_strided_slice %123 {offsets = [0, 0], sizes = [4, 128], strides = [1, 1]} : vector<4x384xf32> to vector<4x128xf32>
    %129 = arith.addf %127, %128 : vector<4x128xf32>
    %130 = arith.negf %129 : vector<4x128xf32>
    %131 = math.exp %130 : vector<4x128xf32>
    %cst_40 = arith.constant 1.000000e+00 : f32
    %132 = vector.broadcast %cst_40 : f32 to vector<4x128xf32>
    %133 = arith.addf %132, %131 : vector<4x128xf32>
    %134 = arith.divf %132, %133 : vector<4x128xf32>
    %135 = vector.extract_strided_slice %126 {offsets = [0, 128], sizes = [4, 128], strides = [1, 1]} : vector<4x384xf32> to vector<4x128xf32>
    %136 = vector.extract_strided_slice %123 {offsets = [0, 128], sizes = [4, 128], strides = [1, 1]} : vector<4x384xf32> to vector<4x128xf32>
    %137 = arith.addf %135, %136 : vector<4x128xf32>
    %138 = arith.negf %137 : vector<4x128xf32>
    %139 = math.exp %138 : vector<4x128xf32>
    %cst_41 = arith.constant 1.000000e+00 : f32
    %140 = vector.broadcast %cst_41 : f32 to vector<4x128xf32>
    %141 = arith.addf %140, %139 : vector<4x128xf32>
    %142 = arith.divf %140, %141 : vector<4x128xf32>
    %143 = vector.extract_strided_slice %126 {offsets = [0, 256], sizes = [4, 128], strides = [1, 1]} : vector<4x384xf32> to vector<4x128xf32>
    %144 = vector.extract_strided_slice %123 {offsets = [0, 256], sizes = [4, 128], strides = [1, 1]} : vector<4x384xf32> to vector<4x128xf32>
    %145 = arith.addf %144, %7 : vector<4x128xf32>
    %146 = arith.mulf %134, %145 : vector<4x128xf32>
    %147 = arith.addf %143, %146 : vector<4x128xf32>
    %148 = math.tanh %147 : vector<4x128xf32>
    %cst_42 = arith.constant 1.000000e+00 : f32
    %149 = vector.broadcast %cst_42 : f32 to vector<4x128xf32>
    %150 = arith.subf %149, %142 : vector<4x128xf32>
    %151 = arith.mulf %150, %148 : vector<4x128xf32>
    %152 = arith.mulf %142, %116 : vector<4x128xf32>
    %153 = arith.addf %151, %152 : vector<4x128xf32>
    %cst_43 = arith.constant dense<0.000000e+00> : vector<4x128xf32>
    %154 = tpu.matmul %153, %4, %cst_43 {dimension_numbers = #tpu.dot_dimension_numbers<[1], [0], [0], [1], [0, 0, 1, 1], [], []>} : vector<4x128xf32>, vector<128x128xf32>, vector<4x128xf32> -> vector<4x128xf32>
    %155 = arith.addf %154, %10 : vector<4x128xf32>
    %156 = arith.index_cast %c3_i32 : i32 to index
    %c0_44 = arith.constant 0 : index
    %c0_45 = arith.constant 0 : index
    %157 = vector.load %arg7[%156, %c0_44, %c0_45] : memref<8x4x128xf32, #tpu.memory_space<vmem>>, vector<1x4x128xf32>
    %158 = vector.shape_cast %157 : vector<1x4x128xf32> to vector<4x128xf32>
    %159 = vector.shape_cast %155 : vector<4x128xf32> to vector<1x4x128xf32>
    tpu.vector_store %arg7[%156, %c0_44, %c0_45], %159 {strides = array<i32>} : memref<8x4x128xf32, #tpu.memory_space<vmem>>, vector<1x4x128xf32>,
    %c4_i32 = arith.constant 4 : i32
    %cst_46 = arith.constant dense<0.000000e+00> : vector<4x384xf32>
    %160 = tpu.matmul %153, %3, %cst_46 {dimension_numbers = #tpu.dot_dimension_numbers<[1], [0], [0], [1], [0, 0, 1, 1], [], []>} : vector<4x128xf32>, vector<128x384xf32>, vector<4x384xf32> -> vector<4x384xf32>
    %161 = arith.index_cast %c4_i32 : i32 to index
    %c0_47 = arith.constant 0 : index
    %c0_48 = arith.constant 0 : index
    %162 = vector.load %arg1[%161, %c0_47, %c0_48] : memref<8x4x384xf32, #tpu.memory_space<vmem>>, vector<1x4x384xf32>
    %163 = vector.shape_cast %162 : vector<1x4x384xf32> to vector<4x384xf32>
    %164 = vector.extract_strided_slice %163 {offsets = [0, 0], sizes = [4, 128], strides = [1, 1]} : vector<4x384xf32> to vector<4x128xf32>
    %165 = vector.extract_strided_slice %160 {offsets = [0, 0], sizes = [4, 128], strides = [1, 1]} : vector<4x384xf32> to vector<4x128xf32>
    %166 = arith.addf %164, %165 : vector<4x128xf32>
    %167 = arith.negf %166 : vector<4x128xf32>
    %168 = math.exp %167 : vector<4x128xf32>
    %cst_49 = arith.constant 1.000000e+00 : f32
    %169 = vector.broadcast %cst_49 : f32 to vector<4x128xf32>
    %170 = arith.addf %169, %168 : vector<4x128xf32>
    %171 = arith.divf %169, %170 : vector<4x128xf32>
    %172 = vector.extract_strided_slice %163 {offsets = [0, 128], sizes = [4, 128], strides = [1, 1]} : vector<4x384xf32> to vector<4x128xf32>
    %173 = vector.extract_strided_slice %160 {offsets = [0, 128], sizes = [4, 128], strides = [1, 1]} : vector<4x384xf32> to vector<4x128xf32>
    %174 = arith.addf %172, %173 : vector<4x128xf32>
    %175 = arith.negf %174 : vector<4x128xf32>
    %176 = math.exp %175 : vector<4x128xf32>
    %cst_50 = arith.constant 1.000000e+00 : f32
    %177 = vector.broadcast %cst_50 : f32 to vector<4x128xf32>
    %178 = arith.addf %177, %176 : vector<4x128xf32>
    %179 = arith.divf %177, %178 : vector<4x128xf32>
    %180 = vector.extract_strided_slice %163 {offsets = [0, 256], sizes = [4, 128], strides = [1, 1]} : vector<4x384xf32> to vector<4x128xf32>
    %181 = vector.extract_strided_slice %160 {offsets = [0, 256], sizes = [4, 128], strides = [1, 1]} : vector<4x384xf32> to vector<4x128xf32>
    %182 = arith.addf %181, %7 : vector<4x128xf32>
    %183 = arith.mulf %171, %182 : vector<4x128xf32>
    %184 = arith.addf %180, %183 : vector<4x128xf32>
    %185 = math.tanh %184 : vector<4x128xf32>
    %cst_51 = arith.constant 1.000000e+00 : f32
    %186 = vector.broadcast %cst_51 : f32 to vector<4x128xf32>
    %187 = arith.subf %186, %179 : vector<4x128xf32>
    %188 = arith.mulf %187, %185 : vector<4x128xf32>
    %189 = arith.mulf %179, %153 : vector<4x128xf32>
    %190 = arith.addf %188, %189 : vector<4x128xf32>
    %cst_52 = arith.constant dense<0.000000e+00> : vector<4x128xf32>
    %191 = tpu.matmul %190, %4, %cst_52 {dimension_numbers = #tpu.dot_dimension_numbers<[1], [0], [0], [1], [0, 0, 1, 1], [], []>} : vector<4x128xf32>, vector<128x128xf32>, vector<4x128xf32> -> vector<4x128xf32>
    %192 = arith.addf %191, %10 : vector<4x128xf32>
    %193 = arith.index_cast %c4_i32 : i32 to index
    %c0_53 = arith.constant 0 : index
    %c0_54 = arith.constant 0 : index
    %194 = vector.load %arg7[%193, %c0_53, %c0_54] : memref<8x4x128xf32, #tpu.memory_space<vmem>>, vector<1x4x128xf32>
    %195 = vector.shape_cast %194 : vector<1x4x128xf32> to vector<4x128xf32>
    %196 = vector.shape_cast %192 : vector<4x128xf32> to vector<1x4x128xf32>
    tpu.vector_store %arg7[%193, %c0_53, %c0_54], %196 {strides = array<i32>} : memref<8x4x128xf32, #tpu.memory_space<vmem>>, vector<1x4x128xf32>,
    %c5_i32 = arith.constant 5 : i32
    %cst_55 = arith.constant dense<0.000000e+00> : vector<4x384xf32>
    %197 = tpu.matmul %190, %3, %cst_55 {dimension_numbers = #tpu.dot_dimension_numbers<[1], [0], [0], [1], [0, 0, 1, 1], [], []>} : vector<4x128xf32>, vector<128x384xf32>, vector<4x384xf32> -> vector<4x384xf32>
    %198 = arith.index_cast %c5_i32 : i32 to index
    %c0_56 = arith.constant 0 : index
    %c0_57 = arith.constant 0 : index
    %199 = vector.load %arg1[%198, %c0_56, %c0_57] : memref<8x4x384xf32, #tpu.memory_space<vmem>>, vector<1x4x384xf32>
    %200 = vector.shape_cast %199 : vector<1x4x384xf32> to vector<4x384xf32>
    %201 = vector.extract_strided_slice %200 {offsets = [0, 0], sizes = [4, 128], strides = [1, 1]} : vector<4x384xf32> to vector<4x128xf32>
    %202 = vector.extract_strided_slice %197 {offsets = [0, 0], sizes = [4, 128], strides = [1, 1]} : vector<4x384xf32> to vector<4x128xf32>
    %203 = arith.addf %201, %202 : vector<4x128xf32>
    %204 = arith.negf %203 : vector<4x128xf32>
    %205 = math.exp %204 : vector<4x128xf32>
    %cst_58 = arith.constant 1.000000e+00 : f32
    %206 = vector.broadcast %cst_58 : f32 to vector<4x128xf32>
    %207 = arith.addf %206, %205 : vector<4x128xf32>
    %208 = arith.divf %206, %207 : vector<4x128xf32>
    %209 = vector.extract_strided_slice %200 {offsets = [0, 128], sizes = [4, 128], strides = [1, 1]} : vector<4x384xf32> to vector<4x128xf32>
    %210 = vector.extract_strided_slice %197 {offsets = [0, 128], sizes = [4, 128], strides = [1, 1]} : vector<4x384xf32> to vector<4x128xf32>
    %211 = arith.addf %209, %210 : vector<4x128xf32>
    %212 = arith.negf %211 : vector<4x128xf32>
    %213 = math.exp %212 : vector<4x128xf32>
    %cst_59 = arith.constant 1.000000e+00 : f32
    %214 = vector.broadcast %cst_59 : f32 to vector<4x128xf32>
    %215 = arith.addf %214, %213 : vector<4x128xf32>
    %216 = arith.divf %214, %215 : vector<4x128xf32>
    %217 = vector.extract_strided_slice %200 {offsets = [0, 256], sizes = [4, 128], strides = [1, 1]} : vector<4x384xf32> to vector<4x128xf32>
    %218 = vector.extract_strided_slice %197 {offsets = [0, 256], sizes = [4, 128], strides = [1, 1]} : vector<4x384xf32> to vector<4x128xf32>
    %219 = arith.addf %218, %7 : vector<4x128xf32>
    %220 = arith.mulf %208, %219 : vector<4x128xf32>
    %221 = arith.addf %217, %220 : vector<4x128xf32>
    %222 = math.tanh %221 : vector<4x128xf32>
    %cst_60 = arith.constant 1.000000e+00 : f32
    %223 = vector.broadcast %cst_60 : f32 to vector<4x128xf32>
    %224 = arith.subf %223, %216 : vector<4x128xf32>
    %225 = arith.mulf %224, %222 : vector<4x128xf32>
    %226 = arith.mulf %216, %190 : vector<4x128xf32>
    %227 = arith.addf %225, %226 : vector<4x128xf32>
    %cst_61 = arith.constant dense<0.000000e+00> : vector<4x128xf32>
    %228 = tpu.matmul %227, %4, %cst_61 {dimension_numbers = #tpu.dot_dimension_numbers<[1], [0], [0], [1], [0, 0, 1, 1], [], []>} : vector<4x128xf32>, vector<128x128xf32>, vector<4x128xf32> -> vector<4x128xf32>
    %229 = arith.addf %228, %10 : vector<4x128xf32>
    %230 = arith.index_cast %c5_i32 : i32 to index
    %c0_62 = arith.constant 0 : index
    %c0_63 = arith.constant 0 : index
    %231 = vector.load %arg7[%230, %c0_62, %c0_63] : memref<8x4x128xf32, #tpu.memory_space<vmem>>, vector<1x4x128xf32>
    %232 = vector.shape_cast %231 : vector<1x4x128xf32> to vector<4x128xf32>
    %233 = vector.shape_cast %229 : vector<4x128xf32> to vector<1x4x128xf32>
    tpu.vector_store %arg7[%230, %c0_62, %c0_63], %233 {strides = array<i32>} : memref<8x4x128xf32, #tpu.memory_space<vmem>>, vector<1x4x128xf32>,
    %c6_i32 = arith.constant 6 : i32
    %cst_64 = arith.constant dense<0.000000e+00> : vector<4x384xf32>
    %234 = tpu.matmul %227, %3, %cst_64 {dimension_numbers = #tpu.dot_dimension_numbers<[1], [0], [0], [1], [0, 0, 1, 1], [], []>} : vector<4x128xf32>, vector<128x384xf32>, vector<4x384xf32> -> vector<4x384xf32>
    %235 = arith.index_cast %c6_i32 : i32 to index
    %c0_65 = arith.constant 0 : index
    %c0_66 = arith.constant 0 : index
    %236 = vector.load %arg1[%235, %c0_65, %c0_66] : memref<8x4x384xf32, #tpu.memory_space<vmem>>, vector<1x4x384xf32>
    %237 = vector.shape_cast %236 : vector<1x4x384xf32> to vector<4x384xf32>
    %238 = vector.extract_strided_slice %237 {offsets = [0, 0], sizes = [4, 128], strides = [1, 1]} : vector<4x384xf32> to vector<4x128xf32>
    %239 = vector.extract_strided_slice %234 {offsets = [0, 0], sizes = [4, 128], strides = [1, 1]} : vector<4x384xf32> to vector<4x128xf32>
    %240 = arith.addf %238, %239 : vector<4x128xf32>
    %241 = arith.negf %240 : vector<4x128xf32>
    %242 = math.exp %241 : vector<4x128xf32>
    %cst_67 = arith.constant 1.000000e+00 : f32
    %243 = vector.broadcast %cst_67 : f32 to vector<4x128xf32>
    %244 = arith.addf %243, %242 : vector<4x128xf32>
    %245 = arith.divf %243, %244 : vector<4x128xf32>
    %246 = vector.extract_strided_slice %237 {offsets = [0, 128], sizes = [4, 128], strides = [1, 1]} : vector<4x384xf32> to vector<4x128xf32>
    %247 = vector.extract_strided_slice %234 {offsets = [0, 128], sizes = [4, 128], strides = [1, 1]} : vector<4x384xf32> to vector<4x128xf32>
    %248 = arith.addf %246, %247 : vector<4x128xf32>
    %249 = arith.negf %248 : vector<4x128xf32>
    %250 = math.exp %249 : vector<4x128xf32>
    %cst_68 = arith.constant 1.000000e+00 : f32
    %251 = vector.broadcast %cst_68 : f32 to vector<4x128xf32>
    %252 = arith.addf %251, %250 : vector<4x128xf32>
    %253 = arith.divf %251, %252 : vector<4x128xf32>
    %254 = vector.extract_strided_slice %237 {offsets = [0, 256], sizes = [4, 128], strides = [1, 1]} : vector<4x384xf32> to vector<4x128xf32>
    %255 = vector.extract_strided_slice %234 {offsets = [0, 256], sizes = [4, 128], strides = [1, 1]} : vector<4x384xf32> to vector<4x128xf32>
    %256 = arith.addf %255, %7 : vector<4x128xf32>
    %257 = arith.mulf %245, %256 : vector<4x128xf32>
    %258 = arith.addf %254, %257 : vector<4x128xf32>
    %259 = math.tanh %258 : vector<4x128xf32>
    %cst_69 = arith.constant 1.000000e+00 : f32
    %260 = vector.broadcast %cst_69 : f32 to vector<4x128xf32>
    %261 = arith.subf %260, %253 : vector<4x128xf32>
    %262 = arith.mulf %261, %259 : vector<4x128xf32>
    %263 = arith.mulf %253, %227 : vector<4x128xf32>
    %264 = arith.addf %262, %263 : vector<4x128xf32>
    %cst_70 = arith.constant dense<0.000000e+00> : vector<4x128xf32>
    %265 = tpu.matmul %264, %4, %cst_70 {dimension_numbers = #tpu.dot_dimension_numbers<[1], [0], [0], [1], [0, 0, 1, 1], [], []>} : vector<4x128xf32>, vector<128x128xf32>, vector<4x128xf32> -> vector<4x128xf32>
    %266 = arith.addf %265, %10 : vector<4x128xf32>
    %267 = arith.index_cast %c6_i32 : i32 to index
    %c0_71 = arith.constant 0 : index
    %c0_72 = arith.constant 0 : index
    %268 = vector.load %arg7[%267, %c0_71, %c0_72] : memref<8x4x128xf32, #tpu.memory_space<vmem>>, vector<1x4x128xf32>
    %269 = vector.shape_cast %268 : vector<1x4x128xf32> to vector<4x128xf32>
    %270 = vector.shape_cast %266 : vector<4x128xf32> to vector<1x4x128xf32>
    tpu.vector_store %arg7[%267, %c0_71, %c0_72], %270 {strides = array<i32>} : memref<8x4x128xf32, #tpu.memory_space<vmem>>, vector<1x4x128xf32>,
    %c7_i32 = arith.constant 7 : i32
    %cst_73 = arith.constant dense<0.000000e+00> : vector<4x384xf32>
    %271 = tpu.matmul %264, %3, %cst_73 {dimension_numbers = #tpu.dot_dimension_numbers<[1], [0], [0], [1], [0, 0, 1, 1], [], []>} : vector<4x128xf32>, vector<128x384xf32>, vector<4x384xf32> -> vector<4x384xf32>
    %272 = arith.index_cast %c7_i32 : i32 to index
    %c0_74 = arith.constant 0 : index
    %c0_75 = arith.constant 0 : index
    %273 = vector.load %arg1[%272, %c0_74, %c0_75] : memref<8x4x384xf32, #tpu.memory_space<vmem>>, vector<1x4x384xf32>
    %274 = vector.shape_cast %273 : vector<1x4x384xf32> to vector<4x384xf32>
    %275 = vector.extract_strided_slice %274 {offsets = [0, 0], sizes = [4, 128], strides = [1, 1]} : vector<4x384xf32> to vector<4x128xf32>
    %276 = vector.extract_strided_slice %271 {offsets = [0, 0], sizes = [4, 128], strides = [1, 1]} : vector<4x384xf32> to vector<4x128xf32>
    %277 = arith.addf %275, %276 : vector<4x128xf32>
    %278 = arith.negf %277 : vector<4x128xf32>
    %279 = math.exp %278 : vector<4x128xf32>
    %cst_76 = arith.constant 1.000000e+00 : f32
    %280 = vector.broadcast %cst_76 : f32 to vector<4x128xf32>
    %281 = arith.addf %280, %279 : vector<4x128xf32>
    %282 = arith.divf %280, %281 : vector<4x128xf32>
    %283 = vector.extract_strided_slice %274 {offsets = [0, 128], sizes = [4, 128], strides = [1, 1]} : vector<4x384xf32> to vector<4x128xf32>
    %284 = vector.extract_strided_slice %271 {offsets = [0, 128], sizes = [4, 128], strides = [1, 1]} : vector<4x384xf32> to vector<4x128xf32>
    %285 = arith.addf %283, %284 : vector<4x128xf32>
    %286 = arith.negf %285 : vector<4x128xf32>
    %287 = math.exp %286 : vector<4x128xf32>
    %cst_77 = arith.constant 1.000000e+00 : f32
    %288 = vector.broadcast %cst_77 : f32 to vector<4x128xf32>
    %289 = arith.addf %288, %287 : vector<4x128xf32>
    %290 = arith.divf %288, %289 : vector<4x128xf32>
    %291 = vector.extract_strided_slice %274 {offsets = [0, 256], sizes = [4, 128], strides = [1, 1]} : vector<4x384xf32> to vector<4x128xf32>
    %292 = vector.extract_strided_slice %271 {offsets = [0, 256], sizes = [4, 128], strides = [1, 1]} : vector<4x384xf32> to vector<4x128xf32>
    %293 = arith.addf %292, %7 : vector<4x128xf32>
    %294 = arith.mulf %282, %293 : vector<4x128xf32>
    %295 = arith.addf %291, %294 : vector<4x128xf32>
    %296 = math.tanh %295 : vector<4x128xf32>
    %cst_78 = arith.constant 1.000000e+00 : f32
    %297 = vector.broadcast %cst_78 : f32 to vector<4x128xf32>
    %298 = arith.subf %297, %290 : vector<4x128xf32>
    %299 = arith.mulf %298, %296 : vector<4x128xf32>
    %300 = arith.mulf %290, %264 : vector<4x128xf32>
    %301 = arith.addf %299, %300 : vector<4x128xf32>
    %cst_79 = arith.constant dense<0.000000e+00> : vector<4x128xf32>
    %302 = tpu.matmul %301, %4, %cst_79 {dimension_numbers = #tpu.dot_dimension_numbers<[1], [0], [0], [1], [0, 0, 1, 1], [], []>} : vector<4x128xf32>, vector<128x128xf32>, vector<4x128xf32> -> vector<4x128xf32>
    %303 = arith.addf %302, %10 : vector<4x128xf32>
    %304 = arith.index_cast %c7_i32 : i32 to index
    %c0_80 = arith.constant 0 : index
    %c0_81 = arith.constant 0 : index
    %305 = vector.load %arg7[%304, %c0_80, %c0_81] : memref<8x4x128xf32, #tpu.memory_space<vmem>>, vector<1x4x128xf32>
    %306 = vector.shape_cast %305 : vector<1x4x128xf32> to vector<4x128xf32>
    %307 = vector.shape_cast %303 : vector<4x128xf32> to vector<1x4x128xf32>
    tpu.vector_store %arg7[%304, %c0_80, %c0_81], %307 {strides = array<i32>} : memref<8x4x128xf32, #tpu.memory_space<vmem>>, vector<1x4x128xf32>,
    %c8_i32 = arith.constant 8 : i32
    %c0_82 = arith.constant 0 : index
    %c0_83 = arith.constant 0 : index
    %308 = vector.load %arg8[%c0_82, %c0_83] : memref<4x128xf32, #tpu.memory_space<vmem>>, vector<4x128xf32>
    tpu.vector_store %arg8[%c0_82, %c0_83], %301 {strides = array<i32>} : memref<4x128xf32, #tpu.memory_space<vmem>>, vector<4x128xf32>,
    return
  }
  func.func @transform_0(%arg0: i32) -> (i32, i32, i32) {
    %c0_i32 = arith.constant 0 : i32
    %c0_i32_0 = arith.constant 0 : i32
    %c0_i32_1 = arith.constant 0 : i32
    return %arg0, %c0_i32, %c0_i32_0 : i32, i32, i32
  }
  func.func @transform_1(%arg0: i32) -> (i32, i32) {
    %c0_i32 = arith.constant 0 : i32
    %c0_i32_0 = arith.constant 0 : i32
    %c0_i32_1 = arith.constant 0 : i32
    return %c0_i32, %c0_i32_0 : i32, i32
  }
  func.func @transform_2(%arg0: i32) -> (i32, i32) {
    %c0_i32 = arith.constant 0 : i32
    %c0_i32_0 = arith.constant 0 : i32
    %c0_i32_1 = arith.constant 0 : i32
    return %c0_i32, %c0_i32_0 : i32, i32
  }
  func.func @transform_3(%arg0: i32) -> (i32, i32) {
    %c0_i32 = arith.constant 0 : i32
    %c0_i32_0 = arith.constant 0 : i32
    %c0_i32_1 = arith.constant 0 : i32
    return %c0_i32, %c0_i32_0 : i32, i32
  }
  func.func @transform_4(%arg0: i32) -> (i32, i32) {
    %c0_i32 = arith.constant 0 : i32
    %c0_i32_0 = arith.constant 0 : i32
    %c0_i32_1 = arith.constant 0 : i32
    return %c0_i32, %c0_i32_0 : i32, i32
  }
  func.func @transform_5(%arg0: i32) -> (i32, i32) {
    %c0_i32 = arith.constant 0 : i32
    %c0_i32_0 = arith.constant 0 : i32
    %c0_i32_1 = arith.constant 0 : i32
    return %c0_i32, %c0_i32_0 : i32, i32
  }
  func.func @transform_6(%arg0: i32) -> (i32, i32, i32) {
    %c0_i32 = arith.constant 0 : i32
    %c0_i32_0 = arith.constant 0 : i32
    %c0_i32_1 = arith.constant 0 : i32
    return %arg0, %c0_i32, %c0_i32_0 : i32, i32, i32
  }
  func.func @transform_7(%arg0: i32) -> (i32, i32) {
    %c0_i32 = arith.constant 0 : i32
    %c0_i32_0 = arith.constant 0 : i32
    %c0_i32_1 = arith.constant 0 : i32
    return %c0_i32, %c0_i32_0 : i32, i32
  }
}

</mosaic_0001>

<llo_original>
// kernel: gru_forward.2
$region0: #{gru_forward.2}
  #allocation0 [shape = 'u32[]', space=smem, size = 0x4, offset = 0x4, fixed_abs, tag = 'smem constant byte address 0x4 - core index']
  #allocation1 [shape = 'u32[144,128]{1,0:T(1,128)}', space=vmem, size = 0x12000, scoped, tag = 'internal scratch']
  %s0 = inlined_call_operand.hbm [shape: f32[32,16], index: 0, kind: input, shape index: {}]
  %s1 = inlined_call_operand.hbm [shape: f32[16,384], index: 1, kind: input, shape index: {}]
  %s2 = inlined_call_operand.hbm [shape: f32[1,384], index: 2, kind: input, shape index: {}]
  %s3 = inlined_call_operand.hbm [shape: f32[32,384], index: 3, kind: output, shape index: {}]
  %s4 = sld [smem:[#allocation0]]
  $region34: #{gru_forward.2} parent=0
    _
  %s6 = ssub.s32 1, %s4
  %s7 = scalar_select 0, %s6, %s4
  $region1: #{gru_forward.2} parent=0
    #allocation2 [shape = 'u8[16384]{0}', space=vmem, size = 0x4000, scoped, tag = 'input window, operand 0, single buffered']
    #allocation3 [shape = 's32[1]{0}', space=sflag, size = 0x4, scoped, tag = 'scoped memory for gru_forward.2']
    #allocation4 [shape = 's32[1]{0}', space=sflag, size = 0x4, scoped, tag = 'scoped memory for gru_forward.2']
    #allocation5 [shape = 'u8[24576]{0}', space=vmem, size = 0x6000, scoped, tag = 'input window, operand 1, single buffered']
    #allocation6 [shape = 's32[1]{0}', space=sflag, size = 0x4, scoped, tag = 'scoped memory for gru_forward.2']
    #allocation7 [shape = 'u8[1536]{0}', space=vmem, size = 0x800, scoped, tag = 'input window, operand 2, single buffered']
    #allocation8 [shape = 'u8[49152]{0}', space=vmem, size = 0xc000, scoped, tag = 'output window, operand 0, single buffered']
    %8 = vsyncpa [#allocation3], 0
    %9 = vsyncpa [#allocation6], 0
    %10 = vsyncpa [#allocation4], 0
    // Predicated region
    $region2: #{gru_forward.2} parent=1 // pred_check
      _
    $region3: #{gru_forward.2} parent=1 // pred_check_branch
      %12 = sbr.rel (0) target = $region5
    $region4: #{gru_forward.2} parent=1 // pred_region
      %s14 = ssub.s32 512, 512
      %15 = vsyncadd [#allocation3], %s14
      %s16 = sshll.u32 [#allocation2], 4
      %s17 = int_to_ptr.vmem [resolvable:$true] %s16
      %22 = dma.hbm_to_vmem [thread:$0]  %s0, 512, %s17, [#allocation3], 128, 128, 8
    $region5: #{gru_forward.2} parent=1 // pred_fallthru
      _
    // Predicated region
    $region6: #{gru_forward.2} parent=1 // pred_check
      _
    $region7: #{gru_forward.2} parent=1 // pred_check_branch
      %24 = sbr.rel (0) target = $region9
    $region8: #{gru_forward.2} parent=1 // pred_region
      %s26 = ssub.s32 768, 768
      %27 = vsyncadd [#allocation6], %s26
      %s28 = sshll.u32 [#allocation5], 4
      %s29 = int_to_ptr.vmem [resolvable:$true] %s28
      %34 = dma.hbm_to_vmem [thread:$0]  %s1, 768, %s29, [#allocation6], 384, 384, 24
    $region9: #{gru_forward.2} parent=1 // pred_fallthru
      _
    // Predicated region
    $region10: #{gru_forward.2} parent=1 // pred_check
      _
    $region11: #{gru_forward.2} parent=1 // pred_check_branch
      %36 = sbr.rel (0) target = $region13
    $region12: #{gru_forward.2} parent=1 // pred_region
      %s38 = ssub.s32 48, 48
      %39 = vsyncadd [#allocation6], %s38
      %s41 = sshll.u32 [#allocation7], 4
      %s42 = int_to_ptr.vmem [resolvable:$true] %s41
      %44 = dma.hbm_to_vmem [thread:$0]  %s2, 48, %s42, [#allocation6]
    $region13: #{gru_forward.2} parent=1 // pred_fallthru
      _
    // Predicated region
    $region14: #{gru_forward.2} parent=1 // pred_check
      _
    $region15: #{gru_forward.2} parent=1 // pred_check_branch
      %46 = sbr.rel (0) target = $region17
    $region16: #{gru_forward.2} parent=1 // pred_region
      %47 = dma.done [#allocation3], 512
    $region17: #{gru_forward.2} parent=1 // pred_fallthru
      _
    // Predicated region
    $region18: #{gru_forward.2} parent=1 // pred_check
      _
    $region19: #{gru_forward.2} parent=1 // pred_check_branch
      %49 = sbr.rel (0) target = $region21
    $region20: #{gru_forward.2} parent=1 // pred_region
      %50 = dma.done [#allocation6], 768
    $region21: #{gru_forward.2} parent=1 // pred_fallthru
      _
    // Predicated region
    $region22: #{gru_forward.2} parent=1 // pred_check
      _
    $region23: #{gru_forward.2} parent=1 // pred_check_branch
      %52 = sbr.rel (0) target = $region25
    $region24: #{gru_forward.2} parent=1 // pred_region
      %53 = dma.done [#allocation6], 48
    $region25: #{gru_forward.2} parent=1 // pred_fallthru
      _
    %v54 = vld [vmem:[#allocation2] sm:$0xff]
    %v55 = vld [vmem:[#allocation2 + $0x8] sm:$0xff]
    %v56 = vld [vmem:[#allocation2 + $0x10] sm:$0xff]
    %v57 = vld [vmem:[#allocation2 + $0x18] sm:$0xff]
    %v58 = vld [vmem:[#allocation5] sm:$0xff]
    %v59 = vld [vmem:[#allocation5 + $0x8] sm:$0xff]
    %v60 = vld [vmem:[#allocation5 + $0x10] sm:$0xff]
    %v61 = vld [vmem:[#allocation5 + $0x18] sm:$0xff]
    %v62 = vld [vmem:[#allocation5 + $0x20] sm:$0xff]
    %v63 = vld [vmem:[#allocation5 + $0x28] sm:$0xff]
    %v64 = vld [vmem:[#allocation7] sm:$0x7]
    %v66 = vlaneseq
    %v67 = vshrl.u32 %v66, 7
    %v68 = vsub.s32 0, %v67
    %v69 = vrot.slane %v64, %v68
    %v70 = vlaneseq
    %v71 = vshrl.u32 %v70, 7
    %v72 = vsub.s32 1, %v71
    %v73 = vrot.slane %v64, %v72
    %v74 = vlaneseq
    %v75 = vshrl.u32 %v74, 7
    %v76 = vsub.s32 2, %v75
    %v77 = vrot.slane %v64, %v76
    %vm81 = vcmask 130048
    %v83 = vsel %vm81, %v54, 0
    %v86 = vsel %vm81, %v55, 0
    %v89 = vsel %vm81, %v56, 0
    %v92 = vsel %vm81, %v57, 0
    %94 = vmatprep.subr.mxu0 %v59
    %95 = vmatpush1.msra.mxu0 %v58
    %96 = vmatprep.subr.mxu0 %v62
    %97 = vmatpush1.msra.mxu0 %v61
    %98 = vmatprep.subr.mxu0 0.0
    %99 = vmatpush1.msra.mxu0 0.0
    %100 = vmatprep.subr.mxu0 0.0
    %101 = vmatpush1.msra.mxu0 0.0
    %102 = vmatprep.subr.mxu0 0.0
    %103 = vmatpush1.msra.mxu0 0.0
    %104 = vmatprep.subr.mxu0 0.0
    %105 = vmatpush1.msra.mxu0 0.0
    %106 = vmatprep.subr.mxu0 0.0
    %107 = vmatpush1.msra.mxu0 0.0
    %108 = vmatprep.subr.mxu0 0.0
    %109 = vmatpush1.msra.mxu0 0.0
    %110 = vmatprep.subr.mxu0 0.0
    %111 = vmatpush1.msra.mxu0 0.0
    %112 = vmatprep.subr.mxu0 0.0
    %113 = vmatpush1.msra.mxu0 0.0
    %114 = vmatprep.subr.mxu0 0.0
    %115 = vmatpush1.msra.mxu0 0.0
    %116 = vmatprep.subr.mxu0 0.0
    %117 = vmatpush1.msra.mxu0 0.0
    %118 = vmatprep.subr.mxu0 0.0
    %119 = vmatpush1.msra.mxu0 0.0
    %120 = vmatprep.subr.mxu0 0.0
    %121 = vmatpush1.msra.mxu0 0.0
    %122 = vmatprep.subr.mxu0 0.0
    %123 = vmatpush1.msra.mxu0 0.0
    %124 = vmatprep.subr.mxu0 0.0
    %125 = vmatpush1.msra.mxu0 0.0
    %126 = vmatprep.subr.mxu0 0.0
    %127 = vmatpush1.msra.mxu0 0.0
    %128 = vmatprep.subr.mxu0 0.0
    %129 = vmatpush1.msra.mxu0 0.0
    %130 = vmatprep.subr.mxu0 0.0
    %131 = vmatpush1.msra.mxu0 0.0
    %132 = vmatprep.subr.mxu0 0.0
    %133 = vmatpush1.msra.mxu0 0.0
    %134 = vmatprep.subr.mxu0 0.0
    %135 = vmatpush1.msra.mxu0 0.0
    %136 = vmatprep.subr.mxu0 0.0
    %137 = vmatpush1.msra.mxu0 0.0
    %138 = vmatprep.subr.mxu0 0.0
    %139 = vmatpush1.msra.mxu0 0.0
    %140 = vmatprep.subr.mxu0 0.0
    %141 = vmatpush1.msra.mxu0 0.0
    %142 = vmatprep.subr.mxu0 0.0
    %143 = vmatpush1.msra.mxu0 0.0
    %144 = vmatprep.subr.mxu0 0.0
    %145 = vmatpush1.msra.mxu0 0.0
    %146 = vmatprep.subr.mxu0 0.0
    %147 = vmatpush1.msra.mxu0 0.0
    %148 = vmatprep.subr.mxu0 0.0
    %149 = vmatpush1.msra.mxu0 0.0
    %150 = vmatprep.subr.mxu0 0.0
    %151 = vmatpush1.msra.mxu0 0.0
    %152 = vmatprep.subr.mxu0 0.0
    %153 = vmatpush1.msra.mxu0 0.0
    %154 = vmatprep.subr.mxu0 0.0
    %155 = vmatpush1.msra.mxu0 0.0
    %156 = vmatprep.subr.mxu0 0.0
    %157 = vmatpush1.msra.mxu0 0.0
    %158 = vmatprep.mubr.f32.mxu0 0.0
    %159 = vmatmul.mubr.f32.gmra.mrb[0].mxu0 %v83
    %v160 = vpop.f32.mrb[0].mxu0
    %v161 = vadd.f32 %v69, %v160
    %v162 = vpop.f32.mrb[0].mxu0
    %v163 = vadd.f32 %v73, %v162
    %164 = vmatprep.mubr.f32.mxu0 0.0
    %165 = vmatmul.mubr.f32.gmra.mrb[0].mxu0 %v86
    %v166 = vpop.f32.mrb[0].mxu0
    %v167 = vadd.f32 %v69, %v166
    %v168 = vpop.f32.mrb[0].mxu0
    %v169 = vadd.f32 %v73, %v168
    %170 = vmatprep.mubr.f32.mxu0 0.0
    %171 = vmatmul.mubr.f32.gmra.mrb[0].mxu0 %v89
    %v172 = vpop.f32.mrb[0].mxu0
    %v173 = vadd.f32 %v69, %v172
    %v174 = vpop.f32.mrb[0].mxu0
    %v175 = vadd.f32 %v73, %v174
    %176 = vmatprep.mubr.f32.mxu0 0.0
    %177 = vmatmul.mubr.f32.gmra.mrb[0].mxu0 %v92
    %v178 = vpop.f32.mrb[0].mxu0
    %v179 = vadd.f32 %v69, %v178
    %v180 = vpop.f32.mrb[0].mxu0
    %v181 = vadd.f32 %v73, %v180
    %182 = vdwg.mxu0
    %183 = vmatprep.subr.mxu0 0.0
    %184 = vmatpush1.msra.mxu0 %v60
    %185 = vmatprep.subr.mxu0 0.0
    %186 = vmatpush1.msra.mxu0 %v63
    %187 = vmatprep.subr.mxu0 0.0
    %188 = vmatpush1.msra.mxu0 0.0
    %189 = vmatprep.subr.mxu0 0.0
    %190 = vmatpush1.msra.mxu0 0.0
    %191 = vmatprep.subr.mxu0 0.0
    %192 = vmatpush1.msra.mxu0 0.0
    %193 = vmatprep.subr.mxu0 0.0
    %194 = vmatpush1.msra.mxu0 0.0
    %195 = vmatprep.subr.mxu0 0.0
    %196 = vmatpush1.msra.mxu0 0.0
    %197 = vmatprep.subr.mxu0 0.0
    %198 = vmatpush1.msra.mxu0 0.0
    %199 = vmatprep.subr.mxu0 0.0
    %200 = vmatpush1.msra.mxu0 0.0
    %201 = vmatprep.subr.mxu0 0.0
    %202 = vmatpush1.msra.mxu0 0.0
    %203 = vmatprep.subr.mxu0 0.0
    %204 = vmatpush1.msra.mxu0 0.0
    %205 = vmatprep.subr.mxu0 0.0
    %206 = vmatpush1.msra.mxu0 0.0
    %207 = vmatprep.subr.mxu0 0.0
    %208 = vmatpush1.msra.mxu0 0.0
    %209 = vmatprep.subr.mxu0 0.0
    %210 = vmatpush1.msra.mxu0 0.0
    %211 = vmatprep.subr.mxu0 0.0
    %212 = vmatpush1.msra.mxu0 0.0
    %213 = vmatprep.subr.mxu0 0.0
    %214 = vmatpush1.msra.mxu0 0.0
    %215 = vmatprep.subr.mxu0 0.0
    %216 = vmatpush1.msra.mxu0 0.0
    %217 = vmatprep.subr.mxu0 0.0
    %218 = vmatpush1.msra.mxu0 0.0
    %219 = vmatprep.subr.mxu0 0.0
    %220 = vmatpush1.msra.mxu0 0.0
    %221 = vmatprep.subr.mxu0 0.0
    %222 = vmatpush1.msra.mxu0 0.0
    %223 = vmatprep.subr.mxu0 0.0
    %224 = vmatpush1.msra.mxu0 0.0
    %225 = vmatprep.subr.mxu0 0.0
    %226 = vmatpush1.msra.mxu0 0.0
    %227 = vmatprep.subr.mxu0 0.0
    %228 = vmatpush1.msra.mxu0 0.0
    %229 = vmatprep.subr.mxu0 0.0
    %230 = vmatpush1.msra.mxu0 0.0
    %231 = vmatprep.subr.mxu0 0.0
    %232 = vmatpush1.msra.mxu0 0.0
    %233 = vmatprep.subr.mxu0 0.0
    %234 = vmatpush1.msra.mxu0 0.0
    %235 = vmatprep.subr.mxu0 0.0
    %236 = vmatpush1.msra.mxu0 0.0
    %237 = vmatprep.subr.mxu0 0.0
    %238 = vmatpush1.msra.mxu0 0.0
    %239 = vmatprep.subr.mxu0 0.0
    %240 = vmatpush1.msra.mxu0 0.0
    %241 = vmatprep.subr.mxu0 0.0
    %242 = vmatpush1.msra.mxu0 0.0
    %243 = vmatprep.subr.mxu0 0.0
    %244 = vmatpush1.msra.mxu0 0.0
    %245 = vmatprep.subr.mxu0 0.0
    %246 = vmatpush1.msra.mxu0 0.0
    %247 = vmatprep.mubr.f32.mxu0 0.0
    %248 = vmatmul.mubr.f32.gmra.mrb[0].mxu0 %v83
    %v249 = vpop.f32.mrb[0].mxu0
    %v250 = vadd.f32 %v77, %v249
    %v251 = vpop.f32.mrb[0].mxu0
    %252 = vmatprep.mubr.f32.mxu0 0.0
    %253 = vmatmul.mubr.f32.gmra.mrb[0].mxu0 %v86
    %v254 = vpop.f32.mrb[0].mxu0
    %v255 = vadd.f32 %v77, %v254
    %v256 = vpop.f32.mrb[0].mxu0
    %257 = vmatprep.mubr.f32.mxu0 0.0
    %258 = vmatmul.mubr.f32.gmra.mrb[0].mxu0 %v89
    %v259 = vpop.f32.mrb[0].mxu0
    %v260 = vadd.f32 %v77, %v259
    %v261 = vpop.f32.mrb[0].mxu0
    %262 = vmatprep.mubr.f32.mxu0 0.0
    %263 = vmatmul.mubr.f32.gmra.mrb[0].mxu0 %v92
    %v264 = vpop.f32.mrb[0].mxu0
    %v265 = vadd.f32 %v77, %v264
    %v266 = vpop.f32.mrb[0].mxu0
    %267 = vdwg.mxu0
    %268 = vst [vmem:[#allocation8] sm:$0xff] %v161
    %269 = vst [vmem:[#allocation8 + $0x8] sm:$0xff] %v163
    %270 = vst [vmem:[#allocation8 + $0x10] sm:$0xff] %v250
    %271 = vst [vmem:[#allocation8 + $0x18] sm:$0xff] %v167
    %272 = vst [vmem:[#allocation8 + $0x20] sm:$0xff] %v169
    %273 = vst [vmem:[#allocation8 + $0x28] sm:$0xff] %v255
    %274 = vst [vmem:[#allocation8 + $0x30] sm:$0xff] %v173
    %275 = vst [vmem:[#allocation8 + $0x38] sm:$0xff] %v175
    %276 = vst [vmem:[#allocation8 + $0x40] sm:$0xff] %v260
    %277 = vst [vmem:[#allocation8 + $0x48] sm:$0xff] %v179
    %278 = vst [vmem:[#allocation8 + $0x50] sm:$0xff] %v181
    %279 = vst [vmem:[#allocation8 + $0x58] sm:$0xff] %v265
    // Predicated region
    $region26: #{gru_forward.2} parent=1 // pred_check
      _
    $region27: #{gru_forward.2} parent=1 // pred_check_branch
      %281 = sbr.rel (0) target = $region29
    $region28: #{gru_forward.2} parent=1 // pred_region
      %s283 = ssub.s32 1536, 1536
      %284 = vsyncadd [#allocation4], %s283
      %s285 = sshll.u32 [#allocation8], 4
      %s286 = int_to_ptr.vmem [resolvable:$true] %s285
      %291 = dma.vmem_to_hbm [thread:$0]  %s286, 1536, %s3, [#allocation4], 384, 384, 24
    $region29: #{gru_forward.2} parent=1 // pred_fallthru
      _
    // Predicated region
    $region30: #{gru_forward.2} parent=1 // pred_check
      _
    $region31: #{gru_forward.2} parent=1 // pred_check_branch
      %293 = sbr.rel (0) target = $region33
    $region32: #{gru_forward.2} parent=1 // pred_region
      %294 = dma.done [#allocation4], 1536
    $region33: #{gru_forward.2} parent=1 // pred_fallthru
      _
    %295 = vsyncpa [#allocation3], 1
    %296 = vsyncpa [#allocation6], 1
    %297 = vsyncpa [#allocation4], 1

// kernel: gru_forward.3
$region0: #{gru_forward.3}
  #allocation0 [shape = 'u32[]', space=smem, size = 0x4, offset = 0x4, fixed_abs, tag = 'smem constant byte address 0x4 - core index']
  #allocation1 [shape = 'u32[144,128]{1,0:T(1,128)}', space=vmem, size = 0x12000, scoped, tag = 'internal scratch']
  %s0 = inlined_call_operand.hbm [shape: f32[8,4,384], index: 0, kind: input, shape index: {}]
  %s1 = inlined_call_operand.hbm [shape: f32[4,128], index: 1, kind: input, shape index: {}]
  %s2 = inlined_call_operand.hbm [shape: f32[128,384], index: 2, kind: input, shape index: {}]
  %s3 = inlined_call_operand.hbm [shape: f32[1,128], index: 3, kind: input, shape index: {}]
  %s4 = inlined_call_operand.hbm [shape: f32[128,128], index: 4, kind: input, shape index: {}]
  %s5 = inlined_call_operand.hbm [shape: f32[1,128], index: 5, kind: input, shape index: {}]
  %s6 = inlined_call_operand.hbm [shape: f32[8,4,128], index: 6, kind: output, shape index: {0}]
  %s7 = inlined_call_operand.hbm [shape: f32[4,128], index: 7, kind: output, shape index: {1}]
  %8 = xla_tuple %s6, %s7
  %s9 = sld [smem:[#allocation0]]
  $region70: #{gru_forward.3} parent=0
    _
  %s11 = ssub.s32 1, %s9
  %s12 = scalar_select 0, %s11, %s9
  $region1: #{gru_forward.3} parent=0
    #allocation2 [shape = 'u8[49152]{0}', space=vmem, size = 0xc000, scoped, tag = 'input window, operand 0, single buffered']
    #allocation3 [shape = 's32[1]{0}', space=sflag, size = 0x4, scoped, tag = 'scoped memory for gru_forward.3']
    #allocation4 [shape = 's32[1]{0}', space=sflag, size = 0x4, scoped, tag = 'scoped memory for gru_forward.3']
    #allocation5 [shape = 'u8[2048]{0}', space=vmem, size = 0x800, scoped, tag = 'input window, operand 1, single buffered']
    #allocation6 [shape = 's32[1]{0}', space=sflag, size = 0x4, scoped, tag = 'scoped memory for gru_forward.3']
    #allocation7 [shape = 'u8[196608]{0}', space=vmem, size = 0x30000, scoped, tag = 'input window, operand 2, single buffered']
    #allocation8 [shape = 'u8[512]{0}', space=vmem, size = 0x400, scoped, tag = 'input window, operand 3, single buffered']
    #allocation9 [shape = 's32[1]{0}', space=sflag, size = 0x4, scoped, tag = 'scoped memory for gru_forward.3']
    #allocation10 [shape = 'u8[65536]{0}', space=vmem, size = 0x10000, scoped, tag = 'input window, operand 4, single buffered']
    #allocation11 [shape = 'u8[512]{0}', space=vmem, size = 0x400, scoped, tag = 'input window, operand 5, single buffered']
    #allocation12 [shape = 's32[1]{0}', space=sflag, size = 0x4, scoped, tag = 'scoped memory for gru_forward.3']
    #allocation13 [shape = 'u8[16384]{0}', space=vmem, size = 0x4000, scoped, tag = 'output window, operand 0, single buffered']
    #allocation14 [shape = 'u8[2048]{0}', space=vmem, size = 0x800, scoped, tag = 'output window, operand 1, single buffered']
    #allocation15 [shape = 's32[1]{0}', space=sflag, size = 0x4, scoped, tag = 'scoped memory for gru_forward.3']
    %13 = vsyncpa [#allocation3], 0
    %14 = vsyncpa [#allocation6], 0
    %15 = vsyncpa [#allocation9], 0
    %16 = vsyncpa [#allocation12], 0
    %17 = vsyncpa [#allocation4], 0
    %18 = vsyncpa [#allocation15], 0
    // Predicated region
    $region2: #{gru_forward.3} parent=1 // pred_check
      _
    $region3: #{gru_forward.3} parent=1 // pred_check_branch
      %20 = sbr.rel (0) target = $region5
    $region4: #{gru_forward.3} parent=1 // pred_region
      %s22 = ssub.s32 1536, 1536
      %23 = vsyncadd [#allocation3], %s22
      %s24 = sshll.u32 [#allocation2], 4
      %s25 = int_to_ptr.vmem [resolvable:$true] %s24
      %30 = dma.hbm_to_vmem [thread:$0]  %s0, 1536, %s25, [#allocation3], 192, 192, 12
    $region5: #{gru_forward.3} parent=1 // pred_fallthru
      _
    // Predicated region
    $region6: #{gru_forward.3} parent=1 // pred_check
      _
    $region7: #{gru_forward.3} parent=1 // pred_check_branch
      %32 = sbr.rel (0) target = $region9
    $region8: #{gru_forward.3} parent=1 // pred_region
      %s34 = ssub.s32 64, 64
      %35 = vsyncadd [#allocation6], %s34
      %s37 = sshll.u32 [#allocation5], 4
      %s38 = int_to_ptr.vmem [resolvable:$true] %s37
      %40 = dma.hbm_to_vmem [thread:$0]  %s1, 64, %s38, [#allocation6]
    $region9: #{gru_forward.3} parent=1 // pred_fallthru
      _
    // Predicated region
    $region10: #{gru_forward.3} parent=1 // pred_check
      _
    $region11: #{gru_forward.3} parent=1 // pred_check_branch
      %42 = sbr.rel (0) target = $region13
    $region12: #{gru_forward.3} parent=1 // pred_region
      %s44 = ssub.s32 6144, 6144
      %45 = vsyncadd [#allocation6], %s44
      %s46 = sshll.u32 [#allocation7], 4
      %s47 = int_to_ptr.vmem [resolvable:$true] %s46
      %52 = dma.hbm_to_vmem [thread:$0]  %s2, 6144, %s47, [#allocation6], 384, 384, 24
    $region13: #{gru_forward.3} parent=1 // pred_fallthru
      _
    // Predicated region
    $region14: #{gru_forward.3} parent=1 // pred_check
      _
    $region15: #{gru_forward.3} parent=1 // pred_check_branch
      %54 = sbr.rel (0) target = $region17
    $region16: #{gru_forward.3} parent=1 // pred_region
      %s56 = ssub.s32 16, 16
      %57 = vsyncadd [#allocation9], %s56
      %s59 = sshll.u32 [#allocation8], 4
      %s60 = int_to_ptr.vmem [resolvable:$true] %s59
      %62 = dma.hbm_to_vmem [thread:$0]  %s3, 16, %s60, [#allocation9]
    $region17: #{gru_forward.3} parent=1 // pred_fallthru
      _
    // Predicated region
    $region18: #{gru_forward.3} parent=1 // pred_check
      _
    $region19: #{gru_forward.3} parent=1 // pred_check_branch
      %64 = sbr.rel (0) target = $region21
    $region20: #{gru_forward.3} parent=1 // pred_region
      %s66 = ssub.s32 2048, 2048
      %67 = vsyncadd [#allocation9], %s66
      %s68 = sshll.u32 [#allocation10], 4
      %s69 = int_to_ptr.vmem [resolvable:$true] %s68
      %74 = dma.hbm_to_vmem [thread:$0]  %s4, 2048, %s69, [#allocation9], 128, 128, 8
    $region21: #{gru_forward.3} parent=1 // pred_fallthru
      _
    // Predicated region
    $region22: #{gru_forward.3} parent=1 // pred_check
      _
    $region23: #{gru_forward.3} parent=1 // pred_check_branch
      %76 = sbr.rel (0) target = $region25
    $region24: #{gru_forward.3} parent=1 // pred_region
      %s78 = ssub.s32 16, 16
      %79 = vsyncadd [#allocation12], %s78
      %s81 = sshll.u32 [#allocation11], 4
      %s82 = int_to_ptr.vmem [resolvable:$true] %s81
      %84 = dma.hbm_to_vmem [thread:$0]  %s5, 16, %s82, [#allocation12]
    $region25: #{gru_forward.3} parent=1 // pred_fallthru
      _
    // Predicated region
    $region26: #{gru_forward.3} parent=1 // pred_check
      _
    $region27: #{gru_forward.3} parent=1 // pred_check_branch
      %86 = sbr.rel (0) target = $region29
    $region28: #{gru_forward.3} parent=1 // pred_region
      %87 = dma.done [#allocation3], 1536
    $region29: #{gru_forward.3} parent=1 // pred_fallthru
      _
    // Predicated region
    $region30: #{gru_forward.3} parent=1 // pred_check
      _
    $region31: #{gru_forward.3} parent=1 // pred_check_branch
      %89 = sbr.rel (0) target = $region33
    $region32: #{gru_forward.3} parent=1 // pred_region
      %90 = dma.done [#allocation6], 64
    $region33: #{gru_forward.3} parent=1 // pred_fallthru
      _
    // Predicated region
    $region34: #{gru_forward.3} parent=1 // pred_check
      _
    $region35: #{gru_forward.3} parent=1 // pred_check_branch
      %92 = sbr.rel (0) target = $region37
    $region36: #{gru_forward.3} parent=1 // pred_region
      %93 = dma.done [#allocation6], 6144
    $region37: #{gru_forward.3} parent=1 // pred_fallthru
      _
    // Predicated region
    $region38: #{gru_forward.3} parent=1 // pred_check
      _
    $region39: #{gru_forward.3} parent=1 // pred_check_branch
      %95 = sbr.rel (0) target = $region41
    $region40: #{gru_forward.3} parent=1 // pred_region
      %96 = dma.done [#allocation9], 16
    $region41: #{gru_forward.3} parent=1 // pred_fallthru
      _
    // Predicated region
    $region42: #{gru_forward.3} parent=1 // pred_check
      _
    $region43: #{gru_forward.3} parent=1 // pred_check_branch
      %98 = sbr.rel (0) target = $region45
    $region44: #{gru_forward.3} parent=1 // pred_region
      %99 = dma.done [#allocation9], 2048
    $region45: #{gru_forward.3} parent=1 // pred_fallthru
      _
    // Predicated region
    $region46: #{gru_forward.3} parent=1 // pred_check
      _
    $region47: #{gru_forward.3} parent=1 // pred_check_branch
      %101 = sbr.rel (0) target = $region49
    $region48: #{gru_forward.3} parent=1 // pred_region
      %102 = dma.done [#allocation12], 16
    $region49: #{gru_forward.3} parent=1 // pred_fallthru
      _
    %p103 = scmp.eq.s32.totalorder 0, 0
    // Predicated region
    $region50: #{gru_forward.3} parent=1 // pred_check
      %p104 = pneg %p103
    $region51: #{gru_forward.3} parent=1 // pred_check_branch
      %106 = sbr.rel (%p104) target = $region53
    $region52: #{gru_forward.3} parent=1 // pred_region
      %v107 = vld [vmem:[#allocation5] sm:$0xf]
      %108 = vst [vmem:[#allocation14] sm:$0xf] %v107
    $region53: #{gru_forward.3} parent=1 // pred_fallthru
      _
    %v109 = vld [vmem:[#allocation7] sm:$0xff]
    %v110 = vld [vmem:[#allocation7 + $0x8] sm:$0xff]
    %v111 = vld [vmem:[#allocation7 + $0x10] sm:$0xff]
    %v112 = vld [vmem:[#allocation7 + $0x18] sm:$0xff]
    %v113 = vld [vmem:[#allocation7 + $0x20] sm:$0xff]
    %v114 = vld [vmem:[#allocation7 + $0x28] sm:$0xff]
    %v115 = vld [vmem:[#allocation7 + $0x30] sm:$0xff]
    %v116 = vld [vmem:[#allocation7 + $0x38] sm:$0xff]
    %v117 = vld [vmem:[#allocation7 + $0x40] sm:$0xff]
    %v118 = vld [vmem:[#allocation7 + $0x48] sm:$0xff]
    %v119 = vld [vmem:[#allocation7 + $0x50] sm:$0xff]
    %v120 = vld [vmem:[#allocation7 + $0x58] sm:$0xff]
    %v121 = vld [vmem:[#allocation7 + $0x60] sm:$0xff]
    %v122 = vld [vmem:[#allocation7 + $0x68] sm:$0xff]
    %v123 = vld [vmem:[#allocation7 + $0x70] sm:$0xff]
    %v124 = vld [vmem:[#allocation7 + $0x78] sm:$0xff]
    %v125 = vld [vmem:[#allocation7 + $0x80] sm:$0xff]
    %v126 = vld [vmem:[#allocation7 + $0x88] sm:$0xff]
    %v127 = vld [vmem:[#allocation7 + $0x90] sm:$0xff]
    %v128 = vld [vmem:[#allocation7 + $0x98] sm:$0xff]
    %v129 = vld [vmem:[#allocation7 + $0xa0] sm:$0xff]
    %v130 = vld [vmem:[#allocation7 + $0xa8] sm:$0xff]
    %v131 = vld [vmem:[#allocation7 + $0xb0] sm:$0xff]
    %v132 = vld [vmem:[#allocation7 + $0xb8] sm:$0xff]
    %v133 = vld [vmem:[#allocation7 + $0xc0] sm:$0xff]
    %v134 = vld [vmem:[#allocation7 + $0xc8] sm:$0xff]
    %v135 = vld [vmem:[#allocation7 + $0xd0] sm:$0xff]
    %v136 = vld [vmem:[#allocation7 + $0xd8] sm:$0xff]
    %v137 = vld [vmem:[#allocation7 + $0xe0] sm:$0xff]
    %v138 = vld [vmem:[#allocation7 + $0xe8] sm:$0xff]
    %v139 = vld [vmem:[#allocation7 + $0xf0] sm:$0xff]
    %v140 = vld [vmem:[#allocation7 + $0xf8] sm:$0xff]
    %v141 = vld [vmem:[#allocation7 + $0x100] sm:$0xff]
    %v142 = vld [vmem:[#allocation7 + $0x108] sm:$0xff]
    %v143 = vld [vmem:[#allocation7 + $0x110] sm:$0xff]
    %v144 = vld [vmem:[#allocation7 + $0x118] sm:$0xff]
    %v145 = vld [vmem:[#allocation7 + $0x120] sm:$0xff]
    %v146 = vld [vmem:[#allocation7 + $0x128] sm:$0xff]
    %v147 = vld [vmem:[#allocation7 + $0x130] sm:$0xff]
    %v148 = vld [vmem:[#allocation7 + $0x138] sm:$0xff]
    %v149 = vld [vmem:[#allocation7 + $0x140] sm:$0xff]
    %v150 = vld [vmem:[#allocation7 + $0x148] sm:$0xff]
    %v151 = vld [vmem:[#allocation7 + $0x150] sm:$0xff]
    %v152 = vld [vmem:[#allocation7 + $0x158] sm:$0xff]
    %v153 = vld [vmem:[#allocation7 + $0x160] sm:$0xff]
    %v154 = vld [vmem:[#allocation7 + $0x168] sm:$0xff]
    %v155 = vld [vmem:[#allocation7 + $0x170] sm:$0xff]
    %v156 = vld [vmem:[#allocation7 + $0x178] sm:$0xff]
    %v157 = vld [vmem:[#allocation10] sm:$0xff]
    %v158 = vld [vmem:[#allocation10 + $0x8] sm:$0xff]
    %v159 = vld [vmem:[#allocation10 + $0x10] sm:$0xff]
    %v160 = vld [vmem:[#allocation10 + $0x18] sm:$0xff]
    %v161 = vld [vmem:[#allocation10 + $0x20] sm:$0xff]
    %v162 = vld [vmem:[#allocation10 + $0x28] sm:$0xff]
    %v163 = vld [vmem:[#allocation10 + $0x30] sm:$0xff]
    %v164 = vld [vmem:[#allocation10 + $0x38] sm:$0xff]
    %v165 = vld [vmem:[#allocation10 + $0x40] sm:$0xff]
    %v166 = vld [vmem:[#allocation10 + $0x48] sm:$0xff]
    %v167 = vld [vmem:[#allocation10 + $0x50] sm:$0xff]
    %v168 = vld [vmem:[#allocation10 + $0x58] sm:$0xff]
    %v169 = vld [vmem:[#allocation10 + $0x60] sm:$0xff]
    %v170 = vld [vmem:[#allocation10 + $0x68] sm:$0xff]
    %v171 = vld [vmem:[#allocation10 + $0x70] sm:$0xff]
    %v172 = vld [vmem:[#allocation10 + $0x78] sm:$0xff]
    %v173 = vld [vmem:[#allocation8] sm:$0x1]
    %v175 = vlaneseq
    %v176 = vshrl.u32 %v175, 7
    %v177 = vsub.s32 0, %v176
    %v178 = vrot.slane %v173, %v177
    %v180 = vld [vmem:[#allocation11] sm:$0x1]
    %v182 = vlaneseq
    %v183 = vshrl.u32 %v182, 7
    %v184 = vsub.s32 0, %v183
    %v185 = vrot.slane %v180, %v184
    %v187 = vld [vmem:[#allocation14] sm:$0xf]
    %188 = vmatprep.subr.mxu0 %v110
    %189 = vmatpush1.msra.mxu0 %v109
    %190 = vmatprep.subr.mxu0 %v113
    %191 = vmatpush1.msra.mxu0 %v112
    %192 = vmatprep.subr.mxu0 %v116
    %193 = vmatpush1.msra.mxu0 %v115
    %194 = vmatprep.subr.mxu0 %v119
    %195 = vmatpush1.msra.mxu0 %v118
    %196 = vmatprep.subr.mxu0 %v122
    %197 = vmatpush1.msra.mxu0 %v121
    %198 = vmatprep.subr.mxu0 %v125
    %199 = vmatpush1.msra.mxu0 %v124
    %200 = vmatprep.subr.mxu0 %v128
    %201 = vmatpush1.msra.mxu0 %v127
    %202 = vmatprep.subr.mxu0 %v131
    %203 = vmatpush1.msra.mxu0 %v130
    %204 = vmatprep.subr.mxu0 %v134
    %205 = vmatpush1.msra.mxu0 %v133
    %206 = vmatprep.subr.mxu0 %v137
    %207 = vmatpush1.msra.mxu0 %v136
    %208 = vmatprep.subr.mxu0 %v140
    %209 = vmatpush1.msra.mxu0 %v139
    %210 = vmatprep.subr.mxu0 %v143
    %211 = vmatpush1.msra.mxu0 %v142
    %212 = vmatprep.subr.mxu0 %v146
    %213 = vmatpush1.msra.mxu0 %v145
    %214 = vmatprep.subr.mxu0 %v149
    %215 = vmatpush1.msra.mxu0 %v148
    %216 = vmatprep.subr.mxu0 %v152
    %217 = vmatpush1.msra.mxu0 %v151
    %218 = vmatprep.subr.mxu0 %v155
    %219 = vmatpush1.msra.mxu0 %v154
    %220 = vmatprep.subr.mxu0 0.0
    %221 = vmatpush1.msra.mxu0 0.0
    %222 = vmatprep.subr.mxu0 0.0
    %223 = vmatpush1.msra.mxu0 0.0
    %224 = vmatprep.subr.mxu0 0.0
    %225 = vmatpush1.msra.mxu0 0.0
    %226 = vmatprep.subr.mxu0 0.0
    %227 = vmatpush1.msra.mxu0 0.0
    %228 = vmatprep.subr.mxu0 0.0
    %229 = vmatpush1.msra.mxu0 0.0
    %230 = vmatprep.subr.mxu0 0.0
    %231 = vmatpush1.msra.mxu0 0.0
    %232 = vmatprep.subr.mxu0 0.0
    %233 = vmatpush1.msra.mxu0 0.0
    %234 = vmatprep.subr.mxu0 0.0
    %235 = vmatpush1.msra.mxu0 0.0
    %236 = vmatprep.subr.mxu0 0.0
    %237 = vmatpush1.msra.mxu0 0.0
    %238 = vmatprep.subr.mxu0 0.0
    %239 = vmatpush1.msra.mxu0 0.0
    %240 = vmatprep.subr.mxu0 0.0
    %241 = vmatpush1.msra.mxu0 0.0
    %242 = vmatprep.subr.mxu0 0.0
    %243 = vmatpush1.msra.mxu0 0.0
    %244 = vmatprep.subr.mxu0 0.0
    %245 = vmatpush1.msra.mxu0 0.0
    %246 = vmatprep.subr.mxu0 0.0
    %247 = vmatpush1.msra.mxu0 0.0
    %248 = vmatprep.subr.mxu0 0.0
    %249 = vmatpush1.msra.mxu0 0.0
    %250 = vmatprep.subr.mxu0 0.0
    %251 = vmatpush1.msra.mxu0 0.0
    %252 = vmatprep.mubr.f32.mxu0 0.0
    %253 = vmatmul.mubr.f32.gmra.mrb[0].mxu0 %v187
    %v254 = vpop.f32.mrb[0].mxu0
    %v255 = vadd.f32 0.0, %v254
    %v256 = vpop.f32.mrb[0].mxu0
    %v257 = vadd.f32 0.0, %v256
    %258 = vdwg.mxu0
    %259 = vmatprep.subr.mxu0 0.0
    %260 = vmatpush1.msra.mxu0 %v111
    %261 = vmatprep.subr.mxu0 0.0
    %262 = vmatpush1.msra.mxu0 %v114
    %263 = vmatprep.subr.mxu0 0.0
    %264 = vmatpush1.msra.mxu0 %v117
    %265 = vmatprep.subr.mxu0 0.0
    %266 = vmatpush1.msra.mxu0 %v120
    %267 = vmatprep.subr.mxu0 0.0
    %268 = vmatpush1.msra.mxu0 %v123
    %269 = vmatprep.subr.mxu0 0.0
    %270 = vmatpush1.msra.mxu0 %v126
    %271 = vmatprep.subr.mxu0 0.0
    %272 = vmatpush1.msra.mxu0 %v129
    %273 = vmatprep.subr.mxu0 0.0
    %274 = vmatpush1.msra.mxu0 %v132
    %275 = vmatprep.subr.mxu0 0.0
    %276 = vmatpush1.msra.mxu0 %v135
    %277 = vmatprep.subr.mxu0 0.0
    %278 = vmatpush1.msra.mxu0 %v138
    %279 = vmatprep.subr.mxu0 0.0
    %280 = vmatpush1.msra.mxu0 %v141
    %281 = vmatprep.subr.mxu0 0.0
    %282 = vmatpush1.msra.mxu0 %v144
    %283 = vmatprep.subr.mxu0 0.0
    %284 = vmatpush1.msra.mxu0 %v147
    %285 = vmatprep.subr.mxu0 0.0
    %286 = vmatpush1.msra.mxu0 %v150
    %287 = vmatprep.subr.mxu0 0.0
    %288 = vmatpush1.msra.mxu0 %v153
    %289 = vmatprep.subr.mxu0 0.0
    %290 = vmatpush1.msra.mxu0 %v156
    %291 = vmatprep.subr.mxu0 0.0
    %292 = vmatpush1.msra.mxu0 0.0
    %293 = vmatprep.subr.mxu0 0.0
    %294 = vmatpush1.msra.mxu0 0.0
    %295 = vmatprep.subr.mxu0 0.0
    %296 = vmatpush1.msra.mxu0 0.0
    %297 = vmatprep.subr.mxu0 0.0
    %298 = vmatpush1.msra.mxu0 0.0
    %299 = vmatprep.subr.mxu0 0.0
    %300 = vmatpush1.msra.mxu0 0.0
    %301 = vmatprep.subr.mxu0 0.0
    %302 = vmatpush1.msra.mxu0 0.0
    %303 = vmatprep.subr.mxu0 0.0
    %304 = vmatpush1.msra.mxu0 0.0
    %305 = vmatprep.subr.mxu0 0.0
    %306 = vmatpush1.msra.mxu0 0.0
    %307 = vmatprep.subr.mxu0 0.0
    %308 = vmatpush1.msra.mxu0 0.0
    %309 = vmatprep.subr.mxu0 0.0
    %310 = vmatpush1.msra.mxu0 0.0
    %311 = vmatprep.subr.mxu0 0.0
    %312 = vmatpush1.msra.mxu0 0.0
    %313 = vmatprep.subr.mxu0 0.0
    %314 = vmatpush1.msra.mxu0 0.0
    %315 = vmatprep.subr.mxu0 0.0
    %316 = vmatpush1.msra.mxu0 0.0
    %317 = vmatprep.subr.mxu0 0.0
    %318 = vmatpush1.msra.mxu0 0.0
    %319 = vmatprep.subr.mxu0 0.0
    %320 = vmatpush1.msra.mxu0 0.0
    %321 = vmatprep.subr.mxu0 0.0
    %322 = vmatpush1.msra.mxu0 0.0
    %323 = vmatprep.mubr.f32.mxu0 0.0
    %324 = vmatmul.mubr.f32.gmra.mrb[0].mxu0 %v187
    %v325 = vpop.f32.mrb[0].mxu0
    %v326 = vadd.f32 0.0, %v325
    %v327 = vpop.f32.mrb[0].mxu0
    %328 = vdwg.mxu0
    %v329 = vld [vmem:[#allocation2] sm:$0xff]
    %v330 = vld [vmem:[#allocation2 + $0x8] sm:$0xf]
    %v331 = vadd.f32 %v329, %v255
    %v332 = vxor.u32 %v331, 2147483648
    %v333 = vmul.f32 %v332, 1.442695
    %v334 = vpow.pop %v333
    %v335 = vadd.f32 %v334, 1.0
    %v336 = vrcp.pop %v335
    %v337 = vmul.f32 1.0, %v336
    %v339 = vrot.slane %v329, 4
    %v341 = vadd.f32 %v339, %v257
    %v342 = vxor.u32 %v341, 2147483648
    %v343 = vmul.f32 %v342, 1.442695
    %v344 = vpow.pop %v343
    %v345 = vadd.f32 %v344, 1.0
    %v346 = vrcp.pop %v345
    %v347 = vmul.f32 1.0, %v346
    %v348 = vadd.f32 %v326, %v178
    %v349 = vmul.f32 %v337, %v348
    %v350 = vadd.f32 %v330, %v349
    %v351 = vtanh.pop %v350
    %v352 = vsub.f32 1.0, %v347
    %v353 = vmul.f32 %v352, %v351
    %v354 = vmul.f32 %v347, %v187
    %v355 = vadd.f32 %v353, %v354
    %356 = vmatprep.subr.mxu0 0.0
    %357 = vmatpush1.msra.mxu0 %v157
    %358 = vmatprep.subr.mxu0 0.0
    %359 = vmatpush1.msra.mxu0 %v158
    %360 = vmatprep.subr.mxu0 0.0
    %361 = vmatpush1.msra.mxu0 %v159
    %362 = vmatprep.subr.mxu0 0.0
    %363 = vmatpush1.msra.mxu0 %v160
    %364 = vmatprep.subr.mxu0 0.0
    %365 = vmatpush1.msra.mxu0 %v161
    %366 = vmatprep.subr.mxu0 0.0
    %367 = vmatpush1.msra.mxu0 %v162
    %368 = vmatprep.subr.mxu0 0.0
    %369 = vmatpush1.msra.mxu0 %v163
    %370 = vmatprep.subr.mxu0 0.0
    %371 = vmatpush1.msra.mxu0 %v164
    %372 = vmatprep.subr.mxu0 0.0
    %373 = vmatpush1.msra.mxu0 %v165
    %374 = vmatprep.subr.mxu0 0.0
    %375 = vmatpush1.msra.mxu0 %v166
    %376 = vmatprep.subr.mxu0 0.0
    %377 = vmatpush1.msra.mxu0 %v167
    %378 = vmatprep.subr.mxu0 0.0
    %379 = vmatpush1.msra.mxu0 %v168
    %380 = vmatprep.subr.mxu0 0.0
    %381 = vmatpush1.msra.mxu0 %v169
    %382 = vmatprep.subr.mxu0 0.0
    %383 = vmatpush1.msra.mxu0 %v170
    %384 = vmatprep.subr.mxu0 0.0
    %385 = vmatpush1.msra.mxu0 %v171
    %386 = vmatprep.subr.mxu0 0.0
    %387 = vmatpush1.msra.mxu0 %v172
    %388 = vmatprep.subr.mxu0 0.0
    %389 = vmatpush1.msra.mxu0 0.0
    %390 = vmatprep.subr.mxu0 0.0
    %391 = vmatpush1.msra.mxu0 0.0
    %392 = vmatprep.subr.mxu0 0.0
    %393 = vmatpush1.msra.mxu0 0.0
    %394 = vmatprep.subr.mxu0 0.0
    %395 = vmatpush1.msra.mxu0 0.0
    %396 = vmatprep.subr.mxu0 0.0
    %397 = vmatpush1.msra.mxu0 0.0
    %398 = vmatprep.subr.mxu0 0.0
    %399 = vmatpush1.msra.mxu0 0.0
    %400 = vmatprep.subr.mxu0 0.0
    %401 = vmatpush1.msra.mxu0 0.0
    %402 = vmatprep.subr.mxu0 0.0
    %403 = vmatpush1.msra.mxu0 0.0
    %404 = vmatprep.subr.mxu0 0.0
    %405 = vmatpush1.msra.mxu0 0.0
    %406 = vmatprep.subr.mxu0 0.0
    %407 = vmatpush1.msra.mxu0 0.0
    %408 = vmatprep.subr.mxu0 0.0
    %409 = vmatpush1.msra.mxu0 0.0
    %410 = vmatprep.subr.mxu0 0.0
    %411 = vmatpush1.msra.mxu0 0.0
    %412 = vmatprep.subr.mxu0 0.0
    %413 = vmatpush1.msra.mxu0 0.0
    %414 = vmatprep.subr.mxu0 0.0
    %415 = vmatpush1.msra.mxu0 0.0
    %416 = vmatprep.subr.mxu0 0.0
    %417 = vmatpush1.msra.mxu0 0.0
    %418 = vmatprep.subr.mxu0 0.0
    %419 = vmatpush1.msra.mxu0 0.0
    %420 = vmatprep.mubr.f32.mxu0 0.0
    %421 = vmatmul.mubr.f32.gmra.mrb[0].mxu0 %v355
    %v422 = vpop.f32.mrb[0].mxu0
    %v423 = vadd.f32 %v185, %v422
    %v424 = vpop.f32.mrb[0].mxu0
    %425 = vdwg.mxu0
    %426 = vst [vmem:[#allocation13] sm:$0xf] %v423
    %427 = vmatprep.subr.mxu0 %v110
    %428 = vmatpush1.msra.mxu0 %v109
    %429 = vmatprep.subr.mxu0 %v113
    %430 = vmatpush1.msra.mxu0 %v112
    %431 = vmatprep.subr.mxu0 %v116
    %432 = vmatpush1.msra.mxu0 %v115
    %433 = vmatprep.subr.mxu0 %v119
    %434 = vmatpush1.msra.mxu0 %v118
    %435 = vmatprep.subr.mxu0 %v122
    %436 = vmatpush1.msra.mxu0 %v121
    %437 = vmatprep.subr.mxu0 %v125
    %438 = vmatpush1.msra.mxu0 %v124
    %439 = vmatprep.subr.mxu0 %v128
    %440 = vmatpush1.msra.mxu0 %v127
    %441 = vmatprep.subr.mxu0 %v131
    %442 = vmatpush1.msra.mxu0 %v130
    %443 = vmatprep.subr.mxu0 %v134
    %444 = vmatpush1.msra.mxu0 %v133
    %445 = vmatprep.subr.mxu0 %v137
    %446 = vmatpush1.msra.mxu0 %v136
    %447 = vmatprep.subr.mxu0 %v140
    %448 = vmatpush1.msra.mxu0 %v139
    %449 = vmatprep.subr.mxu0 %v143
    %450 = vmatpush1.msra.mxu0 %v142
    %451 = vmatprep.subr.mxu0 %v146
    %452 = vmatpush1.msra.mxu0 %v145
    %453 = vmatprep.subr.mxu0 %v149
    %454 = vmatpush1.msra.mxu0 %v148
    %455 = vmatprep.subr.mxu0 %v152
    %456 = vmatpush1.msra.mxu0 %v151
    %457 = vmatprep.subr.mxu0 %v155
    %458 = vmatpush1.msra.mxu0 %v154
    %459 = vmatprep.subr.mxu0 0.0
    %460 = vmatpush1.msra.mxu0 0.0
    %461 = vmatprep.subr.mxu0 0.0
    %462 = vmatpush1.msra.mxu0 0.0
    %463 = vmatprep.subr.mxu0 0.0
    %464 = vmatpush1.msra.mxu0 0.0
    %465 = vmatprep.subr.mxu0 0.0
    %466 = vmatpush1.msra.mxu0 0.0
    %467 = vmatprep.subr.mxu0 0.0
    %468 = vmatpush1.msra.mxu0 0.0
    %469 = vmatprep.subr.mxu0 0.0
    %470 = vmatpush1.msra.mxu0 0.0
    %471 = vmatprep.subr.mxu0 0.0
    %472 = vmatpush1.msra.mxu0 0.0
    %473 = vmatprep.subr.mxu0 0.0
    %474 = vmatpush1.msra.mxu0 0.0
    %475 = vmatprep.subr.mxu0 0.0
    %476 = vmatpush1.msra.mxu0 0.0
    %477 = vmatprep.subr.mxu0 0.0
    %478 = vmatpush1.msra.mxu0 0.0
    %479 = vmatprep.subr.mxu0 0.0
    %480 = vmatpush1.msra.mxu0 0.0
    %481 = vmatprep.subr.mxu0 0.0
    %482 = vmatpush1.msra.mxu0 0.0
    %483 = vmatprep.subr.mxu0 0.0
    %484 = vmatpush1.msra.mxu0 0.0
    %485 = vmatprep.subr.mxu0 0.0
    %486 = vmatpush1.msra.mxu0 0.0
    %487 = vmatprep.subr.mxu0 0.0
    %488 = vmatpush1.msra.mxu0 0.0
    %489 = vmatprep.subr.mxu0 0.0
    %490 = vmatpush1.msra.mxu0 0.0
    %491 = vmatprep.mubr.f32.mxu0 0.0
    %492 = vmatmul.mubr.f32.gmra.mrb[0].mxu0 %v355
    %v493 = vpop.f32.mrb[0].mxu0
    %v494 = vadd.f32 0.0, %v493
    %v495 = vpop.f32.mrb[0].mxu0
    %v496 = vadd.f32 0.0, %v495
    %497 = vdwg.mxu0
    %498 = vmatprep.subr.mxu0 0.0
    %499 = vmatpush1.msra.mxu0 %v111
    %500 = vmatprep.subr.mxu0 0.0
    %501 = vmatpush1.msra.mxu0 %v114
    %502 = vmatprep.subr.mxu0 0.0
    %503 = vmatpush1.msra.mxu0 %v117
    %504 = vmatprep.subr.mxu0 0.0
    %505 = vmatpush1.msra.mxu0 %v120
    %506 = vmatprep.subr.mxu0 0.0
    %507 = vmatpush1.msra.mxu0 %v123
    %508 = vmatprep.subr.mxu0 0.0
    %509 = vmatpush1.msra.mxu0 %v126
    %510 = vmatprep.subr.mxu0 0.0
    %511 = vmatpush1.msra.mxu0 %v129
    %512 = vmatprep.subr.mxu0 0.0
    %513 = vmatpush1.msra.mxu0 %v132
    %514 = vmatprep.subr.mxu0 0.0
    %515 = vmatpush1.msra.mxu0 %v135
    %516 = vmatprep.subr.mxu0 0.0
    %517 = vmatpush1.msra.mxu0 %v138
    %518 = vmatprep.subr.mxu0 0.0
    %519 = vmatpush1.msra.mxu0 %v141
    %520 = vmatprep.subr.mxu0 0.0
    %521 = vmatpush1.msra.mxu0 %v144
    %522 = vmatprep.subr.mxu0 0.0
    %523 = vmatpush1.msra.mxu0 %v147
    %524 = vmatprep.subr.mxu0 0.0
    %525 = vmatpush1.msra.mxu0 %v150
    %526 = vmatprep.subr.mxu0 0.0
    %527 = vmatpush1.msra.mxu0 %v153
    %528 = vmatprep.subr.mxu0 0.0
    %529 = vmatpush1.msra.mxu0 %v156
    %530 = vmatprep.subr.mxu0 0.0
    %531 = vmatpush1.msra.mxu0 0.0
    %532 = vmatprep.subr.mxu0 0.0
    %533 = vmatpush1.msra.mxu0 0.0
    %534 = vmatprep.subr.mxu0 0.0
    %535 = vmatpush1.msra.mxu0 0.0
    %536 = vmatprep.subr.mxu0 0.0
    %537 = vmatpush1.msra.mxu0 0.0
    %538 = vmatprep.subr.mxu0 0.0
    %539 = vmatpush1.msra.mxu0 0.0
    %540 = vmatprep.subr.mxu0 0.0
    %541 = vmatpush1.msra.mxu0 0.0
    %542 = vmatprep.subr.mxu0 0.0
    %543 = vmatpush1.msra.mxu0 0.0
    %544 = vmatprep.subr.mxu0 0.0
    %545 = vmatpush1.msra.mxu0 0.0
    %546 = vmatprep.subr.mxu0 0.0
    %547 = vmatpush1.msra.mxu0 0.0
    %548 = vmatprep.subr.mxu0 0.0
    %549 = vmatpush1.msra.mxu0 0.0
    %550 = vmatprep.subr.mxu0 0.0
    %551 = vmatpush1.msra.mxu0 0.0
    %552 = vmatprep.subr.mxu0 0.0
    %553 = vmatpush1.msra.mxu0 0.0
    %554 = vmatprep.subr.mxu0 0.0
    %555 = vmatpush1.msra.mxu0 0.0
    %556 = vmatprep.subr.mxu0 0.0
    %557 = vmatpush1.msra.mxu0 0.0
    %558 = vmatprep.subr.mxu0 0.0
    %559 = vmatpush1.msra.mxu0 0.0
    %560 = vmatprep.subr.mxu0 0.0
    %561 = vmatpush1.msra.mxu0 0.0
    %562 = vmatprep.mubr.f32.mxu0 0.0
    %563 = vmatmul.mubr.f32.gmra.mrb[0].mxu0 %v355
    %v564 = vpop.f32.mrb[0].mxu0
    %v565 = vadd.f32 0.0, %v564
    %v566 = vpop.f32.mrb[0].mxu0
    %567 = vdwg.mxu0
    %s568 = scalar_lea.vmem [#allocation2], 12
    %v569 = vld [vmem:[%s568] sm:$0xff]
    %v570 = vld [vmem:[%s568 + $0x8] sm:$0xf]
    %v571 = vadd.f32 %v569, %v494
    %v572 = vxor.u32 %v571, 2147483648
    %v573 = vmul.f32 %v572, 1.442695
    %v574 = vpow.pop %v573
    %v575 = vadd.f32 %v574, 1.0
    %v576 = vrcp.pop %v575
    %v577 = vmul.f32 1.0, %v576
    %v579 = vrot.slane %v569, 4
    %v581 = vadd.f32 %v579, %v496
    %v582 = vxor.u32 %v581, 2147483648
    %v583 = vmul.f32 %v582, 1.442695
    %v584 = vpow.pop %v583
    %v585 = vadd.f32 %v584, 1.0
    %v586 = vrcp.pop %v585
    %v587 = vmul.f32 1.0, %v586
    %v588 = vadd.f32 %v565, %v178
    %v589 = vmul.f32 %v577, %v588
    %v590 = vadd.f32 %v570, %v589
    %v591 = vtanh.pop %v590
    %v592 = vsub.f32 1.0, %v587
    %v593 = vmul.f32 %v592, %v591
    %v594 = vmul.f32 %v587, %v355
    %v595 = vadd.f32 %v593, %v594
    %596 = vmatprep.subr.mxu0 0.0
    %597 = vmatpush1.msra.mxu0 %v157
    %598 = vmatprep.subr.mxu0 0.0
    %599 = vmatpush1.msra.mxu0 %v158
    %600 = vmatprep.subr.mxu0 0.0
    %601 = vmatpush1.msra.mxu0 %v159
    %602 = vmatprep.subr.mxu0 0.0
    %603 = vmatpush1.msra.mxu0 %v160
    %604 = vmatprep.subr.mxu0 0.0
    %605 = vmatpush1.msra.mxu0 %v161
    %606 = vmatprep.subr.mxu0 0.0
    %607 = vmatpush1.msra.mxu0 %v162
    %608 = vmatprep.subr.mxu0 0.0
    %609 = vmatpush1.msra.mxu0 %v163
    %610 = vmatprep.subr.mxu0 0.0
    %611 = vmatpush1.msra.mxu0 %v164
    %612 = vmatprep.subr.mxu0 0.0
    %613 = vmatpush1.msra.mxu0 %v165
    %614 = vmatprep.subr.mxu0 0.0
    %615 = vmatpush1.msra.mxu0 %v166
    %616 = vmatprep.subr.mxu0 0.0
    %617 = vmatpush1.msra.mxu0 %v167
    %618 = vmatprep.subr.mxu0 0.0
    %619 = vmatpush1.msra.mxu0 %v168
    %620 = vmatprep.subr.mxu0 0.0
    %621 = vmatpush1.msra.mxu0 %v169
    %622 = vmatprep.subr.mxu0 0.0
    %623 = vmatpush1.msra.mxu0 %v170
    %624 = vmatprep.subr.mxu0 0.0
    %625 = vmatpush1.msra.mxu0 %v171
    %626 = vmatprep.subr.mxu0 0.0
    %627 = vmatpush1.msra.mxu0 %v172
    %628 = vmatprep.subr.mxu0 0.0
    %629 = vmatpush1.msra.mxu0 0.0
    %630 = vmatprep.subr.mxu0 0.0
    %631 = vmatpush1.msra.mxu0 0.0
    %632 = vmatprep.subr.mxu0 0.0
    %633 = vmatpush1.msra.mxu0 0.0
    %634 = vmatprep.subr.mxu0 0.0
    %635 = vmatpush1.msra.mxu0 0.0
    %636 = vmatprep.subr.mxu0 0.0
    %637 = vmatpush1.msra.mxu0 0.0
    %638 = vmatprep.subr.mxu0 0.0
    %639 = vmatpush1.msra.mxu0 0.0
    %640 = vmatprep.subr.mxu0 0.0
    %641 = vmatpush1.msra.mxu0 0.0
    %642 = vmatprep.subr.mxu0 0.0
    %643 = vmatpush1.msra.mxu0 0.0
    %644 = vmatprep.subr.mxu0 0.0
    %645 = vmatpush1.msra.mxu0 0.0
    %646 = vmatprep.subr.mxu0 0.0
    %647 = vmatpush1.msra.mxu0 0.0
    %648 = vmatprep.subr.mxu0 0.0
    %649 = vmatpush1.msra.mxu0 0.0
    %650 = vmatprep.subr.mxu0 0.0
    %651 = vmatpush1.msra.mxu0 0.0
    %652 = vmatprep.subr.mxu0 0.0
    %653 = vmatpush1.msra.mxu0 0.0
    %654 = vmatprep.subr.mxu0 0.0
    %655 = vmatpush1.msra.mxu0 0.0
    %656 = vmatprep.subr.mxu0 0.0
    %657 = vmatpush1.msra.mxu0 0.0
    %658 = vmatprep.subr.mxu0 0.0
    %659 = vmatpush1.msra.mxu0 0.0
    %660 = vmatprep.mubr.f32.mxu0 0.0
    %661 = vmatmul.mubr.f32.gmra.mrb[0].mxu0 %v595
    %v662 = vpop.f32.mrb[0].mxu0
    %v663 = vadd.f32 %v185, %v662
    %v664 = vpop.f32.mrb[0].mxu0
    %665 = vdwg.mxu0
    %s666 = scalar_lea.vmem [#allocation13], 4
    %667 = vst [vmem:[%s666] sm:$0xf] %v663
    %668 = vmatprep.subr.mxu0 %v110
    %669 = vmatpush1.msra.mxu0 %v109
    %670 = vmatprep.subr.mxu0 %v113
    %671 = vmatpush1.msra.mxu0 %v112
    %672 = vmatprep.subr.mxu0 %v116
    %673 = vmatpush1.msra.mxu0 %v115
    %674 = vmatprep.subr.mxu0 %v119
    %675 = vmatpush1.msra.mxu0 %v118
    %676 = vmatprep.subr.mxu0 %v122
    %677 = vmatpush1.msra.mxu0 %v121
    %678 = vmatprep.subr.mxu0 %v125
    %679 = vmatpush1.msra.mxu0 %v124
    %680 = vmatprep.subr.mxu0 %v128
    %681 = vmatpush1.msra.mxu0 %v127
    %682 = vmatprep.subr.mxu0 %v131
    %683 = vmatpush1.msra.mxu0 %v130
    %684 = vmatprep.subr.mxu0 %v134
    %685 = vmatpush1.msra.mxu0 %v133
    %686 = vmatprep.subr.mxu0 %v137
    %687 = vmatpush1.msra.mxu0 %v136
    %688 = vmatprep.subr.mxu0 %v140
    %689 = vmatpush1.msra.mxu0 %v139
    %690 = vmatprep.subr.mxu0 %v143
    %691 = vmatpush1.msra.mxu0 %v142
    %692 = vmatprep.subr.mxu0 %v146
    %693 = vmatpush1.msra.mxu0 %v145
    %694 = vmatprep.subr.mxu0 %v149
    %695 = vmatpush1.msra.mxu0 %v148
    %696 = vmatprep.subr.mxu0 %v152
    %697 = vmatpush1.msra.mxu0 %v151
    %698 = vmatprep.subr.mxu0 %v155
    %699 = vmatpush1.msra.mxu0 %v154
    %700 = vmatprep.subr.mxu0 0.0
    %701 = vmatpush1.msra.mxu0 0.0
    %702 = vmatprep.subr.mxu0 0.0
    %703 = vmatpush1.msra.mxu0 0.0
    %704 = vmatprep.subr.mxu0 0.0
    %705 = vmatpush1.msra.mxu0 0.0
    %706 = vmatprep.subr.mxu0 0.0
    %707 = vmatpush1.msra.mxu0 0.0
    %708 = vmatprep.subr.mxu0 0.0
    %709 = vmatpush1.msra.mxu0 0.0
    %710 = vmatprep.subr.mxu0 0.0
    %711 = vmatpush1.msra.mxu0 0.0
    %712 = vmatprep.subr.mxu0 0.0
    %713 = vmatpush1.msra.mxu0 0.0
    %714 = vmatprep.subr.mxu0 0.0
    %715 = vmatpush1.msra.mxu0 0.0
    %716 = vmatprep.subr.mxu0 0.0
    %717 = vmatpush1.msra.mxu0 0.0
    %718 = vmatprep.subr.mxu0 0.0
    %719 = vmatpush1.msra.mxu0 0.0
    %720 = vmatprep.subr.mxu0 0.0
    %721 = vmatpush1.msra.mxu0 0.0
    %722 = vmatprep.subr.mxu0 0.0
    %723 = vmatpush1.msra.mxu0 0.0
    %724 = vmatprep.subr.mxu0 0.0
    %725 = vmatpush1.msra.mxu0 0.0
    %726 = vmatprep.subr.mxu0 0.0
    %727 = vmatpush1.msra.mxu0 0.0
    %728 = vmatprep.subr.mxu0 0.0
    %729 = vmatpush1.msra.mxu0 0.0
    %730 = vmatprep.subr.mxu0 0.0
    %731 = vmatpush1.msra.mxu0 0.0
    %732 = vmatprep.mubr.f32.mxu0 0.0
    %733 = vmatmul.mubr.f32.gmra.mrb[0].mxu0 %v595
    %v734 = vpop.f32.mrb[0].mxu0
    %v735 = vadd.f32 0.0, %v734
    %v736 = vpop.f32.mrb[0].mxu0
    %v737 = vadd.f32 0.0, %v736
    %738 = vdwg.mxu0
    %739 = vmatprep.subr.mxu0 0.0
    %740 = vmatpush1.msra.mxu0 %v111
    %741 = vmatprep.subr.mxu0 0.0
    %742 = vmatpush1.msra.mxu0 %v114
    %743 = vmatprep.subr.mxu0 0.0
    %744 = vmatpush1.msra.mxu0 %v117
    %745 = vmatprep.subr.mxu0 0.0
    %746 = vmatpush1.msra.mxu0 %v120
    %747 = vmatprep.subr.mxu0 0.0
    %748 = vmatpush1.msra.mxu0 %v123
    %749 = vmatprep.subr.mxu0 0.0
    %750 = vmatpush1.msra.mxu0 %v126
    %751 = vmatprep.subr.mxu0 0.0
    %752 = vmatpush1.msra.mxu0 %v129
    %753 = vmatprep.subr.mxu0 0.0
    %754 = vmatpush1.msra.mxu0 %v132
    %755 = vmatprep.subr.mxu0 0.0
    %756 = vmatpush1.msra.mxu0 %v135
    %757 = vmatprep.subr.mxu0 0.0
    %758 = vmatpush1.msra.mxu0 %v138
    %759 = vmatprep.subr.mxu0 0.0
    %760 = vmatpush1.msra.mxu0 %v141
    %761 = vmatprep.subr.mxu0 0.0
    %762 = vmatpush1.msra.mxu0 %v144
    %763 = vmatprep.subr.mxu0 0.0
    %764 = vmatpush1.msra.mxu0 %v147
    %765 = vmatprep.subr.mxu0 0.0
    %766 = vmatpush1.msra.mxu0 %v150
    %767 = vmatprep.subr.mxu0 0.0
    %768 = vmatpush1.msra.mxu0 %v153
    %769 = vmatprep.subr.mxu0 0.0
    %770 = vmatpush1.msra.mxu0 %v156
    %771 = vmatprep.subr.mxu0 0.0
    %772 = vmatpush1.msra.mxu0 0.0
    %773 = vmatprep.subr.mxu0 0.0
    %774 = vmatpush1.msra.mxu0 0.0
    %775 = vmatprep.subr.mxu0 0.0
    %776 = vmatpush1.msra.mxu0 0.0
    %777 = vmatprep.subr.mxu0 0.0
    %778 = vmatpush1.msra.mxu0 0.0
    %779 = vmatprep.subr.mxu0 0.0
    %780 = vmatpush1.msra.mxu0 0.0
    %781 = vmatprep.subr.mxu0 0.0
    %782 = vmatpush1.msra.mxu0 0.0
    %783 = vmatprep.subr.mxu0 0.0
    %784 = vmatpush1.msra.mxu0 0.0
    %785 = vmatprep.subr.mxu0 0.0
    %786 = vmatpush1.msra.mxu0 0.0
    %787 = vmatprep.subr.mxu0 0.0
    %788 = vmatpush1.msra.mxu0 0.0
    %789 = vmatprep.subr.mxu0 0.0
    %790 = vmatpush1.msra.mxu0 0.0
    %791 = vmatprep.subr.mxu0 0.0
    %792 = vmatpush1.msra.mxu0 0.0
    %793 = vmatprep.subr.mxu0 0.0
    %794 = vmatpush1.msra.mxu0 0.0
    %795 = vmatprep.subr.mxu0 0.0
    %796 = vmatpush1.msra.mxu0 0.0
    %797 = vmatprep.subr.mxu0 0.0
    %798 = vmatpush1.msra.mxu0 0.0
    %799 = vmatprep.subr.mxu0 0.0
    %800 = vmatpush1.msra.mxu0 0.0
    %801 = vmatprep.subr.mxu0 0.0
    %802 = vmatpush1.msra.mxu0 0.0
    %803 = vmatprep.mubr.f32.mxu0 0.0
    %804 = vmatmul.mubr.f32.gmra.mrb[0].mxu0 %v595
    %v805 = vpop.f32.mrb[0].mxu0
    %v806 = vadd.f32 0.0, %v805
    %v807 = vpop.f32.mrb[0].mxu0
    %808 = vdwg.mxu0
    %s809 = scalar_lea.vmem [#allocation2], 24
    %v810 = vld [vmem:[%s809] sm:$0xff]
    %v811 = vld [vmem:[%s809 + $0x8] sm:$0xf]
    %v812 = vadd.f32 %v810, %v735
    %v813 = vxor.u32 %v812, 2147483648
    %v814 = vmul.f32 %v813, 1.442695
    %v815 = vpow.pop %v814
    %v816 = vadd.f32 %v815, 1.0
    %v817 = vrcp.pop %v816
    %v818 = vmul.f32 1.0, %v817
    %v820 = vrot.slane %v810, 4
    %v822 = vadd.f32 %v820, %v737
    %v823 = vxor.u32 %v822, 2147483648
    %v824 = vmul.f32 %v823, 1.442695
    %v825 = vpow.pop %v824
    %v826 = vadd.f32 %v825, 1.0
    %v827 = vrcp.pop %v826
    %v828 = vmul.f32 1.0, %v827
    %v829 = vadd.f32 %v806, %v178
    %v830 = vmul.f32 %v818, %v829
    %v831 = vadd.f32 %v811, %v830
    %v832 = vtanh.pop %v831
    %v833 = vsub.f32 1.0, %v828
    %v834 = vmul.f32 %v833, %v832
    %v835 = vmul.f32 %v828, %v595
    %v836 = vadd.f32 %v834, %v835
    %837 = vmatprep.subr.mxu0 0.0
    %838 = vmatpush1.msra.mxu0 %v157
    %839 = vmatprep.subr.mxu0 0.0
    %840 = vmatpush1.msra.mxu0 %v158
    %841 = vmatprep.subr.mxu0 0.0
    %842 = vmatpush1.msra.mxu0 %v159
    %843 = vmatprep.subr.mxu0 0.0
    %844 = vmatpush1.msra.mxu0 %v160
    %845 = vmatprep.subr.mxu0 0.0
    %846 = vmatpush1.msra.mxu0 %v161
    %847 = vmatprep.subr.mxu0 0.0
    %848 = vmatpush1.msra.mxu0 %v162
    %849 = vmatprep.subr.mxu0 0.0
    %850 = vmatpush1.msra.mxu0 %v163
    %851 = vmatprep.subr.mxu0 0.0
    %852 = vmatpush1.msra.mxu0 %v164
    %853 = vmatprep.subr.mxu0 0.0
    %854 = vmatpush1.msra.mxu0 %v165
    %855 = vmatprep.subr.mxu0 0.0
    %856 = vmatpush1.msra.mxu0 %v166
    %857 = vmatprep.subr.mxu0 0.0
    %858 = vmatpush1.msra.mxu0 %v167
    %859 = vmatprep.subr.mxu0 0.0
    %860 = vmatpush1.msra.mxu0 %v168
    %861 = vmatprep.subr.mxu0 0.0
    %862 = vmatpush1.msra.mxu0 %v169
    %863 = vmatprep.subr.mxu0 0.0
    %864 = vmatpush1.msra.mxu0 %v170
    %865 = vmatprep.subr.mxu0 0.0
    %866 = vmatpush1.msra.mxu0 %v171
    %867 = vmatprep.subr.mxu0 0.0
    %868 = vmatpush1.msra.mxu0 %v172
    %869 = vmatprep.subr.mxu0 0.0
    %870 = vmatpush1.msra.mxu0 0.0
    %871 = vmatprep.subr.mxu0 0.0
    %872 = vmatpush1.msra.mxu0 0.0
    %873 = vmatprep.subr.mxu0 0.0
    %874 = vmatpush1.msra.mxu0 0.0
    %875 = vmatprep.subr.mxu0 0.0
    %876 = vmatpush1.msra.mxu0 0.0
    %877 = vmatprep.subr.mxu0 0.0
    %878 = vmatpush1.msra.mxu0 0.0
    %879 = vmatprep.subr.mxu0 0.0
    %880 = vmatpush1.msra.mxu0 0.0
    %881 = vmatprep.subr.mxu0 0.0
    %882 = vmatpush1.msra.mxu0 0.0
    %883 = vmatprep.subr.mxu0 0.0
    %884 = vmatpush1.msra.mxu0 0.0
    %885 = vmatprep.subr.mxu0 0.0
    %886 = vmatpush1.msra.mxu0 0.0
    %887 = vmatprep.subr.mxu0 0.0
    %888 = vmatpush1.msra.mxu0 0.0
    %889 = vmatprep.subr.mxu0 0.0
    %890 = vmatpush1.msra.mxu0 0.0
    %891 = vmatprep.subr.mxu0 0.0
    %892 = vmatpush1.msra.mxu0 0.0
    %893 = vmatprep.subr.mxu0 0.0
    %894 = vmatpush1.msra.mxu0 0.0
    %895 = vmatprep.subr.mxu0 0.0
    %896 = vmatpush1.msra.mxu0 0.0
    %897 = vmatprep.subr.mxu0 0.0
    %898 = vmatpush1.msra.mxu0 0.0
    %899 = vmatprep.subr.mxu0 0.0
    %900 = vmatpush1.msra.mxu0 0.0
    %901 = vmatprep.mubr.f32.mxu0 0.0
    %902 = vmatmul.mubr.f32.gmra.mrb[0].mxu0 %v836
    %v903 = vpop.f32.mrb[0].mxu0
    %v904 = vadd.f32 %v185, %v903
    %v905 = vpop.f32.mrb[0].mxu0
    %906 = vdwg.mxu0
    %s907 = scalar_lea.vmem [#allocation13], 8
    %908 = vst [vmem:[%s907] sm:$0xf] %v904
    %909 = vmatprep.subr.mxu0 %v110
    %910 = vmatpush1.msra.mxu0 %v109
    %911 = vmatprep.subr.mxu0 %v113
    %912 = vmatpush1.msra.mxu0 %v112
    %913 = vmatprep.subr.mxu0 %v116
    %914 = vmatpush1.msra.mxu0 %v115
    %915 = vmatprep.subr.mxu0 %v119
    %916 = vmatpush1.msra.mxu0 %v118
    %917 = vmatprep.subr.mxu0 %v122
    %918 = vmatpush1.msra.mxu0 %v121
    %919 = vmatprep.subr.mxu0 %v125
    %920 = vmatpush1.msra.mxu0 %v124
    %921 = vmatprep.subr.mxu0 %v128
    %922 = vmatpush1.msra.mxu0 %v127
    %923 = vmatprep.subr.mxu0 %v131
    %924 = vmatpush1.msra.mxu0 %v130
    %925 = vmatprep.subr.mxu0 %v134
    %926 = vmatpush1.msra.mxu0 %v133
    %927 = vmatprep.subr.mxu0 %v137
    %928 = vmatpush1.msra.mxu0 %v136
    %929 = vmatprep.subr.mxu0 %v140
    %930 = vmatpush1.msra.mxu0 %v139
    %931 = vmatprep.subr.mxu0 %v143
    %932 = vmatpush1.msra.mxu0 %v142
    %933 = vmatprep.subr.mxu0 %v146
    %934 = vmatpush1.msra.mxu0 %v145
    %935 = vmatprep.subr.mxu0 %v149
    %936 = vmatpush1.msra.mxu0 %v148
    %937 = vmatprep.subr.mxu0 %v152
    %938 = vmatpush1.msra.mxu0 %v151
    %939 = vmatprep.subr.mxu0 %v155
    %940 = vmatpush1.msra.mxu0 %v154
    %941 = vmatprep.subr.mxu0 0.0
    %942 = vmatpush1.msra.mxu0 0.0
    %943 = vmatprep.subr.mxu0 0.0
    %944 = vmatpush1.msra.mxu0 0.0
    %945 = vmatprep.subr.mxu0 0.0
    %946 = vmatpush1.msra.mxu0 0.0
    %947 = vmatprep.subr.mxu0 0.0
    %948 = vmatpush1.msra.mxu0 0.0
    %949 = vmatprep.subr.mxu0 0.0
    %950 = vmatpush1.msra.mxu0 0.0
    %951 = vmatprep.subr.mxu0 0.0
    %952 = vmatpush1.msra.mxu0 0.0
    %953 = vmatprep.subr.mxu0 0.0
    %954 = vmatpush1.msra.mxu0 0.0
    %955 = vmatprep.subr.mxu0 0.0
    %956 = vmatpush1.msra.mxu0 0.0
    %957 = vmatprep.subr.mxu0 0.0
    %958 = vmatpush1.msra.mxu0 0.0
    %959 = vmatprep.subr.mxu0 0.0
    %960 = vmatpush1.msra.mxu0 0.0
    %961 = vmatprep.subr.mxu0 0.0
    %962 = vmatpush1.msra.mxu0 0.0
    %963 = vmatprep.subr.mxu0 0.0
    %964 = vmatpush1.msra.mxu0 0.0
    %965 = vmatprep.subr.mxu0 0.0
    %966 = vmatpush1.msra.mxu0 0.0
    %967 = vmatprep.subr.mxu0 0.0
    %968 = vmatpush1.msra.mxu0 0.0
    %969 = vmatprep.subr.mxu0 0.0
    %970 = vmatpush1.msra.mxu0 0.0
    %971 = vmatprep.subr.mxu0 0.0
    %972 = vmatpush1.msra.mxu0 0.0
    %973 = vmatprep.mubr.f32.mxu0 0.0
    %974 = vmatmul.mubr.f32.gmra.mrb[0].mxu0 %v836
    %v975 = vpop.f32.mrb[0].mxu0
    %v976 = vadd.f32 0.0, %v975
    %v977 = vpop.f32.mrb[0].mxu0
    %v978 = vadd.f32 0.0, %v977
    %979 = vdwg.mxu0
    %980 = vmatprep.subr.mxu0 0.0
    %981 = vmatpush1.msra.mxu0 %v111
    %982 = vmatprep.subr.mxu0 0.0
    %983 = vmatpush1.msra.mxu0 %v114
    %984 = vmatprep.subr.mxu0 0.0
    %985 = vmatpush1.msra.mxu0 %v117
    %986 = vmatprep.subr.mxu0 0.0
    %987 = vmatpush1.msra.mxu0 %v120
    %988 = vmatprep.subr.mxu0 0.0
    %989 = vmatpush1.msra.mxu0 %v123
    %990 = vmatprep.subr.mxu0 0.0
    %991 = vmatpush1.msra.mxu0 %v126
    %992 = vmatprep.subr.mxu0 0.0
    %993 = vmatpush1.msra.mxu0 %v129
    %994 = vmatprep.subr.mxu0 0.0
    %995 = vmatpush1.msra.mxu0 %v132
    %996 = vmatprep.subr.mxu0 0.0
    %997 = vmatpush1.msra.mxu0 %v135
    %998 = vmatprep.subr.mxu0 0.0
    %999 = vmatpush1.msra.mxu0 %v138
    %1000 = vmatprep.subr.mxu0 0.0
    %1001 = vmatpush1.msra.mxu0 %v141
    %1002 = vmatprep.subr.mxu0 0.0
    %1003 = vmatpush1.msra.mxu0 %v144
    %1004 = vmatprep.subr.mxu0 0.0
    %1005 = vmatpush1.msra.mxu0 %v147
    %1006 = vmatprep.subr.mxu0 0.0
    %1007 = vmatpush1.msra.mxu0 %v150
    %1008 = vmatprep.subr.mxu0 0.0
    %1009 = vmatpush1.msra.mxu0 %v153
    %1010 = vmatprep.subr.mxu0 0.0
    %1011 = vmatpush1.msra.mxu0 %v156
    %1012 = vmatprep.subr.mxu0 0.0
    %1013 = vmatpush1.msra.mxu0 0.0
    %1014 = vmatprep.subr.mxu0 0.0
    %1015 = vmatpush1.msra.mxu0 0.0
    %1016 = vmatprep.subr.mxu0 0.0
    %1017 = vmatpush1.msra.mxu0 0.0
    %1018 = vmatprep.subr.mxu0 0.0
    %1019 = vmatpush1.msra.mxu0 0.0
    %1020 = vmatprep.subr.mxu0 0.0
    %1021 = vmatpush1.msra.mxu0 0.0
    %1022 = vmatprep.subr.mxu0 0.0
    %1023 = vmatpush1.msra.mxu0 0.0
    %1024 = vmatprep.subr.mxu0 0.0
    %1025 = vmatpush1.msra.mxu0 0.0
    %1026 = vmatprep.subr.mxu0 0.0
    %1027 = vmatpush1.msra.mxu0 0.0
    %1028 = vmatprep.subr.mxu0 0.0
    %1029 = vmatpush1.msra.mxu0 0.0
    %1030 = vmatprep.subr.mxu0 0.0
    %1031 = vmatpush1.msra.mxu0 0.0
    %1032 = vmatprep.subr.mxu0 0.0
    %1033 = vmatpush1.msra.mxu0 0.0
    %1034 = vmatprep.subr.mxu0 0.0
    %1035 = vmatpush1.msra.mxu0 0.0
    %1036 = vmatprep.subr.mxu0 0.0
    %1037 = vmatpush1.msra.mxu0 0.0
    %1038 = vmatprep.subr.mxu0 0.0
    %1039 = vmatpush1.msra.mxu0 0.0
    %1040 = vmatprep.subr.mxu0 0.0
    %1041 = vmatpush1.msra.mxu0 0.0
    %1042 = vmatprep.subr.mxu0 0.0
    %1043 = vmatpush1.msra.mxu0 0.0
    %1044 = vmatprep.mubr.f32.mxu0 0.0
    %1045 = vmatmul.mubr.f32.gmra.mrb[0].mxu0 %v836
    %v1046 = vpop.f32.mrb[0].mxu0
    %v1047 = vadd.f32 0.0, %v1046
    %v1048 = vpop.f32.mrb[0].mxu0
    %1049 = vdwg.mxu0
    %s1050 = scalar_lea.vmem [#allocation2], 36
    %v1051 = vld [vmem:[%s1050] sm:$0xff]
    %v1052 = vld [vmem:[%s1050 + $0x8] sm:$0xf]
    %v1053 = vadd.f32 %v1051, %v976
    %v1054 = vxor.u32 %v1053, 2147483648
    %v1055 = vmul.f32 %v1054, 1.442695
    %v1056 = vpow.pop %v1055
    %v1057 = vadd.f32 %v1056, 1.0
    %v1058 = vrcp.pop %v1057
    %v1059 = vmul.f32 1.0, %v1058
    %v1061 = vrot.slane %v1051, 4
    %v1063 = vadd.f32 %v1061, %v978
    %v1064 = vxor.u32 %v1063, 2147483648
    %v1065 = vmul.f32 %v1064, 1.442695
    %v1066 = vpow.pop %v1065
    %v1067 = vadd.f32 %v1066, 1.0
    %v1068 = vrcp.pop %v1067
    %v1069 = vmul.f32 1.0, %v1068
    %v1070 = vadd.f32 %v1047, %v178
    %v1071 = vmul.f32 %v1059, %v1070
    %v1072 = vadd.f32 %v1052, %v1071
    %v1073 = vtanh.pop %v1072
    %v1074 = vsub.f32 1.0, %v1069
    %v1075 = vmul.f32 %v1074, %v1073
    %v1076 = vmul.f32 %v1069, %v836
    %v1077 = vadd.f32 %v1075, %v1076
    %1078 = vmatprep.subr.mxu0 0.0
    %1079 = vmatpush1.msra.mxu0 %v157
    %1080 = vmatprep.subr.mxu0 0.0
    %1081 = vmatpush1.msra.mxu0 %v158
    %1082 = vmatprep.subr.mxu0 0.0
    %1083 = vmatpush1.msra.mxu0 %v159
    %1084 = vmatprep.subr.mxu0 0.0
    %1085 = vmatpush1.msra.mxu0 %v160
    %1086 = vmatprep.subr.mxu0 0.0
    %1087 = vmatpush1.msra.mxu0 %v161
    %1088 = vmatprep.subr.mxu0 0.0
    %1089 = vmatpush1.msra.mxu0 %v162
    %1090 = vmatprep.subr.mxu0 0.0
    %1091 = vmatpush1.msra.mxu0 %v163
    %1092 = vmatprep.subr.mxu0 0.0
    %1093 = vmatpush1.msra.mxu0 %v164
    %1094 = vmatprep.subr.mxu0 0.0
    %1095 = vmatpush1.msra.mxu0 %v165
    %1096 = vmatprep.subr.mxu0 0.0
    %1097 = vmatpush1.msra.mxu0 %v166
    %1098 = vmatprep.subr.mxu0 0.0
    %1099 = vmatpush1.msra.mxu0 %v167
    %1100 = vmatprep.subr.mxu0 0.0
    %1101 = vmatpush1.msra.mxu0 %v168
    %1102 = vmatprep.subr.mxu0 0.0
    %1103 = vmatpush1.msra.mxu0 %v169
    %1104 = vmatprep.subr.mxu0 0.0
    %1105 = vmatpush1.msra.mxu0 %v170
    %1106 = vmatprep.subr.mxu0 0.0
    %1107 = vmatpush1.msra.mxu0 %v171
    %1108 = vmatprep.subr.mxu0 0.0
    %1109 = vmatpush1.msra.mxu0 %v172
    %1110 = vmatprep.subr.mxu0 0.0
    %1111 = vmatpush1.msra.mxu0 0.0
    %1112 = vmatprep.subr.mxu0 0.0
    %1113 = vmatpush1.msra.mxu0 0.0
    %1114 = vmatprep.subr.mxu0 0.0
    %1115 = vmatpush1.msra.mxu0 0.0
    %1116 = vmatprep.subr.mxu0 0.0
    %1117 = vmatpush1.msra.mxu0 0.0
    %1118 = vmatprep.subr.mxu0 0.0
    %1119 = vmatpush1.msra.mxu0 0.0
    %1120 = vmatprep.subr.mxu0 0.0
    %1121 = vmatpush1.msra.mxu0 0.0
    %1122 = vmatprep.subr.mxu0 0.0
    %1123 = vmatpush1.msra.mxu0 0.0
    %1124 = vmatprep.subr.mxu0 0.0
    %1125 = vmatpush1.msra.mxu0 0.0
    %1126 = vmatprep.subr.mxu0 0.0
    %1127 = vmatpush1.msra.mxu0 0.0
    %1128 = vmatprep.subr.mxu0 0.0
    %1129 = vmatpush1.msra.mxu0 0.0
    %1130 = vmatprep.subr.mxu0 0.0
    %1131 = vmatpush1.msra.mxu0 0.0
    %1132 = vmatprep.subr.mxu0 0.0
    %1133 = vmatpush1.msra.mxu0 0.0
    %1134 = vmatprep.subr.mxu0 0.0
    %1135 = vmatpush1.msra.mxu0 0.0
    %1136 = vmatprep.subr.mxu0 0.0
    %1137 = vmatpush1.msra.mxu0 0.0
    %1138 = vmatprep.subr.mxu0 0.0
    %1139 = vmatpush1.msra.mxu0 0.0
    %1140 = vmatprep.subr.mxu0 0.0
    %1141 = vmatpush1.msra.mxu0 0.0
    %1142 = vmatprep.mubr.f32.mxu0 0.0
    %1143 = vmatmul.mubr.f32.gmra.mrb[0].mxu0 %v1077
    %v1144 = vpop.f32.mrb[0].mxu0
    %v1145 = vadd.f32 %v185, %v1144
    %v1146 = vpop.f32.mrb[0].mxu0
    %1147 = vdwg.mxu0
    %s1148 = scalar_lea.vmem [#allocation13], 12
    %1149 = vst [vmem:[%s1148] sm:$0xf] %v1145
    %1150 = vmatprep.subr.mxu0 %v110
    %1151 = vmatpush1.msra.mxu0 %v109
    %1152 = vmatprep.subr.mxu0 %v113
    %1153 = vmatpush1.msra.mxu0 %v112
    %1154 = vmatprep.subr.mxu0 %v116
    %1155 = vmatpush1.msra.mxu0 %v115
    %1156 = vmatprep.subr.mxu0 %v119
    %1157 = vmatpush1.msra.mxu0 %v118
    %1158 = vmatprep.subr.mxu0 %v122
    %1159 = vmatpush1.msra.mxu0 %v121
    %1160 = vmatprep.subr.mxu0 %v125
    %1161 = vmatpush1.msra.mxu0 %v124
    %1162 = vmatprep.subr.mxu0 %v128
    %1163 = vmatpush1.msra.mxu0 %v127
    %1164 = vmatprep.subr.mxu0 %v131
    %1165 = vmatpush1.msra.mxu0 %v130
    %1166 = vmatprep.subr.mxu0 %v134
    %1167 = vmatpush1.msra.mxu0 %v133
    %1168 = vmatprep.subr.mxu0 %v137
    %1169 = vmatpush1.msra.mxu0 %v136
    %1170 = vmatprep.subr.mxu0 %v140
    %1171 = vmatpush1.msra.mxu0 %v139
    %1172 = vmatprep.subr.mxu0 %v143
    %1173 = vmatpush1.msra.mxu0 %v142
    %1174 = vmatprep.subr.mxu0 %v146
    %1175 = vmatpush1.msra.mxu0 %v145
    %1176 = vmatprep.subr.mxu0 %v149
    %1177 = vmatpush1.msra.mxu0 %v148
    %1178 = vmatprep.subr.mxu0 %v152
    %1179 = vmatpush1.msra.mxu0 %v151
    %1180 = vmatprep.subr.mxu0 %v155
    %1181 = vmatpush1.msra.mxu0 %v154
    %1182 = vmatprep.subr.mxu0 0.0
    %1183 = vmatpush1.msra.mxu0 0.0
    %1184 = vmatprep.subr.mxu0 0.0
    %1185 = vmatpush1.msra.mxu0 0.0
    %1186 = vmatprep.subr.mxu0 0.0
    %1187 = vmatpush1.msra.mxu0 0.0
    %1188 = vmatprep.subr.mxu0 0.0
    %1189 = vmatpush1.msra.mxu0 0.0
    %1190 = vmatprep.subr.mxu0 0.0
    %1191 = vmatpush1.msra.mxu0 0.0
    %1192 = vmatprep.subr.mxu0 0.0
    %1193 = vmatpush1.msra.mxu0 0.0
    %1194 = vmatprep.subr.mxu0 0.0
    %1195 = vmatpush1.msra.mxu0 0.0
    %1196 = vmatprep.subr.mxu0 0.0
    %1197 = vmatpush1.msra.mxu0 0.0
    %1198 = vmatprep.subr.mxu0 0.0
    %1199 = vmatpush1.msra.mxu0 0.0
    %1200 = vmatprep.subr.mxu0 0.0
    %1201 = vmatpush1.msra.mxu0 0.0
    %1202 = vmatprep.subr.mxu0 0.0
    %1203 = vmatpush1.msra.mxu0 0.0
    %1204 = vmatprep.subr.mxu0 0.0
    %1205 = vmatpush1.msra.mxu0 0.0
    %1206 = vmatprep.subr.mxu0 0.0
    %1207 = vmatpush1.msra.mxu0 0.0
    %1208 = vmatprep.subr.mxu0 0.0
    %1209 = vmatpush1.msra.mxu0 0.0
    %1210 = vmatprep.subr.mxu0 0.0
    %1211 = vmatpush1.msra.mxu0 0.0
    %1212 = vmatprep.subr.mxu0 0.0
    %1213 = vmatpush1.msra.mxu0 0.0
    %1214 = vmatprep.mubr.f32.mxu0 0.0
    %1215 = vmatmul.mubr.f32.gmra.mrb[0].mxu0 %v1077
    %v1216 = vpop.f32.mrb[0].mxu0
    %v1217 = vadd.f32 0.0, %v1216
    %v1218 = vpop.f32.mrb[0].mxu0
    %v1219 = vadd.f32 0.0, %v1218
    %1220 = vdwg.mxu0
    %1221 = vmatprep.subr.mxu0 0.0
    %1222 = vmatpush1.msra.mxu0 %v111
    %1223 = vmatprep.subr.mxu0 0.0
    %1224 = vmatpush1.msra.mxu0 %v114
    %1225 = vmatprep.subr.mxu0 0.0
    %1226 = vmatpush1.msra.mxu0 %v117
    %1227 = vmatprep.subr.mxu0 0.0
    %1228 = vmatpush1.msra.mxu0 %v120
    %1229 = vmatprep.subr.mxu0 0.0
    %1230 = vmatpush1.msra.mxu0 %v123
    %1231 = vmatprep.subr.mxu0 0.0
    %1232 = vmatpush1.msra.mxu0 %v126
    %1233 = vmatprep.subr.mxu0 0.0
    %1234 = vmatpush1.msra.mxu0 %v129
    %1235 = vmatprep.subr.mxu0 0.0
    %1236 = vmatpush1.msra.mxu0 %v132
    %1237 = vmatprep.subr.mxu0 0.0
    %1238 = vmatpush1.msra.mxu0 %v135
    %1239 = vmatprep.subr.mxu0 0.0
    %1240 = vmatpush1.msra.mxu0 %v138
    %1241 = vmatprep.subr.mxu0 0.0
    %1242 = vmatpush1.msra.mxu0 %v141
    %1243 = vmatprep.subr.mxu0 0.0
    %1244 = vmatpush1.msra.mxu0 %v144
    %1245 = vmatprep.subr.mxu0 0.0
    %1246 = vmatpush1.msra.mxu0 %v147
    %1247 = vmatprep.subr.mxu0 0.0
    %1248 = vmatpush1.msra.mxu0 %v150
    %1249 = vmatprep.subr.mxu0 0.0
    %1250 = vmatpush1.msra.mxu0 %v153
    %1251 = vmatprep.subr.mxu0 0.0
    %1252 = vmatpush1.msra.mxu0 %v156
    %1253 = vmatprep.subr.mxu0 0.0
    %1254 = vmatpush1.msra.mxu0 0.0
    %1255 = vmatprep.subr.mxu0 0.0
    %1256 = vmatpush1.msra.mxu0 0.0
    %1257 = vmatprep.subr.mxu0 0.0
    %1258 = vmatpush1.msra.mxu0 0.0
    %1259 = vmatprep.subr.mxu0 0.0
    %1260 = vmatpush1.msra.mxu0 0.0
    %1261 = vmatprep.subr.mxu0 0.0
    %1262 = vmatpush1.msra.mxu0 0.0
    %1263 = vmatprep.subr.mxu0 0.0
    %1264 = vmatpush1.msra.mxu0 0.0
    %1265 = vmatprep.subr.mxu0 0.0
    %1266 = vmatpush1.msra.mxu0 0.0
    %1267 = vmatprep.subr.mxu0 0.0
    %1268 = vmatpush1.msra.mxu0 0.0
    %1269 = vmatprep.subr.mxu0 0.0
    %1270 = vmatpush1.msra.mxu0 0.0
    %1271 = vmatprep.subr.mxu0 0.0
    %1272 = vmatpush1.msra.mxu0 0.0
    %1273 = vmatprep.subr.mxu0 0.0
    %1274 = vmatpush1.msra.mxu0 0.0
    %1275 = vmatprep.subr.mxu0 0.0
    %1276 = vmatpush1.msra.mxu0 0.0
    %1277 = vmatprep.subr.mxu0 0.0
    %1278 = vmatpush1.msra.mxu0 0.0
    %1279 = vmatprep.subr.mxu0 0.0
    %1280 = vmatpush1.msra.mxu0 0.0
    %1281 = vmatprep.subr.mxu0 0.0
    %1282 = vmatpush1.msra.mxu0 0.0
    %1283 = vmatprep.subr.mxu0 0.0
    %1284 = vmatpush1.msra.mxu0 0.0
    %1285 = vmatprep.mubr.f32.mxu0 0.0
    %1286 = vmatmul.mubr.f32.gmra.mrb[0].mxu0 %v1077
    %v1287 = vpop.f32.mrb[0].mxu0
    %v1288 = vadd.f32 0.0, %v1287
    %v1289 = vpop.f32.mrb[0].mxu0
    %1290 = vdwg.mxu0
    %s1291 = scalar_lea.vmem [#allocation2], 48
    %v1292 = vld [vmem:[%s1291] sm:$0xff]
    %v1293 = vld [vmem:[%s1291 + $0x8] sm:$0xf]
    %v1294 = vadd.f32 %v1292, %v1217
    %v1295 = vxor.u32 %v1294, 2147483648
    %v1296 = vmul.f32 %v1295, 1.442695
    %v1297 = vpow.pop %v1296
    %v1298 = vadd.f32 %v1297, 1.0
    %v1299 = vrcp.pop %v1298
    %v1300 = vmul.f32 1.0, %v1299
    %v1302 = vrot.slane %v1292, 4
    %v1304 = vadd.f32 %v1302, %v1219
    %v1305 = vxor.u32 %v1304, 2147483648
    %v1306 = vmul.f32 %v1305, 1.442695
    %v1307 = vpow.pop %v1306
    %v1308 = vadd.f32 %v1307, 1.0
    %v1309 = vrcp.pop %v1308
    %v1310 = vmul.f32 1.0, %v1309
    %v1311 = vadd.f32 %v1288, %v178
    %v1312 = vmul.f32 %v1300, %v1311
    %v1313 = vadd.f32 %v1293, %v1312
    %v1314 = vtanh.pop %v1313
    %v1315 = vsub.f32 1.0, %v1310
    %v1316 = vmul.f32 %v1315, %v1314
    %v1317 = vmul.f32 %v1310, %v1077
    %v1318 = vadd.f32 %v1316, %v1317
    %1319 = vmatprep.subr.mxu0 0.0
    %1320 = vmatpush1.msra.mxu0 %v157
    %1321 = vmatprep.subr.mxu0 0.0
    %1322 = vmatpush1.msra.mxu0 %v158
    %1323 = vmatprep.subr.mxu0 0.0
    %1324 = vmatpush1.msra.mxu0 %v159
    %1325 = vmatprep.subr.mxu0 0.0
    %1326 = vmatpush1.msra.mxu0 %v160
    %1327 = vmatprep.subr.mxu0 0.0
    %1328 = vmatpush1.msra.mxu0 %v161
    %1329 = vmatprep.subr.mxu0 0.0
    %1330 = vmatpush1.msra.mxu0 %v162
    %1331 = vmatprep.subr.mxu0 0.0
    %1332 = vmatpush1.msra.mxu0 %v163
    %1333 = vmatprep.subr.mxu0 0.0
    %1334 = vmatpush1.msra.mxu0 %v164
    %1335 = vmatprep.subr.mxu0 0.0
    %1336 = vmatpush1.msra.mxu0 %v165
    %1337 = vmatprep.subr.mxu0 0.0
    %1338 = vmatpush1.msra.mxu0 %v166
    %1339 = vmatprep.subr.mxu0 0.0
    %1340 = vmatpush1.msra.mxu0 %v167
    %1341 = vmatprep.subr.mxu0 0.0
    %1342 = vmatpush1.msra.mxu0 %v168
    %1343 = vmatprep.subr.mxu0 0.0
    %1344 = vmatpush1.msra.mxu0 %v169
    %1345 = vmatprep.subr.mxu0 0.0
    %1346 = vmatpush1.msra.mxu0 %v170
    %1347 = vmatprep.subr.mxu0 0.0
    %1348 = vmatpush1.msra.mxu0 %v171
    %1349 = vmatprep.subr.mxu0 0.0
    %1350 = vmatpush1.msra.mxu0 %v172
    %1351 = vmatprep.subr.mxu0 0.0
    %1352 = vmatpush1.msra.mxu0 0.0
    %1353 = vmatprep.subr.mxu0 0.0
    %1354 = vmatpush1.msra.mxu0 0.0
    %1355 = vmatprep.subr.mxu0 0.0
    %1356 = vmatpush1.msra.mxu0 0.0
    %1357 = vmatprep.subr.mxu0 0.0
    %1358 = vmatpush1.msra.mxu0 0.0
    %1359 = vmatprep.subr.mxu0 0.0
    %1360 = vmatpush1.msra.mxu0 0.0
    %1361 = vmatprep.subr.mxu0 0.0
    %1362 = vmatpush1.msra.mxu0 0.0
    %1363 = vmatprep.subr.mxu0 0.0
    %1364 = vmatpush1.msra.mxu0 0.0
    %1365 = vmatprep.subr.mxu0 0.0
    %1366 = vmatpush1.msra.mxu0 0.0
    %1367 = vmatprep.subr.mxu0 0.0
    %1368 = vmatpush1.msra.mxu0 0.0
    %1369 = vmatprep.subr.mxu0 0.0
    %1370 = vmatpush1.msra.mxu0 0.0
    %1371 = vmatprep.subr.mxu0 0.0
    %1372 = vmatpush1.msra.mxu0 0.0
    %1373 = vmatprep.subr.mxu0 0.0
    %1374 = vmatpush1.msra.mxu0 0.0
    %1375 = vmatprep.subr.mxu0 0.0
    %1376 = vmatpush1.msra.mxu0 0.0
    %1377 = vmatprep.subr.mxu0 0.0
    %1378 = vmatpush1.msra.mxu0 0.0
    %1379 = vmatprep.subr.mxu0 0.0
    %1380 = vmatpush1.msra.mxu0 0.0
    %1381 = vmatprep.subr.mxu0 0.0
    %1382 = vmatpush1.msra.mxu0 0.0
    %1383 = vmatprep.mubr.f32.mxu0 0.0
    %1384 = vmatmul.mubr.f32.gmra.mrb[0].mxu0 %v1318
    %v1385 = vpop.f32.mrb[0].mxu0
    %v1386 = vadd.f32 %v185, %v1385
    %v1387 = vpop.f32.mrb[0].mxu0
    %1388 = vdwg.mxu0
    %s1389 = scalar_lea.vmem [#allocation13], 16
    %1390 = vst [vmem:[%s1389] sm:$0xf] %v1386
    %1391 = vmatprep.subr.mxu0 %v110
    %1392 = vmatpush1.msra.mxu0 %v109
    %1393 = vmatprep.subr.mxu0 %v113
    %1394 = vmatpush1.msra.mxu0 %v112
    %1395 = vmatprep.subr.mxu0 %v116
    %1396 = vmatpush1.msra.mxu0 %v115
    %1397 = vmatprep.subr.mxu0 %v119
    %1398 = vmatpush1.msra.mxu0 %v118
    %1399 = vmatprep.subr.mxu0 %v122
    %1400 = vmatpush1.msra.mxu0 %v121
    %1401 = vmatprep.subr.mxu0 %v125
    %1402 = vmatpush1.msra.mxu0 %v124
    %1403 = vmatprep.subr.mxu0 %v128
    %1404 = vmatpush1.msra.mxu0 %v127
    %1405 = vmatprep.subr.mxu0 %v131
    %1406 = vmatpush1.msra.mxu0 %v130
    %1407 = vmatprep.subr.mxu0 %v134
    %1408 = vmatpush1.msra.mxu0 %v133
    %1409 = vmatprep.subr.mxu0 %v137
    %1410 = vmatpush1.msra.mxu0 %v136
    %1411 = vmatprep.subr.mxu0 %v140
    %1412 = vmatpush1.msra.mxu0 %v139
    %1413 = vmatprep.subr.mxu0 %v143
    %1414 = vmatpush1.msra.mxu0 %v142
    %1415 = vmatprep.subr.mxu0 %v146
    %1416 = vmatpush1.msra.mxu0 %v145
    %1417 = vmatprep.subr.mxu0 %v149
    %1418 = vmatpush1.msra.mxu0 %v148
    %1419 = vmatprep.subr.mxu0 %v152
    %1420 = vmatpush1.msra.mxu0 %v151
    %1421 = vmatprep.subr.mxu0 %v155
    %1422 = vmatpush1.msra.mxu0 %v154
    %1423 = vmatprep.subr.mxu0 0.0
    %1424 = vmatpush1.msra.mxu0 0.0
    %1425 = vmatprep.subr.mxu0 0.0
    %1426 = vmatpush1.msra.mxu0 0.0
    %1427 = vmatprep.subr.mxu0 0.0
    %1428 = vmatpush1.msra.mxu0 0.0
    %1429 = vmatprep.subr.mxu0 0.0
    %1430 = vmatpush1.msra.mxu0 0.0
    %1431 = vmatprep.subr.mxu0 0.0
    %1432 = vmatpush1.msra.mxu0 0.0
    %1433 = vmatprep.subr.mxu0 0.0
    %1434 = vmatpush1.msra.mxu0 0.0
    %1435 = vmatprep.subr.mxu0 0.0
    %1436 = vmatpush1.msra.mxu0 0.0
    %1437 = vmatprep.subr.mxu0 0.0
    %1438 = vmatpush1.msra.mxu0 0.0
    %1439 = vmatprep.subr.mxu0 0.0
    %1440 = vmatpush1.msra.mxu0 0.0
    %1441 = vmatprep.subr.mxu0 0.0
    %1442 = vmatpush1.msra.mxu0 0.0
    %1443 = vmatprep.subr.mxu0 0.0
    %1444 = vmatpush1.msra.mxu0 0.0
    %1445 = vmatprep.subr.mxu0 0.0
    %1446 = vmatpush1.msra.mxu0 0.0
    %1447 = vmatprep.subr.mxu0 0.0
    %1448 = vmatpush1.msra.mxu0 0.0
    %1449 = vmatprep.subr.mxu0 0.0
    %1450 = vmatpush1.msra.mxu0 0.0
    %1451 = vmatprep.subr.mxu0 0.0
    %1452 = vmatpush1.msra.mxu0 0.0
    %1453 = vmatprep.subr.mxu0 0.0
    %1454 = vmatpush1.msra.mxu0 0.0
    %1455 = vmatprep.mubr.f32.mxu0 0.0
    %1456 = vmatmul.mubr.f32.gmra.mrb[0].mxu0 %v1318
    %v1457 = vpop.f32.mrb[0].mxu0
    %v1458 = vadd.f32 0.0, %v1457
    %v1459 = vpop.f32.mrb[0].mxu0
    %v1460 = vadd.f32 0.0, %v1459
    %1461 = vdwg.mxu0
    %1462 = vmatprep.subr.mxu0 0.0
    %1463 = vmatpush1.msra.mxu0 %v111
    %1464 = vmatprep.subr.mxu0 0.0
    %1465 = vmatpush1.msra.mxu0 %v114
    %1466 = vmatprep.subr.mxu0 0.0
    %1467 = vmatpush1.msra.mxu0 %v117
    %1468 = vmatprep.subr.mxu0 0.0
    %1469 = vmatpush1.msra.mxu0 %v120
    %1470 = vmatprep.subr.mxu0 0.0
    %1471 = vmatpush1.msra.mxu0 %v123
    %1472 = vmatprep.subr.mxu0 0.0
    %1473 = vmatpush1.msra.mxu0 %v126
    %1474 = vmatprep.subr.mxu0 0.0
    %1475 = vmatpush1.msra.mxu0 %v129
    %1476 = vmatprep.subr.mxu0 0.0
    %1477 = vmatpush1.msra.mxu0 %v132
    %1478 = vmatprep.subr.mxu0 0.0
    %1479 = vmatpush1.msra.mxu0 %v135
    %1480 = vmatprep.subr.mxu0 0.0
    %1481 = vmatpush1.msra.mxu0 %v138
    %1482 = vmatprep.subr.mxu0 0.0
    %1483 = vmatpush1.msra.mxu0 %v141
    %1484 = vmatprep.subr.mxu0 0.0
    %1485 = vmatpush1.msra.mxu0 %v144
    %1486 = vmatprep.subr.mxu0 0.0
    %1487 = vmatpush1.msra.mxu0 %v147
    %1488 = vmatprep.subr.mxu0 0.0
    %1489 = vmatpush1.msra.mxu0 %v150
    %1490 = vmatprep.subr.mxu0 0.0
    %1491 = vmatpush1.msra.mxu0 %v153
    %1492 = vmatprep.subr.mxu0 0.0
    %1493 = vmatpush1.msra.mxu0 %v156
    %1494 = vmatprep.subr.mxu0 0.0
    %1495 = vmatpush1.msra.mxu0 0.0
    %1496 = vmatprep.subr.mxu0 0.0
    %1497 = vmatpush1.msra.mxu0 0.0
    %1498 = vmatprep.subr.mxu0 0.0
    %1499 = vmatpush1.msra.mxu0 0.0
    %1500 = vmatprep.subr.mxu0 0.0
    %1501 = vmatpush1.msra.mxu0 0.0
    %1502 = vmatprep.subr.mxu0 0.0
    %1503 = vmatpush1.msra.mxu0 0.0
    %1504 = vmatprep.subr.mxu0 0.0
    %1505 = vmatpush1.msra.mxu0 0.0
    %1506 = vmatprep.subr.mxu0 0.0
    %1507 = vmatpush1.msra.mxu0 0.0
    %1508 = vmatprep.subr.mxu0 0.0
    %1509 = vmatpush1.msra.mxu0 0.0
    %1510 = vmatprep.subr.mxu0 0.0
    %1511 = vmatpush1.msra.mxu0 0.0
    %1512 = vmatprep.subr.mxu0 0.0
    %1513 = vmatpush1.msra.mxu0 0.0
    %1514 = vmatprep.subr.mxu0 0.0
    %1515 = vmatpush1.msra.mxu0 0.0
    %1516 = vmatprep.subr.mxu0 0.0
    %1517 = vmatpush1.msra.mxu0 0.0
    %1518 = vmatprep.subr.mxu0 0.0
    %1519 = vmatpush1.msra.mxu0 0.0
    %1520 = vmatprep.subr.mxu0 0.0
    %1521 = vmatpush1.msra.mxu0 0.0
    %1522 = vmatprep.subr.mxu0 0.0
    %1523 = vmatpush1.msra.mxu0 0.0
    %1524 = vmatprep.subr.mxu0 0.0
    %1525 = vmatpush1.msra.mxu0 0.0
    %1526 = vmatprep.mubr.f32.mxu0 0.0
    %1527 = vmatmul.mubr.f32.gmra.mrb[0].mxu0 %v1318
    %v1528 = vpop.f32.mrb[0].mxu0
    %v1529 = vadd.f32 0.0, %v1528
    %v1530 = vpop.f32.mrb[0].mxu0
    %1531 = vdwg.mxu0
    %s1532 = scalar_lea.vmem [#allocation2], 60
    %v1533 = vld [vmem:[%s1532] sm:$0xff]
    %v1534 = vld [vmem:[%s1532 + $0x8] sm:$0xf]
    %v1535 = vadd.f32 %v1533, %v1458
    %v1536 = vxor.u32 %v1535, 2147483648
    %v1537 = vmul.f32 %v1536, 1.442695
    %v1538 = vpow.pop %v1537
    %v1539 = vadd.f32 %v1538, 1.0
    %v1540 = vrcp.pop %v1539
    %v1541 = vmul.f32 1.0, %v1540
    %v1543 = vrot.slane %v1533, 4
    %v1545 = vadd.f32 %v1543, %v1460
    %v1546 = vxor.u32 %v1545, 2147483648
    %v1547 = vmul.f32 %v1546, 1.442695
    %v1548 = vpow.pop %v1547
    %v1549 = vadd.f32 %v1548, 1.0
    %v1550 = vrcp.pop %v1549
    %v1551 = vmul.f32 1.0, %v1550
    %v1552 = vadd.f32 %v1529, %v178
    %v1553 = vmul.f32 %v1541, %v1552
    %v1554 = vadd.f32 %v1534, %v1553
    %v1555 = vtanh.pop %v1554
    %v1556 = vsub.f32 1.0, %v1551
    %v1557 = vmul.f32 %v1556, %v1555
    %v1558 = vmul.f32 %v1551, %v1318
    %v1559 = vadd.f32 %v1557, %v1558
    %1560 = vmatprep.subr.mxu0 0.0
    %1561 = vmatpush1.msra.mxu0 %v157
    %1562 = vmatprep.subr.mxu0 0.0
    %1563 = vmatpush1.msra.mxu0 %v158
    %1564 = vmatprep.subr.mxu0 0.0
    %1565 = vmatpush1.msra.mxu0 %v159
    %1566 = vmatprep.subr.mxu0 0.0
    %1567 = vmatpush1.msra.mxu0 %v160
    %1568 = vmatprep.subr.mxu0 0.0
    %1569 = vmatpush1.msra.mxu0 %v161
    %1570 = vmatprep.subr.mxu0 0.0
    %1571 = vmatpush1.msra.mxu0 %v162
    %1572 = vmatprep.subr.mxu0 0.0
    %1573 = vmatpush1.msra.mxu0 %v163
    %1574 = vmatprep.subr.mxu0 0.0
    %1575 = vmatpush1.msra.mxu0 %v164
    %1576 = vmatprep.subr.mxu0 0.0
    %1577 = vmatpush1.msra.mxu0 %v165
    %1578 = vmatprep.subr.mxu0 0.0
    %1579 = vmatpush1.msra.mxu0 %v166
    %1580 = vmatprep.subr.mxu0 0.0
    %1581 = vmatpush1.msra.mxu0 %v167
    %1582 = vmatprep.subr.mxu0 0.0
    %1583 = vmatpush1.msra.mxu0 %v168
    %1584 = vmatprep.subr.mxu0 0.0
    %1585 = vmatpush1.msra.mxu0 %v169
    %1586 = vmatprep.subr.mxu0 0.0
    %1587 = vmatpush1.msra.mxu0 %v170
    %1588 = vmatprep.subr.mxu0 0.0
    %1589 = vmatpush1.msra.mxu0 %v171
    %1590 = vmatprep.subr.mxu0 0.0
    %1591 = vmatpush1.msra.mxu0 %v172
    %1592 = vmatprep.subr.mxu0 0.0
    %1593 = vmatpush1.msra.mxu0 0.0
    %1594 = vmatprep.subr.mxu0 0.0
    %1595 = vmatpush1.msra.mxu0 0.0
    %1596 = vmatprep.subr.mxu0 0.0
    %1597 = vmatpush1.msra.mxu0 0.0
    %1598 = vmatprep.subr.mxu0 0.0
    %1599 = vmatpush1.msra.mxu0 0.0
    %1600 = vmatprep.subr.mxu0 0.0
    %1601 = vmatpush1.msra.mxu0 0.0
    %1602 = vmatprep.subr.mxu0 0.0
    %1603 = vmatpush1.msra.mxu0 0.0
    %1604 = vmatprep.subr.mxu0 0.0
    %1605 = vmatpush1.msra.mxu0 0.0
    %1606 = vmatprep.subr.mxu0 0.0
    %1607 = vmatpush1.msra.mxu0 0.0
    %1608 = vmatprep.subr.mxu0 0.0
    %1609 = vmatpush1.msra.mxu0 0.0
    %1610 = vmatprep.subr.mxu0 0.0
    %1611 = vmatpush1.msra.mxu0 0.0
    %1612 = vmatprep.subr.mxu0 0.0
    %1613 = vmatpush1.msra.mxu0 0.0
    %1614 = vmatprep.subr.mxu0 0.0
    %1615 = vmatpush1.msra.mxu0 0.0
    %1616 = vmatprep.subr.mxu0 0.0
    %1617 = vmatpush1.msra.mxu0 0.0
    %1618 = vmatprep.subr.mxu0 0.0
    %1619 = vmatpush1.msra.mxu0 0.0
    %1620 = vmatprep.subr.mxu0 0.0
    %1621 = vmatpush1.msra.mxu0 0.0
    %1622 = vmatprep.subr.mxu0 0.0
    %1623 = vmatpush1.msra.mxu0 0.0
    %1624 = vmatprep.mubr.f32.mxu0 0.0
    %1625 = vmatmul.mubr.f32.gmra.mrb[0].mxu0 %v1559
    %v1626 = vpop.f32.mrb[0].mxu0
    %v1627 = vadd.f32 %v185, %v1626
    %v1628 = vpop.f32.mrb[0].mxu0
    %1629 = vdwg.mxu0
    %s1630 = scalar_lea.vmem [#allocation13], 20
    %1631 = vst [vmem:[%s1630] sm:$0xf] %v1627
    %1632 = vmatprep.subr.mxu0 %v110
    %1633 = vmatpush1.msra.mxu0 %v109
    %1634 = vmatprep.subr.mxu0 %v113
    %1635 = vmatpush1.msra.mxu0 %v112
    %1636 = vmatprep.subr.mxu0 %v116
    %1637 = vmatpush1.msra.mxu0 %v115
    %1638 = vmatprep.subr.mxu0 %v119
    %1639 = vmatpush1.msra.mxu0 %v118
    %1640 = vmatprep.subr.mxu0 %v122
    %1641 = vmatpush1.msra.mxu0 %v121
    %1642 = vmatprep.subr.mxu0 %v125
    %1643 = vmatpush1.msra.mxu0 %v124
    %1644 = vmatprep.subr.mxu0 %v128
    %1645 = vmatpush1.msra.mxu0 %v127
    %1646 = vmatprep.subr.mxu0 %v131
    %1647 = vmatpush1.msra.mxu0 %v130
    %1648 = vmatprep.subr.mxu0 %v134
    %1649 = vmatpush1.msra.mxu0 %v133
    %1650 = vmatprep.subr.mxu0 %v137
    %1651 = vmatpush1.msra.mxu0 %v136
    %1652 = vmatprep.subr.mxu0 %v140
    %1653 = vmatpush1.msra.mxu0 %v139
    %1654 = vmatprep.subr.mxu0 %v143
    %1655 = vmatpush1.msra.mxu0 %v142
    %1656 = vmatprep.subr.mxu0 %v146
    %1657 = vmatpush1.msra.mxu0 %v145
    %1658 = vmatprep.subr.mxu0 %v149
    %1659 = vmatpush1.msra.mxu0 %v148
    %1660 = vmatprep.subr.mxu0 %v152
    %1661 = vmatpush1.msra.mxu0 %v151
    %1662 = vmatprep.subr.mxu0 %v155
    %1663 = vmatpush1.msra.mxu0 %v154
    %1664 = vmatprep.subr.mxu0 0.0
    %1665 = vmatpush1.msra.mxu0 0.0
    %1666 = vmatprep.subr.mxu0 0.0
    %1667 = vmatpush1.msra.mxu0 0.0
    %1668 = vmatprep.subr.mxu0 0.0
    %1669 = vmatpush1.msra.mxu0 0.0
    %1670 = vmatprep.subr.mxu0 0.0
    %1671 = vmatpush1.msra.mxu0 0.0
    %1672 = vmatprep.subr.mxu0 0.0
    %1673 = vmatpush1.msra.mxu0 0.0
    %1674 = vmatprep.subr.mxu0 0.0
    %1675 = vmatpush1.msra.mxu0 0.0
    %1676 = vmatprep.subr.mxu0 0.0
    %1677 = vmatpush1.msra.mxu0 0.0
    %1678 = vmatprep.subr.mxu0 0.0
    %1679 = vmatpush1.msra.mxu0 0.0
    %1680 = vmatprep.subr.mxu0 0.0
    %1681 = vmatpush1.msra.mxu0 0.0
    %1682 = vmatprep.subr.mxu0 0.0
    %1683 = vmatpush1.msra.mxu0 0.0
    %1684 = vmatprep.subr.mxu0 0.0
    %1685 = vmatpush1.msra.mxu0 0.0
    %1686 = vmatprep.subr.mxu0 0.0
    %1687 = vmatpush1.msra.mxu0 0.0
    %1688 = vmatprep.subr.mxu0 0.0
    %1689 = vmatpush1.msra.mxu0 0.0
    %1690 = vmatprep.subr.mxu0 0.0
    %1691 = vmatpush1.msra.mxu0 0.0
    %1692 = vmatprep.subr.mxu0 0.0
    %1693 = vmatpush1.msra.mxu0 0.0
    %1694 = vmatprep.subr.mxu0 0.0
    %1695 = vmatpush1.msra.mxu0 0.0
    %1696 = vmatprep.mubr.f32.mxu0 0.0
    %1697 = vmatmul.mubr.f32.gmra.mrb[0].mxu0 %v1559
    %v1698 = vpop.f32.mrb[0].mxu0
    %v1699 = vadd.f32 0.0, %v1698
    %v1700 = vpop.f32.mrb[0].mxu0
    %v1701 = vadd.f32 0.0, %v1700
    %1702 = vdwg.mxu0
    %1703 = vmatprep.subr.mxu0 0.0
    %1704 = vmatpush1.msra.mxu0 %v111
    %1705 = vmatprep.subr.mxu0 0.0
    %1706 = vmatpush1.msra.mxu0 %v114
    %1707 = vmatprep.subr.mxu0 0.0
    %1708 = vmatpush1.msra.mxu0 %v117
    %1709 = vmatprep.subr.mxu0 0.0
    %1710 = vmatpush1.msra.mxu0 %v120
    %1711 = vmatprep.subr.mxu0 0.0
    %1712 = vmatpush1.msra.mxu0 %v123
    %1713 = vmatprep.subr.mxu0 0.0
    %1714 = vmatpush1.msra.mxu0 %v126
    %1715 = vmatprep.subr.mxu0 0.0
    %1716 = vmatpush1.msra.mxu0 %v129
    %1717 = vmatprep.subr.mxu0 0.0
    %1718 = vmatpush1.msra.mxu0 %v132
    %1719 = vmatprep.subr.mxu0 0.0
    %1720 = vmatpush1.msra.mxu0 %v135
    %1721 = vmatprep.subr.mxu0 0.0
    %1722 = vmatpush1.msra.mxu0 %v138
    %1723 = vmatprep.subr.mxu0 0.0
    %1724 = vmatpush1.msra.mxu0 %v141
    %1725 = vmatprep.subr.mxu0 0.0
    %1726 = vmatpush1.msra.mxu0 %v144
    %1727 = vmatprep.subr.mxu0 0.0
    %1728 = vmatpush1.msra.mxu0 %v147
    %1729 = vmatprep.subr.mxu0 0.0
    %1730 = vmatpush1.msra.mxu0 %v150
    %1731 = vmatprep.subr.mxu0 0.0
    %1732 = vmatpush1.msra.mxu0 %v153
    %1733 = vmatprep.subr.mxu0 0.0
    %1734 = vmatpush1.msra.mxu0 %v156
    %1735 = vmatprep.subr.mxu0 0.0
    %1736 = vmatpush1.msra.mxu0 0.0
    %1737 = vmatprep.subr.mxu0 0.0
    %1738 = vmatpush1.msra.mxu0 0.0
    %1739 = vmatprep.subr.mxu0 0.0
    %1740 = vmatpush1.msra.mxu0 0.0
    %1741 = vmatprep.subr.mxu0 0.0
    %1742 = vmatpush1.msra.mxu0 0.0
    %1743 = vmatprep.subr.mxu0 0.0
    %1744 = vmatpush1.msra.mxu0 0.0
    %1745 = vmatprep.subr.mxu0 0.0
    %1746 = vmatpush1.msra.mxu0 0.0
    %1747 = vmatprep.subr.mxu0 0.0
    %1748 = vmatpush1.msra.mxu0 0.0
    %1749 = vmatprep.subr.mxu0 0.0
    %1750 = vmatpush1.msra.mxu0 0.0
    %1751 = vmatprep.subr.mxu0 0.0
    %1752 = vmatpush1.msra.mxu0 0.0
    %1753 = vmatprep.subr.mxu0 0.0
    %1754 = vmatpush1.msra.mxu0 0.0
    %1755 = vmatprep.subr.mxu0 0.0
    %1756 = vmatpush1.msra.mxu0 0.0
    %1757 = vmatprep.subr.mxu0 0.0
    %1758 = vmatpush1.msra.mxu0 0.0
    %1759 = vmatprep.subr.mxu0 0.0
    %1760 = vmatpush1.msra.mxu0 0.0
    %1761 = vmatprep.subr.mxu0 0.0
    %1762 = vmatpush1.msra.mxu0 0.0
    %1763 = vmatprep.subr.mxu0 0.0
    %1764 = vmatpush1.msra.mxu0 0.0
    %1765 = vmatprep.subr.mxu0 0.0
    %1766 = vmatpush1.msra.mxu0 0.0
    %1767 = vmatprep.mubr.f32.mxu0 0.0
    %1768 = vmatmul.mubr.f32.gmra.mrb[0].mxu0 %v1559
    %v1769 = vpop.f32.mrb[0].mxu0
    %v1770 = vadd.f32 0.0, %v1769
    %v1771 = vpop.f32.mrb[0].mxu0
    %1772 = vdwg.mxu0
    %s1773 = scalar_lea.vmem [#allocation2], 72
    %v1774 = vld [vmem:[%s1773] sm:$0xff]
    %v1775 = vld [vmem:[%s1773 + $0x8] sm:$0xf]
    %v1776 = vadd.f32 %v1774, %v1699
    %v1777 = vxor.u32 %v1776, 2147483648
    %v1778 = vmul.f32 %v1777, 1.442695
    %v1779 = vpow.pop %v1778
    %v1780 = vadd.f32 %v1779, 1.0
    %v1781 = vrcp.pop %v1780
    %v1782 = vmul.f32 1.0, %v1781
    %v1784 = vrot.slane %v1774, 4
    %v1786 = vadd.f32 %v1784, %v1701
    %v1787 = vxor.u32 %v1786, 2147483648
    %v1788 = vmul.f32 %v1787, 1.442695
    %v1789 = vpow.pop %v1788
    %v1790 = vadd.f32 %v1789, 1.0
    %v1791 = vrcp.pop %v1790
    %v1792 = vmul.f32 1.0, %v1791
    %v1793 = vadd.f32 %v1770, %v178
    %v1794 = vmul.f32 %v1782, %v1793
    %v1795 = vadd.f32 %v1775, %v1794
    %v1796 = vtanh.pop %v1795
    %v1797 = vsub.f32 1.0, %v1792
    %v1798 = vmul.f32 %v1797, %v1796
    %v1799 = vmul.f32 %v1792, %v1559
    %v1800 = vadd.f32 %v1798, %v1799
    %1801 = vmatprep.subr.mxu0 0.0
    %1802 = vmatpush1.msra.mxu0 %v157
    %1803 = vmatprep.subr.mxu0 0.0
    %1804 = vmatpush1.msra.mxu0 %v158
    %1805 = vmatprep.subr.mxu0 0.0
    %1806 = vmatpush1.msra.mxu0 %v159
    %1807 = vmatprep.subr.mxu0 0.0
    %1808 = vmatpush1.msra.mxu0 %v160
    %1809 = vmatprep.subr.mxu0 0.0
    %1810 = vmatpush1.msra.mxu0 %v161
    %1811 = vmatprep.subr.mxu0 0.0
    %1812 = vmatpush1.msra.mxu0 %v162
    %1813 = vmatprep.subr.mxu0 0.0
    %1814 = vmatpush1.msra.mxu0 %v163
    %1815 = vmatprep.subr.mxu0 0.0
    %1816 = vmatpush1.msra.mxu0 %v164
    %1817 = vmatprep.subr.mxu0 0.0
    %1818 = vmatpush1.msra.mxu0 %v165
    %1819 = vmatprep.subr.mxu0 0.0
    %1820 = vmatpush1.msra.mxu0 %v166
    %1821 = vmatprep.subr.mxu0 0.0
    %1822 = vmatpush1.msra.mxu0 %v167
    %1823 = vmatprep.subr.mxu0 0.0
    %1824 = vmatpush1.msra.mxu0 %v168
    %1825 = vmatprep.subr.mxu0 0.0
    %1826 = vmatpush1.msra.mxu0 %v169
    %1827 = vmatprep.subr.mxu0 0.0
    %1828 = vmatpush1.msra.mxu0 %v170
    %1829 = vmatprep.subr.mxu0 0.0
    %1830 = vmatpush1.msra.mxu0 %v171
    %1831 = vmatprep.subr.mxu0 0.0
    %1832 = vmatpush1.msra.mxu0 %v172
    %1833 = vmatprep.subr.mxu0 0.0
    %1834 = vmatpush1.msra.mxu0 0.0
    %1835 = vmatprep.subr.mxu0 0.0
    %1836 = vmatpush1.msra.mxu0 0.0
    %1837 = vmatprep.subr.mxu0 0.0
    %1838 = vmatpush1.msra.mxu0 0.0
    %1839 = vmatprep.subr.mxu0 0.0
    %1840 = vmatpush1.msra.mxu0 0.0
    %1841 = vmatprep.subr.mxu0 0.0
    %1842 = vmatpush1.msra.mxu0 0.0
    %1843 = vmatprep.subr.mxu0 0.0
    %1844 = vmatpush1.msra.mxu0 0.0
    %1845 = vmatprep.subr.mxu0 0.0
    %1846 = vmatpush1.msra.mxu0 0.0
    %1847 = vmatprep.subr.mxu0 0.0
    %1848 = vmatpush1.msra.mxu0 0.0
    %1849 = vmatprep.subr.mxu0 0.0
    %1850 = vmatpush1.msra.mxu0 0.0
    %1851 = vmatprep.subr.mxu0 0.0
    %1852 = vmatpush1.msra.mxu0 0.0
    %1853 = vmatprep.subr.mxu0 0.0
    %1854 = vmatpush1.msra.mxu0 0.0
    %1855 = vmatprep.subr.mxu0 0.0
    %1856 = vmatpush1.msra.mxu0 0.0
    %1857 = vmatprep.subr.mxu0 0.0
    %1858 = vmatpush1.msra.mxu0 0.0
    %1859 = vmatprep.subr.mxu0 0.0
    %1860 = vmatpush1.msra.mxu0 0.0
    %1861 = vmatprep.subr.mxu0 0.0
    %1862 = vmatpush1.msra.mxu0 0.0
    %1863 = vmatprep.subr.mxu0 0.0
    %1864 = vmatpush1.msra.mxu0 0.0
    %1865 = vmatprep.mubr.f32.mxu0 0.0
    %1866 = vmatmul.mubr.f32.gmra.mrb[0].mxu0 %v1800
    %v1867 = vpop.f32.mrb[0].mxu0
    %v1868 = vadd.f32 %v185, %v1867
    %v1869 = vpop.f32.mrb[0].mxu0
    %1870 = vdwg.mxu0
    %s1871 = scalar_lea.vmem [#allocation13], 24
    %1872 = vst [vmem:[%s1871] sm:$0xf] %v1868
    %1873 = vmatprep.subr.mxu0 %v110
    %1874 = vmatpush1.msra.mxu0 %v109
    %1875 = vmatprep.subr.mxu0 %v113
    %1876 = vmatpush1.msra.mxu0 %v112
    %1877 = vmatprep.subr.mxu0 %v116
    %1878 = vmatpush1.msra.mxu0 %v115
    %1879 = vmatprep.subr.mxu0 %v119
    %1880 = vmatpush1.msra.mxu0 %v118
    %1881 = vmatprep.subr.mxu0 %v122
    %1882 = vmatpush1.msra.mxu0 %v121
    %1883 = vmatprep.subr.mxu0 %v125
    %1884 = vmatpush1.msra.mxu0 %v124
    %1885 = vmatprep.subr.mxu0 %v128
    %1886 = vmatpush1.msra.mxu0 %v127
    %1887 = vmatprep.subr.mxu0 %v131
    %1888 = vmatpush1.msra.mxu0 %v130
    %1889 = vmatprep.subr.mxu0 %v134
    %1890 = vmatpush1.msra.mxu0 %v133
    %1891 = vmatprep.subr.mxu0 %v137
    %1892 = vmatpush1.msra.mxu0 %v136
    %1893 = vmatprep.subr.mxu0 %v140
    %1894 = vmatpush1.msra.mxu0 %v139
    %1895 = vmatprep.subr.mxu0 %v143
    %1896 = vmatpush1.msra.mxu0 %v142
    %1897 = vmatprep.subr.mxu0 %v146
    %1898 = vmatpush1.msra.mxu0 %v145
    %1899 = vmatprep.subr.mxu0 %v149
    %1900 = vmatpush1.msra.mxu0 %v148
    %1901 = vmatprep.subr.mxu0 %v152
    %1902 = vmatpush1.msra.mxu0 %v151
    %1903 = vmatprep.subr.mxu0 %v155
    %1904 = vmatpush1.msra.mxu0 %v154
    %1905 = vmatprep.subr.mxu0 0.0
    %1906 = vmatpush1.msra.mxu0 0.0
    %1907 = vmatprep.subr.mxu0 0.0
    %1908 = vmatpush1.msra.mxu0 0.0
    %1909 = vmatprep.subr.mxu0 0.0
    %1910 = vmatpush1.msra.mxu0 0.0
    %1911 = vmatprep.subr.mxu0 0.0
    %1912 = vmatpush1.msra.mxu0 0.0
    %1913 = vmatprep.subr.mxu0 0.0
    %1914 = vmatpush1.msra.mxu0 0.0
    %1915 = vmatprep.subr.mxu0 0.0
    %1916 = vmatpush1.msra.mxu0 0.0
    %1917 = vmatprep.subr.mxu0 0.0
    %1918 = vmatpush1.msra.mxu0 0.0
    %1919 = vmatprep.subr.mxu0 0.0
    %1920 = vmatpush1.msra.mxu0 0.0
    %1921 = vmatprep.subr.mxu0 0.0
    %1922 = vmatpush1.msra.mxu0 0.0
    %1923 = vmatprep.subr.mxu0 0.0
    %1924 = vmatpush1.msra.mxu0 0.0
    %1925 = vmatprep.subr.mxu0 0.0
    %1926 = vmatpush1.msra.mxu0 0.0
    %1927 = vmatprep.subr.mxu0 0.0
    %1928 = vmatpush1.msra.mxu0 0.0
    %1929 = vmatprep.subr.mxu0 0.0
    %1930 = vmatpush1.msra.mxu0 0.0
    %1931 = vmatprep.subr.mxu0 0.0
    %1932 = vmatpush1.msra.mxu0 0.0
    %1933 = vmatprep.subr.mxu0 0.0
    %1934 = vmatpush1.msra.mxu0 0.0
    %1935 = vmatprep.subr.mxu0 0.0
    %1936 = vmatpush1.msra.mxu0 0.0
    %1937 = vmatprep.mubr.f32.mxu0 0.0
    %1938 = vmatmul.mubr.f32.gmra.mrb[0].mxu0 %v1800
    %v1939 = vpop.f32.mrb[0].mxu0
    %v1940 = vadd.f32 0.0, %v1939
    %v1941 = vpop.f32.mrb[0].mxu0
    %v1942 = vadd.f32 0.0, %v1941
    %1943 = vdwg.mxu0
    %1944 = vmatprep.subr.mxu0 0.0
    %1945 = vmatpush1.msra.mxu0 %v111
    %1946 = vmatprep.subr.mxu0 0.0
    %1947 = vmatpush1.msra.mxu0 %v114
    %1948 = vmatprep.subr.mxu0 0.0
    %1949 = vmatpush1.msra.mxu0 %v117
    %1950 = vmatprep.subr.mxu0 0.0
    %1951 = vmatpush1.msra.mxu0 %v120
    %1952 = vmatprep.subr.mxu0 0.0
    %1953 = vmatpush1.msra.mxu0 %v123
    %1954 = vmatprep.subr.mxu0 0.0
    %1955 = vmatpush1.msra.mxu0 %v126
    %1956 = vmatprep.subr.mxu0 0.0
    %1957 = vmatpush1.msra.mxu0 %v129
    %1958 = vmatprep.subr.mxu0 0.0
    %1959 = vmatpush1.msra.mxu0 %v132
    %1960 = vmatprep.subr.mxu0 0.0
    %1961 = vmatpush1.msra.mxu0 %v135
    %1962 = vmatprep.subr.mxu0 0.0
    %1963 = vmatpush1.msra.mxu0 %v138
    %1964 = vmatprep.subr.mxu0 0.0
    %1965 = vmatpush1.msra.mxu0 %v141
    %1966 = vmatprep.subr.mxu0 0.0
    %1967 = vmatpush1.msra.mxu0 %v144
    %1968 = vmatprep.subr.mxu0 0.0
    %1969 = vmatpush1.msra.mxu0 %v147
    %1970 = vmatprep.subr.mxu0 0.0
    %1971 = vmatpush1.msra.mxu0 %v150
    %1972 = vmatprep.subr.mxu0 0.0
    %1973 = vmatpush1.msra.mxu0 %v153
    %1974 = vmatprep.subr.mxu0 0.0
    %1975 = vmatpush1.msra.mxu0 %v156
    %1976 = vmatprep.subr.mxu0 0.0
    %1977 = vmatpush1.msra.mxu0 0.0
    %1978 = vmatprep.subr.mxu0 0.0
    %1979 = vmatpush1.msra.mxu0 0.0
    %1980 = vmatprep.subr.mxu0 0.0
    %1981 = vmatpush1.msra.mxu0 0.0
    %1982 = vmatprep.subr.mxu0 0.0
    %1983 = vmatpush1.msra.mxu0 0.0
    %1984 = vmatprep.subr.mxu0 0.0
    %1985 = vmatpush1.msra.mxu0 0.0
    %1986 = vmatprep.subr.mxu0 0.0
    %1987 = vmatpush1.msra.mxu0 0.0
    %1988 = vmatprep.subr.mxu0 0.0
    %1989 = vmatpush1.msra.mxu0 0.0
    %1990 = vmatprep.subr.mxu0 0.0
    %1991 = vmatpush1.msra.mxu0 0.0
    %1992 = vmatprep.subr.mxu0 0.0
    %1993 = vmatpush1.msra.mxu0 0.0
    %1994 = vmatprep.subr.mxu0 0.0
    %1995 = vmatpush1.msra.mxu0 0.0
    %1996 = vmatprep.subr.mxu0 0.0
    %1997 = vmatpush1.msra.mxu0 0.0
    %1998 = vmatprep.subr.mxu0 0.0
    %1999 = vmatpush1.msra.mxu0 0.0
    %2000 = vmatprep.subr.mxu0 0.0
    %2001 = vmatpush1.msra.mxu0 0.0
    %2002 = vmatprep.subr.mxu0 0.0
    %2003 = vmatpush1.msra.mxu0 0.0
    %2004 = vmatprep.subr.mxu0 0.0
    %2005 = vmatpush1.msra.mxu0 0.0
    %2006 = vmatprep.subr.mxu0 0.0
    %2007 = vmatpush1.msra.mxu0 0.0
    %2008 = vmatprep.mubr.f32.mxu0 0.0
    %2009 = vmatmul.mubr.f32.gmra.mrb[0].mxu0 %v1800
    %v2010 = vpop.f32.mrb[0].mxu0
    %v2011 = vadd.f32 0.0, %v2010
    %v2012 = vpop.f32.mrb[0].mxu0
    %2013 = vdwg.mxu0
    %s2014 = scalar_lea.vmem [#allocation2], 84
    %v2015 = vld [vmem:[%s2014] sm:$0xff]
    %v2016 = vld [vmem:[%s2014 + $0x8] sm:$0xf]
    %v2017 = vadd.f32 %v2015, %v1940
    %v2018 = vxor.u32 %v2017, 2147483648
    %v2019 = vmul.f32 %v2018, 1.442695
    %v2020 = vpow.pop %v2019
    %v2021 = vadd.f32 %v2020, 1.0
    %v2022 = vrcp.pop %v2021
    %v2023 = vmul.f32 1.0, %v2022
    %v2025 = vrot.slane %v2015, 4
    %v2027 = vadd.f32 %v2025, %v1942
    %v2028 = vxor.u32 %v2027, 2147483648
    %v2029 = vmul.f32 %v2028, 1.442695
    %v2030 = vpow.pop %v2029
    %v2031 = vadd.f32 %v2030, 1.0
    %v2032 = vrcp.pop %v2031
    %v2033 = vmul.f32 1.0, %v2032
    %v2034 = vadd.f32 %v2011, %v178
    %v2035 = vmul.f32 %v2023, %v2034
    %v2036 = vadd.f32 %v2016, %v2035
    %v2037 = vtanh.pop %v2036
    %v2038 = vsub.f32 1.0, %v2033
    %v2039 = vmul.f32 %v2038, %v2037
    %v2040 = vmul.f32 %v2033, %v1800
    %v2041 = vadd.f32 %v2039, %v2040
    %2042 = vmatprep.subr.mxu0 0.0
    %2043 = vmatpush1.msra.mxu0 %v157
    %2044 = vmatprep.subr.mxu0 0.0
    %2045 = vmatpush1.msra.mxu0 %v158
    %2046 = vmatprep.subr.mxu0 0.0
    %2047 = vmatpush1.msra.mxu0 %v159
    %2048 = vmatprep.subr.mxu0 0.0
    %2049 = vmatpush1.msra.mxu0 %v160
    %2050 = vmatprep.subr.mxu0 0.0
    %2051 = vmatpush1.msra.mxu0 %v161
    %2052 = vmatprep.subr.mxu0 0.0
    %2053 = vmatpush1.msra.mxu0 %v162
    %2054 = vmatprep.subr.mxu0 0.0
    %2055 = vmatpush1.msra.mxu0 %v163
    %2056 = vmatprep.subr.mxu0 0.0
    %2057 = vmatpush1.msra.mxu0 %v164
    %2058 = vmatprep.subr.mxu0 0.0
    %2059 = vmatpush1.msra.mxu0 %v165
    %2060 = vmatprep.subr.mxu0 0.0
    %2061 = vmatpush1.msra.mxu0 %v166
    %2062 = vmatprep.subr.mxu0 0.0
    %2063 = vmatpush1.msra.mxu0 %v167
    %2064 = vmatprep.subr.mxu0 0.0
    %2065 = vmatpush1.msra.mxu0 %v168
    %2066 = vmatprep.subr.mxu0 0.0
    %2067 = vmatpush1.msra.mxu0 %v169
    %2068 = vmatprep.subr.mxu0 0.0
    %2069 = vmatpush1.msra.mxu0 %v170
    %2070 = vmatprep.subr.mxu0 0.0
    %2071 = vmatpush1.msra.mxu0 %v171
    %2072 = vmatprep.subr.mxu0 0.0
    %2073 = vmatpush1.msra.mxu0 %v172
    %2074 = vmatprep.subr.mxu0 0.0
    %2075 = vmatpush1.msra.mxu0 0.0
    %2076 = vmatprep.subr.mxu0 0.0
    %2077 = vmatpush1.msra.mxu0 0.0
    %2078 = vmatprep.subr.mxu0 0.0
    %2079 = vmatpush1.msra.mxu0 0.0
    %2080 = vmatprep.subr.mxu0 0.0
    %2081 = vmatpush1.msra.mxu0 0.0
    %2082 = vmatprep.subr.mxu0 0.0
    %2083 = vmatpush1.msra.mxu0 0.0
    %2084 = vmatprep.subr.mxu0 0.0
    %2085 = vmatpush1.msra.mxu0 0.0
    %2086 = vmatprep.subr.mxu0 0.0
    %2087 = vmatpush1.msra.mxu0 0.0
    %2088 = vmatprep.subr.mxu0 0.0
    %2089 = vmatpush1.msra.mxu0 0.0
    %2090 = vmatprep.subr.mxu0 0.0
    %2091 = vmatpush1.msra.mxu0 0.0
    %2092 = vmatprep.subr.mxu0 0.0
    %2093 = vmatpush1.msra.mxu0 0.0
    %2094 = vmatprep.subr.mxu0 0.0
    %2095 = vmatpush1.msra.mxu0 0.0
    %2096 = vmatprep.subr.mxu0 0.0
    %2097 = vmatpush1.msra.mxu0 0.0
    %2098 = vmatprep.subr.mxu0 0.0
    %2099 = vmatpush1.msra.mxu0 0.0
    %2100 = vmatprep.subr.mxu0 0.0
    %2101 = vmatpush1.msra.mxu0 0.0
    %2102 = vmatprep.subr.mxu0 0.0
    %2103 = vmatpush1.msra.mxu0 0.0
    %2104 = vmatprep.subr.mxu0 0.0
    %2105 = vmatpush1.msra.mxu0 0.0
    %2106 = vmatprep.mubr.f32.mxu0 0.0
    %2107 = vmatmul.mubr.f32.gmra.mrb[0].mxu0 %v2041
    %v2108 = vpop.f32.mrb[0].mxu0
    %v2109 = vadd.f32 %v185, %v2108
    %v2110 = vpop.f32.mrb[0].mxu0
    %2111 = vdwg.mxu0
    %s2112 = scalar_lea.vmem [#allocation13], 28
    %2113 = vst [vmem:[%s2112] sm:$0xf] %v2109
    %2114 = vst [vmem:[#allocation14] sm:$0xf] %v2041
    // Predicated region
    $region54: #{gru_forward.3} parent=1 // pred_check
      _
    $region55: #{gru_forward.3} parent=1 // pred_check_branch
      %2116 = sbr.rel (0) target = $region57
    $region56: #{gru_forward.3} parent=1 // pred_region
      %s2118 = ssub.s32 512, 512
      %2119 = vsyncadd [#allocation4], %s2118
      %s2120 = sshll.u32 [#allocation13], 4
      %s2121 = int_to_ptr.vmem [resolvable:$true] %s2120
      %2126 = dma.vmem_to_hbm [thread:$0]  %s2121, 512, %s6, [#allocation4], 64, 64, 4
    $region57: #{gru_forward.3} parent=1 // pred_fallthru
      _
    // Predicated region
    $region58: #{gru_forward.3} parent=1 // pred_check
      _
    $region59: #{gru_forward.3} parent=1 // pred_check_branch
      %2128 = sbr.rel (0) target = $region61
    $region60: #{gru_forward.3} parent=1 // pred_region
      %s2130 = ssub.s32 64, 64
      %2131 = vsyncadd [#allocation15], %s2130
      %s2133 = sshll.u32 [#allocation14], 4
      %s2134 = int_to_ptr.vmem [resolvable:$true] %s2133
      %2136 = dma.vmem_to_hbm [thread:$0]  %s2134, 64, %s7, [#allocation15]
    $region61: #{gru_forward.3} parent=1 // pred_fallthru
      _
    // Predicated region
    $region62: #{gru_forward.3} parent=1 // pred_check
      _
    $region63: #{gru_forward.3} parent=1 // pred_check_branch
      %2138 = sbr.rel (0) target = $region65
    $region64: #{gru_forward.3} parent=1 // pred_region
      %2139 = dma.done [#allocation4], 512
    $region65: #{gru_forward.3} parent=1 // pred_fallthru
      _
    // Predicated region
    $region66: #{gru_forward.3} parent=1 // pred_check
      _
    $region67: #{gru_forward.3} parent=1 // pred_check_branch
      %2141 = sbr.rel (0) target = $region69
    $region68: #{gru_forward.3} parent=1 // pred_region
      %2142 = dma.done [#allocation15], 64
    $region69: #{gru_forward.3} parent=1 // pred_fallthru
      _
    %2143 = vsyncpa [#allocation3], 1
    %2144 = vsyncpa [#allocation6], 1
    %2145 = vsyncpa [#allocation9], 1
    %2146 = vsyncpa [#allocation12], 1
    %2147 = vsyncpa [#allocation4], 1
    %2148 = vsyncpa [#allocation15], 1

</llo_original>
